<compile_context>
chip_gen: v6e
topology: v6e:2x2x1
jax: 0.10.0
libtpu: 0.0.40
codegen_flags: <defaults>
</compile_context>

<pallas_src>
import functools

import jax
import jax.numpy as jnp
import numpy as np
from jax.experimental import pallas as pl
from jax.experimental.pallas import tpu as pltpu

_EPS = 1e-5
_LANE = 128


def _round_up(x, m):
    return (x + m - 1) // m * m


# ---------------------------------------------------------------------------
# Kernel
# ---------------------------------------------------------------------------
def _residual_kernel(x_ref, w1s_ref, wb2_ref, pool_ref, vec_ref, o_ref,
                     *, H, L, inv_cnt):
    """Fused conv1(3x3)+1x1-shortcut -> BN1 -> ReLU -> conv2(3x3) -> BN2 -> add -> ReLU.

    Activations live as (N*H, W*C) lane-dense slabs.  Each 3x3 conv is a single
    matmul against a stacked "band" weight (all W taps, the W zero padding and the
    three H taps folded into K); H zero padding is a 1-sublane shift + row mask.
    """
    hp = jax.lax.Precision.HIGHEST
    # TODO(synk): HIGHEST->HIGH downgrade (review) not applicable: Mosaic's dot
    # lowering only supports DEFAULT/HIGHEST, and DEFAULT (1-pass bf16) misses the
    # 1e-3 f32 tolerance, so every dot stays at HIGHEST.

    x = x_ref[...]                          # (NH, K1) lane-padded input slab
    NH = x.shape[0]
    pool = pool_ref[...]                    # (L, L) 0/1 channel-pool matrix
    vec = vec_ref[...]                      # (8, L) packed per-channel vectors
    b1, b2, b3 = vec[0:1, :], vec[1:2, :], vec[2:3, :]
    g1, be1 = vec[3:4, :], vec[4:5, :]
    g2, be2 = vec[5:6, :], vec[6:7, :]

    # Row masks generated in-kernel (no DMA): zero rows that a +-1 H shift would
    # pull across an image's H boundary.  The tiny (NH,1)->(NH,C) broadcasts at
    # the 4 use sites are fully hidden under the MXU-bound dots.
    h_idx = jax.lax.broadcasted_iota(jnp.int32, (NH, 1), 0) % H
    tmask = jnp.where(h_idx != 0, 1.0, 0.0)
    bmask = jnp.where(h_idx != H - 1, 1.0, 0.0)

    def shifted_concat(v):
        # (NH, C) -> (NH, 3C): [row above, row, row below]; rows shifted across an
        # image's H boundary are zeroed (== 'same' zero padding in H).
        # NOTE(review): kept as the validated 1-sublane concat instead of
        # pltpu.roll; it is hidden under the HIGHEST-precision dots either way.
        z = jnp.zeros((1, v.shape[1]), v.dtype)
        up = jnp.concatenate([z, v[:-1, :]], axis=0) * tmask
        dn = jnp.concatenate([v[1:, :], z], axis=0) * bmask
        return jnp.concatenate([up, v, dn], axis=1)

    def batchnorm(y, gamma, beta):
        # Training-mode BN (eps=1e-5); one-pass sum / sum-of-squares, with BOTH
        # per-channel pool reductions batched into one M=2 MXU pass.
        s = jnp.concatenate([jnp.sum(y, axis=0, keepdims=True),
                             jnp.sum(y * y, axis=0, keepdims=True)], axis=0)
        ps = jnp.dot(s, pool, preferred_element_type=jnp.float32,
                     precision=hp) * inv_cnt                         # (2, L)
        mean, ex2 = ps[0:1, :], ps[1:2, :]
        var = ex2 - mean * mean   # one-pass var: fine at this scale (f32 sums)
        scale = gamma * jax.lax.rsqrt(var + _EPS)
        return y * scale + (beta - mean * scale)

    # ---- conv1 (3x3, pad=1) and 1x1 shortcut fused into ONE matmul, N = 2L ----
    t = jnp.dot(shifted_concat(x), w1s_ref[...],
                preferred_element_type=jnp.float32, precision=hp)    # (NH, 2L)
    y = t[:, :L] + b1                       # pre-BN conv1
    sc = t[:, L:] + b3                      # shortcut, stays in vregs

    # ---- BN1 + ReLU ------------------------------------------------------------
    y = jnp.maximum(batchnorm(y, g1, be1), 0.0)

    # ---- conv2 (3x3, pad=1): ONE matmul, K = 3L --------------------------------
    y2 = jnp.dot(shifted_concat(y), wb2_ref[...],
                 preferred_element_type=jnp.float32, precision=hp) + b2
    # ---- BN2 + residual add + ReLU ---------------------------------------------
    y2 = batchnorm(y2, g2, be2)
    o_ref[...] = jnp.maximum(y2 + sc, 0.0).astype(o_ref.dtype)


# ---------------------------------------------------------------------------
# Parameter-only preprocessing (hoisted out of the per-forward path)
# ---------------------------------------------------------------------------
def _conv3x3_band(wk, W, k_pad):
    """wk: (3, 3, Cin, Cout) -> (3*k_pad, W*Cout) stacked band matrix.

    band[dy*k_pad + (w+dx-1)*Cin + ci, w*Cout + co] = wk[dy, dx, ci, co], with
    out-of-range W taps dropped ('same' zero padding in W baked in) and each dy
    block zero-padded from W*Cin to k_pad rows so the kernel's lane-concat of the
    three H-shifted input copies stays 128-lane aligned."""
    _, _, Cin, Cout = wk.shape
    f = wk.dtype
    blocks = []
    for dy in range(3):
        m = jnp.zeros((W * Cin, W * Cout), f)
        for dx in range(3):
            sel = jnp.eye(W, W, k=1 - dx, dtype=f)       # rows: w_in, cols: w_out
            m = m + jnp.kron(sel, wk[dy, dx])
        if k_pad > W * Cin:
            m = jnp.concatenate(
                [m, jnp.zeros((k_pad - W * Cin, W * Cout), f)], axis=0)
        blocks.append(m)
    return jnp.concatenate(blocks, axis=0)


def prepare_residual_params(params, W):
    """Build band / pool / packed-vector operands once per parameter set."""
    (w1, b1, w2, b2, w3, b3, g1, be1, g2, be2) = params
    f32 = jnp.float32
    Cout, Cin = w1.shape[0], w1.shape[1]
    L = W * Cout
    assert L % _LANE == 0, "W*Cout must be a multiple of 128 for the fused bands"
    K1 = _round_up(W * Cin, _LANE)          # lane-padded per-tap K for conv1/shortcut

    wb1 = _conv3x3_band(jnp.transpose(w1, (2, 3, 1, 0)).astype(f32), W, K1)  # (3K1, L)
    wb2 = _conv3x3_band(jnp.transpose(w2, (2, 3, 1, 0)).astype(f32), W, L)   # (3L, L)

    if w3 is not None:
        wb3 = jnp.kron(jnp.eye(W, dtype=f32),
                       jnp.transpose(w3, (2, 3, 1, 0))[0, 0].astype(f32))    # (W*Cin, L)
        b3v = b3.astype(f32)
    else:
        assert Cin == Cout, "identity shortcut requires Cin == Cout"
        wb3 = jnp.kron(jnp.eye(W, dtype=f32), jnp.eye(Cout, dtype=f32))
        b3v = jnp.zeros((Cout,), f32)
    # Fold the 1x1 shortcut into conv1's matmul as output lanes [L, 2L): it reads
    # the un-shifted x, i.e. only the middle dy block of the stacked K axis.
    sc_band = jnp.zeros((3 * K1, L), f32).at[K1:K1 + W * Cin, :].set(wb3)
    w1s = jnp.concatenate([wb1, sc_band], axis=1)                            # (3K1, 2L)

    # 0/1 channel-pool matrix: one (2,L)x(L,L) matmul does the strided per-channel
    # lane reduction for the BN stats AND broadcasts it back to every lane.
    pool = jnp.kron(jnp.ones((W, W), f32), jnp.eye(Cout, dtype=f32))         # (L, L)

    lane = lambda v: jnp.tile(v.astype(f32).reshape(1, Cout), (1, W))        # (1, L)
    vec = jnp.concatenate([lane(b1), lane(b2), lane(b3v), lane(g1), lane(be1),
                           lane(g2), lane(be2), jnp.zeros((1, L), f32)],
                          axis=0)                                            # (8, L)
    return w1s, wb2, pool, vec


# ---------------------------------------------------------------------------
# Forward wrapper
# ---------------------------------------------------------------------------
def residual_forward(x_nchw, prep):
    w1s, wb2, pool, vec = prep
    N, Cin, H, W = x_nchw.shape
    L = pool.shape[0]
    Cout = L // W
    K1 = w1s.shape[0] // 3

    # Layout plumbing: NCHW -> lane-dense (N*H, W*Cin) slab, zero-padded in lanes
    # to K1 so the in-kernel lane-concat of shifted copies stays tile-aligned.
    x2d = jnp.transpose(x_nchw, (0, 2, 3, 1)).reshape(N * H, W * Cin)
    if K1 > W * Cin:
        x2d = jnp.pad(x2d, ((0, 0), (0, K1 - W * Cin)))

    vmem = pl.BlockSpec(memory_space=pltpu.MemorySpace.VMEM)
    out2d = pl.pallas_call(
        functools.partial(_residual_kernel, H=H, L=L,
                          inv_cnt=1.0 / float(N * H * W)),
        out_shape=jax.ShapeDtypeStruct((N * H, L), x_nchw.dtype),
        in_specs=[vmem] * 5,
        out_specs=vmem,
    )(x2d, w1s, wb2, pool, vec)

    return jnp.transpose(out2d.reshape(N, H, W, Cout), (0, 3, 1, 2))         # NCHW


# ---------------------------------------------------------------------------
# Pure-JAX reference
# ---------------------------------------------------------------------------
def residual_reference(x, params):
    (w1, b1, w2, b2, w3, b3, g1, be1, g2, be2) = params

    def conv(x, w, b, pad):
        y = jax.lax.conv_general_dilated(
            x, w, window_strides=(1, 1), padding=[(pad, pad), (pad, pad)],
            dimension_numbers=('NCHW', 'OIHW', 'NCHW'),
            precision=jax.lax.Precision.HIGHEST)
        return y + b[None, :, None, None]

    def bn(y, g, be):
        m = jnp.mean(y, axis=(0, 2, 3), keepdims=True)
        v = jnp.mean((y - m) ** 2, axis=(0, 2, 3), keepdims=True)
        return ((y - m) * jax.lax.rsqrt(v + _EPS)
                * g[None, :, None, None] + be[None, :, None, None])

    y = jax.nn.relu(bn(conv(x, w1, b1, 1), g1, be1))
    y = bn(conv(y, w2, b2, 1), g2, be2)
    sc = conv(x, w3, b3, 0)
    return jax.nn.relu(y + sc)


if __name__ == "__main__":
    N, Cin, Cout, H, W = 2, 4, 8, 16, 16

    key = jax.random.PRNGKey(0)
    ks = jax.random.split(key, 11)
    w1 = jax.random.normal(ks[0], (Cout, Cin, 3, 3), jnp.float32) * 0.1
    b1 = jax.random.normal(ks[1], (Cout,), jnp.float32) * 0.1
    w2 = jax.random.normal(ks[2], (Cout, Cout, 3, 3), jnp.float32) * 0.1
    b2 = jax.random.normal(ks[3], (Cout,), jnp.float32) * 0.1
    w3 = jax.random.normal(ks[4], (Cout, Cin, 1, 1), jnp.float32) * 0.1
    b3 = jax.random.normal(ks[5], (Cout,), jnp.float32) * 0.1
    g1 = 1.0 + 0.1 * jax.random.normal(ks[6], (Cout,), jnp.float32)
    be1 = 0.1 * jax.random.normal(ks[7], (Cout,), jnp.float32)
    g2 = 1.0 + 0.1 * jax.random.normal(ks[8], (Cout,), jnp.float32)
    be2 = 0.1 * jax.random.normal(ks[9], (Cout,), jnp.float32)
    params = (w1, b1, w2, b2, w3, b3, g1, be1, g2, be2)

    x = jax.random.normal(ks[10], (N, Cin, H, W), jnp.float32)    # NCHW input

    prep = prepare_residual_params(params, W)                     # once per param set
    out = jax.block_until_ready(jax.jit(residual_forward)(x, prep))
    ref = jax.block_until_ready(residual_reference(x, params))
    if not np.allclose(np.asarray(out), np.asarray(ref), rtol=1e-3, atol=1e-3):
        raise AssertionError("Pallas Residual kernel mismatch vs reference")

    print("KERNEL_OK")
</pallas_src>

<mosaic_0001>
module attributes {stable_mosaic.version = 11 : i64} {
  func.func @_residual_kernel(%arg0: memref<32x128xf32, #tpu.memory_space<vmem>>, %arg1: memref<384x256xf32, #tpu.memory_space<vmem>>, %arg2: memref<384x128xf32, #tpu.memory_space<vmem>>, %arg3: memref<128x128xf32, #tpu.memory_space<vmem>>, %arg4: memref<8x128xf32, #tpu.memory_space<vmem>>, %arg5: memref<32x128xf32, #tpu.memory_space<vmem>>) attributes {dimension_semantics = [], scalar_prefetch = 0 : i64, scratch_operands = 0 : i64, tpu.core_type = #tpu.core_type<tc>} {
    %c0 = arith.constant 0 : index
    %c0_0 = arith.constant 0 : index
    %0 = vector.load %arg0[%c0, %c0_0] : memref<32x128xf32, #tpu.memory_space<vmem>>, vector<32x128xf32>
    %c0_1 = arith.constant 0 : index
    %c0_2 = arith.constant 0 : index
    %1 = vector.load %arg3[%c0_1, %c0_2] : memref<128x128xf32, #tpu.memory_space<vmem>>, vector<128x128xf32>
    %c0_3 = arith.constant 0 : index
    %c0_4 = arith.constant 0 : index
    %2 = vector.load %arg4[%c0_3, %c0_4] : memref<8x128xf32, #tpu.memory_space<vmem>>, vector<8x128xf32>
    %3 = vector.extract_strided_slice %2 {offsets = [0, 0], sizes = [1, 128], strides = [1, 1]} : vector<8x128xf32> to vector<1x128xf32>
    %4 = vector.extract_strided_slice %2 {offsets = [1, 0], sizes = [1, 128], strides = [1, 1]} : vector<8x128xf32> to vector<1x128xf32>
    %5 = vector.extract_strided_slice %2 {offsets = [2, 0], sizes = [1, 128], strides = [1, 1]} : vector<8x128xf32> to vector<1x128xf32>
    %6 = vector.extract_strided_slice %2 {offsets = [3, 0], sizes = [1, 128], strides = [1, 1]} : vector<8x128xf32> to vector<1x128xf32>
    %7 = vector.extract_strided_slice %2 {offsets = [4, 0], sizes = [1, 128], strides = [1, 1]} : vector<8x128xf32> to vector<1x128xf32>
    %8 = vector.extract_strided_slice %2 {offsets = [5, 0], sizes = [1, 128], strides = [1, 1]} : vector<8x128xf32> to vector<1x128xf32>
    %9 = vector.extract_strided_slice %2 {offsets = [6, 0], sizes = [1, 128], strides = [1, 1]} : vector<8x128xf32> to vector<1x128xf32>
    %10 = tpu.iota {dimensions = array<i32: 0>} : vector<32x1xi32>
    %c16_i32 = arith.constant 16 : i32
    %c0_i32 = arith.constant 0 : i32
    %11 = arith.cmpi eq, %c16_i32, %c0_i32 : i32
    %c1_i32 = arith.constant 1 : i32
    %12 = arith.select %11, %c1_i32, %c16_i32 : i32
    %13 = vector.broadcast %12 : i32 to vector<32x1xi32>
    %14 = arith.remsi %10, %13 : vector<32x1xi32>
    %c0_i32_5 = arith.constant 0 : i32
    %15 = vector.broadcast %c0_i32_5 : i32 to vector<32x1xi32>
    %16 = arith.cmpi ne, %14, %15 : vector<32x1xi32>
    %c0_i32_6 = arith.constant 0 : i32
    %17 = vector.broadcast %c0_i32_6 : i32 to vector<32x1xi32>
    %18 = arith.cmpi slt, %14, %17 : vector<32x1xi32>
    %c0_i32_7 = arith.constant 0 : i32
    %19 = arith.cmpi slt, %12, %c0_i32_7 : i32
    %20 = vector.broadcast %19 : i1 to vector<32x1xi1>
    %21 = vector.broadcast %20 : vector<32x1xi1> to vector<32x1xi1>
    %22 = arith.xori %18, %21 : vector<32x1xi1>
    %23 = arith.andi %22, %16 : vector<32x1xi1>
    %24 = vector.broadcast %12 : i32 to vector<32x1xi32>
    %25 = arith.addi %14, %24 : vector<32x1xi32>
    %26 = arith.select %23, %25, %14 : vector<32x1xi1>, vector<32x1xi32>
    %c0_i32_8 = arith.constant 0 : i32
    %27 = vector.broadcast %c0_i32_8 : i32 to vector<32x1xi32>
    %28 = arith.cmpi ne, %26, %27 : vector<32x1xi32>
    %cst = arith.constant 1.000000e+00 : f32
    %cst_9 = arith.constant 0.000000e+00 : f32
    %29 = vector.broadcast %cst : f32 to vector<32x1xf32>
    %30 = vector.broadcast %cst_9 : f32 to vector<32x1xf32>
    %31 = arith.select %28, %29, %30 : vector<32x1xi1>, vector<32x1xf32>
    %c15_i32 = arith.constant 15 : i32
    %32 = vector.broadcast %c15_i32 : i32 to vector<32x1xi32>
    %33 = arith.cmpi ne, %26, %32 : vector<32x1xi32>
    %cst_10 = arith.constant 1.000000e+00 : f32
    %cst_11 = arith.constant 0.000000e+00 : f32
    %34 = vector.broadcast %cst_10 : f32 to vector<32x1xf32>
    %35 = vector.broadcast %cst_11 : f32 to vector<32x1xf32>
    %36 = arith.select %33, %34, %35 : vector<32x1xi1>, vector<32x1xf32>
    %cst_12 = arith.constant 0.000000e+00 : f32
    %37 = vector.broadcast %cst_12 : f32 to vector<1x128xf32>
    %38 = vector.extract_strided_slice %0 {offsets = [0, 0], sizes = [31, 128], strides = [1, 1]} : vector<32x128xf32> to vector<31x128xf32>
    %39 = tpu.concatenate %37, %38 in 0 : vector<1x128xf32>, vector<31x128xf32> -> vector<32x128xf32>
    %40 = vector.broadcast %31 : vector<32x1xf32> to vector<32x128xf32>
    %41 = arith.mulf %39, %40 : vector<32x128xf32>
    %42 = vector.extract_strided_slice %0 {offsets = [1, 0], sizes = [31, 128], strides = [1, 1]} : vector<32x128xf32> to vector<31x128xf32>
    %43 = tpu.concatenate %42, %37 in 0 : vector<31x128xf32>, vector<1x128xf32> -> vector<32x128xf32>
    %44 = vector.broadcast %36 : vector<32x1xf32> to vector<32x128xf32>
    %45 = arith.mulf %43, %44 : vector<32x128xf32>
    %46 = tpu.concatenate %41, %0, %45 in 1 : vector<32x128xf32>, vector<32x128xf32>, vector<32x128xf32> -> vector<32x384xf32>
    %c0_13 = arith.constant 0 : index
    %c0_14 = arith.constant 0 : index
    %47 = vector.load %arg1[%c0_13, %c0_14] : memref<384x256xf32, #tpu.memory_space<vmem>>, vector<384x256xf32>
    %cst_15 = arith.constant dense<0.000000e+00> : vector<32x256xf32>
    %48 = tpu.matmul %46, %47, %cst_15 {dimension_numbers = #tpu.dot_dimension_numbers<[1], [0], [0], [1], [0, 0, 1, 1], [], []>, precision = #tpu.contract_precision<fp32>} : vector<32x384xf32>, vector<384x256xf32>, vector<32x256xf32> -> vector<32x256xf32>
    %49 = vector.extract_strided_slice %48 {offsets = [0, 0], sizes = [32, 128], strides = [1, 1]} : vector<32x256xf32> to vector<32x128xf32>
    %50 = vector.broadcast %3 : vector<1x128xf32> to vector<32x128xf32>
    %51 = arith.addf %49, %50 : vector<32x128xf32>
    %52 = vector.extract_strided_slice %48 {offsets = [0, 128], sizes = [32, 128], strides = [1, 1]} : vector<32x256xf32> to vector<32x128xf32>
    %53 = vector.broadcast %5 : vector<1x128xf32> to vector<32x128xf32>
    %54 = arith.addf %52, %53 : vector<32x128xf32>
    %cst_16 = arith.constant dense<0.000000e+00> : vector<128xf32>
    %55 = vector.multi_reduction <add>, %51, %cst_16 [0] : vector<32x128xf32> to vector<128xf32>
    %56 = vector.shape_cast %55 : vector<128xf32> to vector<1x128xf32>
    %57 = arith.mulf %51, %51 : vector<32x128xf32>
    %cst_17 = arith.constant dense<0.000000e+00> : vector<128xf32>
    %58 = vector.multi_reduction <add>, %57, %cst_17 [0] : vector<32x128xf32> to vector<128xf32>
    %59 = vector.shape_cast %58 : vector<128xf32> to vector<1x128xf32>
    %60 = tpu.concatenate %56, %59 in 0 : vector<1x128xf32>, vector<1x128xf32> -> vector<2x128xf32>
    %cst_18 = arith.constant dense<0.000000e+00> : vector<2x128xf32>
    %61 = tpu.matmul %60, %1, %cst_18 {dimension_numbers = #tpu.dot_dimension_numbers<[1], [0], [0], [1], [0, 0, 1, 1], [], []>, precision = #tpu.contract_precision<fp32>} : vector<2x128xf32>, vector<128x128xf32>, vector<2x128xf32> -> vector<2x128xf32>
    %cst_19 = arith.constant 0.001953125 : f32
    %62 = vector.broadcast %cst_19 : f32 to vector<2x128xf32>
    %63 = arith.mulf %61, %62 : vector<2x128xf32>
    %64 = vector.extract_strided_slice %63 {offsets = [0, 0], sizes = [1, 128], strides = [1, 1]} : vector<2x128xf32> to vector<1x128xf32>
    %65 = vector.extract_strided_slice %63 {offsets = [1, 0], sizes = [1, 128], strides = [1, 1]} : vector<2x128xf32> to vector<1x128xf32>
    %66 = arith.mulf %64, %64 : vector<1x128xf32>
    %67 = arith.subf %65, %66 : vector<1x128xf32>
    %cst_20 = arith.constant 9.99999974E-6 : f32
    %68 = vector.broadcast %cst_20 : f32 to vector<1x128xf32>
    %69 = arith.addf %67, %68 : vector<1x128xf32>
    %70 = math.rsqrt %69 : vector<1x128xf32>
    %71 = arith.mulf %6, %70 : vector<1x128xf32>
    %72 = vector.broadcast %71 : vector<1x128xf32> to vector<32x128xf32>
    %73 = arith.mulf %51, %72 : vector<32x128xf32>
    %74 = arith.mulf %64, %71 : vector<1x128xf32>
    %75 = arith.subf %7, %74 : vector<1x128xf32>
    %76 = vector.broadcast %75 : vector<1x128xf32> to vector<32x128xf32>
    %77 = arith.addf %73, %76 : vector<32x128xf32>
    %cst_21 = arith.constant 0.000000e+00 : f32
    %78 = vector.broadcast %cst_21 : f32 to vector<32x128xf32>
    %79 = arith.maximumf %77, %78 : vector<32x128xf32>
    %cst_22 = arith.constant 0.000000e+00 : f32
    %80 = vector.broadcast %cst_22 : f32 to vector<1x128xf32>
    %81 = vector.extract_strided_slice %79 {offsets = [0, 0], sizes = [31, 128], strides = [1, 1]} : vector<32x128xf32> to vector<31x128xf32>
    %82 = tpu.concatenate %80, %81 in 0 : vector<1x128xf32>, vector<31x128xf32> -> vector<32x128xf32>
    %83 = vector.broadcast %31 : vector<32x1xf32> to vector<32x128xf32>
    %84 = arith.mulf %82, %83 : vector<32x128xf32>
    %85 = vector.extract_strided_slice %79 {offsets = [1, 0], sizes = [31, 128], strides = [1, 1]} : vector<32x128xf32> to vector<31x128xf32>
    %86 = tpu.concatenate %85, %80 in 0 : vector<31x128xf32>, vector<1x128xf32> -> vector<32x128xf32>
    %87 = vector.broadcast %36 : vector<32x1xf32> to vector<32x128xf32>
    %88 = arith.mulf %86, %87 : vector<32x128xf32>
    %89 = tpu.concatenate %84, %79, %88 in 1 : vector<32x128xf32>, vector<32x128xf32>, vector<32x128xf32> -> vector<32x384xf32>
    %c0_23 = arith.constant 0 : index
    %c0_24 = arith.constant 0 : index
    %90 = vector.load %arg2[%c0_23, %c0_24] : memref<384x128xf32, #tpu.memory_space<vmem>>, vector<384x128xf32>
    %cst_25 = arith.constant dense<0.000000e+00> : vector<32x128xf32>
    %91 = tpu.matmul %89, %90, %cst_25 {dimension_numbers = #tpu.dot_dimension_numbers<[1], [0], [0], [1], [0, 0, 1, 1], [], []>, precision = #tpu.contract_precision<fp32>} : vector<32x384xf32>, vector<384x128xf32>, vector<32x128xf32> -> vector<32x128xf32>
    %92 = vector.broadcast %4 : vector<1x128xf32> to vector<32x128xf32>
    %93 = arith.addf %91, %92 : vector<32x128xf32>
    %cst_26 = arith.constant dense<0.000000e+00> : vector<128xf32>
    %94 = vector.multi_reduction <add>, %93, %cst_26 [0] : vector<32x128xf32> to vector<128xf32>
    %95 = vector.shape_cast %94 : vector<128xf32> to vector<1x128xf32>
    %96 = arith.mulf %93, %93 : vector<32x128xf32>
    %cst_27 = arith.constant dense<0.000000e+00> : vector<128xf32>
    %97 = vector.multi_reduction <add>, %96, %cst_27 [0] : vector<32x128xf32> to vector<128xf32>
    %98 = vector.shape_cast %97 : vector<128xf32> to vector<1x128xf32>
    %99 = tpu.concatenate %95, %98 in 0 : vector<1x128xf32>, vector<1x128xf32> -> vector<2x128xf32>
    %cst_28 = arith.constant dense<0.000000e+00> : vector<2x128xf32>
    %100 = tpu.matmul %99, %1, %cst_28 {dimension_numbers = #tpu.dot_dimension_numbers<[1], [0], [0], [1], [0, 0, 1, 1], [], []>, precision = #tpu.contract_precision<fp32>} : vector<2x128xf32>, vector<128x128xf32>, vector<2x128xf32> -> vector<2x128xf32>
    %cst_29 = arith.constant 0.001953125 : f32
    %101 = vector.broadcast %cst_29 : f32 to vector<2x128xf32>
    %102 = arith.mulf %100, %101 : vector<2x128xf32>
    %103 = vector.extract_strided_slice %102 {offsets = [0, 0], sizes = [1, 128], strides = [1, 1]} : vector<2x128xf32> to vector<1x128xf32>
    %104 = vector.extract_strided_slice %102 {offsets = [1, 0], sizes = [1, 128], strides = [1, 1]} : vector<2x128xf32> to vector<1x128xf32>
    %105 = arith.mulf %103, %103 : vector<1x128xf32>
    %106 = arith.subf %104, %105 : vector<1x128xf32>
    %cst_30 = arith.constant 9.99999974E-6 : f32
    %107 = vector.broadcast %cst_30 : f32 to vector<1x128xf32>
    %108 = arith.addf %106, %107 : vector<1x128xf32>
    %109 = math.rsqrt %108 : vector<1x128xf32>
    %110 = arith.mulf %8, %109 : vector<1x128xf32>
    %111 = vector.broadcast %110 : vector<1x128xf32> to vector<32x128xf32>
    %112 = arith.mulf %93, %111 : vector<32x128xf32>
    %113 = arith.mulf %103, %110 : vector<1x128xf32>
    %114 = arith.subf %9, %113 : vector<1x128xf32>
    %115 = vector.broadcast %114 : vector<1x128xf32> to vector<32x128xf32>
    %116 = arith.addf %112, %115 : vector<32x128xf32>
    %117 = arith.addf %116, %54 : vector<32x128xf32>
    %cst_31 = arith.constant 0.000000e+00 : f32
    %118 = vector.broadcast %cst_31 : f32 to vector<32x128xf32>
    %119 = arith.maximumf %117, %118 : vector<32x128xf32>
    %c0_32 = arith.constant 0 : index
    %c0_33 = arith.constant 0 : index
    %120 = vector.load %arg5[%c0_32, %c0_33] : memref<32x128xf32, #tpu.memory_space<vmem>>, vector<32x128xf32>
    tpu.vector_store %arg5[%c0_32, %c0_33], %119 {strides = array<i32>} : memref<32x128xf32, #tpu.memory_space<vmem>>, vector<32x128xf32>,
    return
  }
}

</mosaic_0001>

<llo_original>
// kernel: residual_forward.1
$region0: #{residual_forward.1}
  #allocation0 [shape = 'u32[]', space=smem, size = 0x4, offset = 0x4, fixed_abs, tag = 'smem constant byte address 0x4 - core index']
  #allocation1 [shape = 'u32[144,128]{1,0:T(1,128)}', space=vmem, size = 0x12000, scoped, tag = 'internal scratch']
  %s0 = inlined_call_operand.vmem [shape: f32[32,128], index: 0, kind: input, shape index: {}]
  %s1 = inlined_call_operand.hbm [shape: f32[384,256], index: 1, kind: input, shape index: {}]
  %s2 = inlined_call_operand.vmem [shape: f32[384,128], index: 2, kind: input, shape index: {}]
  %s3 = inlined_call_operand.vmem [shape: f32[128,128], index: 3, kind: input, shape index: {}]
  %s4 = inlined_call_operand.vmem [shape: f32[8,128], index: 4, kind: input, shape index: {}]
  %s5 = inlined_call_operand.vmem [shape: f32[32,128], index: 5, kind: output, shape index: {}]
  %s6 = sld [smem:[#allocation0]]
  $region34: #{residual_forward.1} parent=0
    _
  %s8 = ssub.s32 1, %s6
  %s9 = scalar_select 0, %s8, %s6
  $region1: #{residual_forward.1} parent=0
    #allocation2 [shape = 'u8[393216]{0}', space=vmem, size = 0x60000, scoped, tag = 'input window, operand 1, single buffered']
    #allocation3 [shape = 's32[1]{0}', space=sflag, size = 0x4, scoped, tag = 'scoped memory for residual_forward.1']
    %10 = vsyncpa [#allocation3], 0
    // Predicated region
    $region2: #{residual_forward.1} parent=1 // pred_check
      _
    $region3: #{residual_forward.1} parent=1 // pred_check_branch
      %12 = sbr.rel (0) target = $region5
    $region4: #{residual_forward.1} parent=1 // pred_region
      _
    $region5: #{residual_forward.1} parent=1 // pred_fallthru
      _
    // Predicated region
    $region6: #{residual_forward.1} parent=1 // pred_check
      _
    $region7: #{residual_forward.1} parent=1 // pred_check_branch
      %14 = sbr.rel (0) target = $region9
    $region8: #{residual_forward.1} parent=1 // pred_region
      %s16 = ssub.s32 12288, 12288
      %17 = vsyncadd [#allocation3], %s16
      %s18 = sshll.u32 [#allocation2], 4
      %s19 = int_to_ptr.vmem [resolvable:$true] %s18
      %24 = dma.hbm_to_vmem [thread:$0]  %s1, 12288, %s19, [#allocation3], 256, 256, 16
    $region9: #{residual_forward.1} parent=1 // pred_fallthru
      _
    // Predicated region
    $region10: #{residual_forward.1} parent=1 // pred_check
      _
    $region11: #{residual_forward.1} parent=1 // pred_check_branch
      %26 = sbr.rel (0) target = $region13
    $region12: #{residual_forward.1} parent=1 // pred_region
      _
    $region13: #{residual_forward.1} parent=1 // pred_fallthru
      _
    // Predicated region
    $region14: #{residual_forward.1} parent=1 // pred_check
      _
    $region15: #{residual_forward.1} parent=1 // pred_check_branch
      %28 = sbr.rel (0) target = $region17
    $region16: #{residual_forward.1} parent=1 // pred_region
      _
    $region17: #{residual_forward.1} parent=1 // pred_fallthru
      _
    // Predicated region
    $region18: #{residual_forward.1} parent=1 // pred_check
      _
    $region19: #{residual_forward.1} parent=1 // pred_check_branch
      %30 = sbr.rel (0) target = $region21
    $region20: #{residual_forward.1} parent=1 // pred_region
      _
    $region21: #{residual_forward.1} parent=1 // pred_fallthru
      _
    // Predicated region
    $region22: #{residual_forward.1} parent=1 // pred_check
      _
    $region23: #{residual_forward.1} parent=1 // pred_check_branch
      %32 = sbr.rel (0) target = $region25
    $region24: #{residual_forward.1} parent=1 // pred_region
      %33 = dma.done [#allocation3], 12288
    $region25: #{residual_forward.1} parent=1 // pred_fallthru
      _
    %v34 = vld [vmem:[%s0] sm:$0xff]
    %v35 = vld [vmem:[%s0 + $0x8] sm:$0xff]
    %v36 = vld [vmem:[%s0 + $0x10] sm:$0xff]
    %v37 = vld [vmem:[%s0 + $0x18] sm:$0xff]
    %v38 = vld [vmem:[%s3] sm:$0xff]
    %v39 = vld [vmem:[%s3 + $0x8] sm:$0xff]
    %v40 = vld [vmem:[%s3 + $0x10] sm:$0xff]
    %v41 = vld [vmem:[%s3 + $0x18] sm:$0xff]
    %v42 = vld [vmem:[%s3 + $0x20] sm:$0xff]
    %v43 = vld [vmem:[%s3 + $0x28] sm:$0xff]
    %v44 = vld [vmem:[%s3 + $0x30] sm:$0xff]
    %v45 = vld [vmem:[%s3 + $0x38] sm:$0xff]
    %v46 = vld [vmem:[%s3 + $0x40] sm:$0xff]
    %v47 = vld [vmem:[%s3 + $0x48] sm:$0xff]
    %v48 = vld [vmem:[%s3 + $0x50] sm:$0xff]
    %v49 = vld [vmem:[%s3 + $0x58] sm:$0xff]
    %v50 = vld [vmem:[%s3 + $0x60] sm:$0xff]
    %v51 = vld [vmem:[%s3 + $0x68] sm:$0xff]
    %v52 = vld [vmem:[%s3 + $0x70] sm:$0xff]
    %v53 = vld [vmem:[%s3 + $0x78] sm:$0xff]
    %v54 = vld [vmem:[%s4] sm:$0xff]
    %v55 = vlaneseq
    %v56 = vshrl.u32 %v55, 7
    %v57 = vadd.s32 %v56, 8
    %v58 = vadd.s32 %v56, 16
    %v59 = vadd.s32 %v56, 24
    %vm60 = vcmp.lt.s32.totalorder %v56, 0
    %v61 = vsub.s32 0, %v56
    %v62 = vsel %vm60, %v61, %v56
    %v63 = vshrl.u32 %v62, 4
    %v64 = vand.u32 %v62, 15
    %v65 = vsub.s32 0, %v64
    %v66 = vsel %vm60, %v65, %v64
    %vm67 = vcmp.lt.s32.totalorder %v57, 0
    %v68 = vsub.s32 0, %v57
    %v69 = vsel %vm67, %v68, %v57
    %v70 = vshrl.u32 %v69, 4
    %v71 = vand.u32 %v69, 15
    %v72 = vsub.s32 0, %v71
    %v73 = vsel %vm67, %v72, %v71
    %vm74 = vcmp.lt.s32.totalorder %v58, 0
    %v75 = vsub.s32 0, %v58
    %v76 = vsel %vm74, %v75, %v58
    %v77 = vshrl.u32 %v76, 4
    %v78 = vand.u32 %v76, 15
    %v79 = vsub.s32 0, %v78
    %v80 = vsel %vm74, %v79, %v78
    %vm81 = vcmp.lt.s32.totalorder %v59, 0
    %v82 = vsub.s32 0, %v59
    %v83 = vsel %vm81, %v82, %v59
    %v84 = vshrl.u32 %v83, 4
    %v85 = vand.u32 %v83, 15
    %v86 = vsub.s32 0, %v85
    %v87 = vsel %vm81, %v86, %v85
    %vm88 = vcmp.ne.s32.totalorder %v66, 0
    %vm89 = vcmp.ne.s32.totalorder %v73, 0
    %vm90 = vcmp.ne.s32.totalorder %v80, 0
    %vm91 = vcmp.ne.s32.totalorder %v87, 0
    %vm92 = vcmp.lt.s32.totalorder %v66, 0
    %vm93 = vcmp.lt.s32.totalorder %v73, 0
    %vm94 = vcmp.lt.s32.totalorder %v80, 0
    %vm95 = vcmp.lt.s32.totalorder %v87, 0
    %vm96 = vmand %vm92, %vm88
    %vm97 = vmand %vm93, %vm89
    %vm98 = vmand %vm94, %vm90
    %vm99 = vmand %vm95, %vm91
    %v100 = vadd.s32 %v66, 16
    %v101 = vadd.s32 %v73, 16
    %v102 = vadd.s32 %v80, 16
    %v103 = vadd.s32 %v87, 16
    %v104 = vsel %vm96, %v100, %v66
    %v105 = vsel %vm97, %v101, %v73
    %v106 = vsel %vm98, %v102, %v80
    %v107 = vsel %vm99, %v103, %v87
    %vm108 = vcmp.ne.s32.totalorder %v104, 0
    %vm109 = vcmp.ne.s32.totalorder %v105, 0
    %vm110 = vcmp.ne.s32.totalorder %v106, 0
    %vm111 = vcmp.ne.s32.totalorder %v107, 0
    %v112 = vsel %vm108, 1.0, 0.0
    %v113 = vsel %vm109, 1.0, 0.0
    %v114 = vsel %vm110, 1.0, 0.0
    %v115 = vsel %vm111, 1.0, 0.0
    %vm116 = vcmp.ne.s32.totalorder %v104, 15
    %vm117 = vcmp.ne.s32.totalorder %v105, 15
    %vm118 = vcmp.ne.s32.totalorder %v106, 15
    %vm119 = vcmp.ne.s32.totalorder %v107, 15
    %v120 = vsel %vm116, 1.0, 0.0
    %v121 = vsel %vm117, 1.0, 0.0
    %v122 = vsel %vm118, 1.0, 0.0
    %v123 = vsel %vm119, 1.0, 0.0
    %vm128 = vcmask 1040384
    %v129 = vrot.slane %v34, 7
    %v130 = vrot.slane %v35, 7
    %v131 = vsel %vm128, %v129, %v130
    %v132 = vrot.slane %v36, 7
    %v133 = vsel %vm128, %v130, %v132
    %v134 = vrot.slane %v37, 7
    %v135 = vsel %vm128, %v132, %v134
    %v140 = vsel %vm128, 0.0, %v129
    %v141 = vmul.f32 %v140, %v112
    %v142 = vmul.f32 %v131, %v113
    %v143 = vmul.f32 %v133, %v114
    %v144 = vmul.f32 %v135, %v115
    %vm145 = vcmask 1046528
    %v146 = vrot.slane %v34, 1
    %v147 = vrot.slane %v35, 1
    %v148 = vsel %vm145, %v146, %v147
    %v149 = vrot.slane %v36, 1
    %v150 = vsel %vm145, %v147, %v149
    %v151 = vrot.slane %v37, 1
    %v152 = vsel %vm145, %v149, %v151
    %v157 = vsel %vm145, %v151, 0.0
    %v158 = vmul.f32 %v148, %v120
    %v159 = vmul.f32 %v150, %v121
    %v160 = vmul.f32 %v152, %v122
    %v161 = vmul.f32 %v157, %v123
    %v162 = vld [vmem:[#allocation2] sm:$0xff]
    %v163 = vld [vmem:[#allocation2 + $0x8] sm:$0xff]
    %v164 = vld [vmem:[#allocation2 + $0x10] sm:$0xff]
    %v165 = vld [vmem:[#allocation2 + $0x18] sm:$0xff]
    %v166 = vld [vmem:[#allocation2 + $0x20] sm:$0xff]
    %v167 = vld [vmem:[#allocation2 + $0x28] sm:$0xff]
    %v168 = vld [vmem:[#allocation2 + $0x30] sm:$0xff]
    %v169 = vld [vmem:[#allocation2 + $0x38] sm:$0xff]
    %v170 = vld [vmem:[#allocation2 + $0x40] sm:$0xff]
    %v171 = vld [vmem:[#allocation2 + $0x48] sm:$0xff]
    %v172 = vld [vmem:[#allocation2 + $0x50] sm:$0xff]
    %v173 = vld [vmem:[#allocation2 + $0x58] sm:$0xff]
    %v174 = vld [vmem:[#allocation2 + $0x60] sm:$0xff]
    %v175 = vld [vmem:[#allocation2 + $0x68] sm:$0xff]
    %v176 = vld [vmem:[#allocation2 + $0x70] sm:$0xff]
    %v177 = vld [vmem:[#allocation2 + $0x78] sm:$0xff]
    %v178 = vld [vmem:[#allocation2 + $0x80] sm:$0xff]
    %v179 = vld [vmem:[#allocation2 + $0x88] sm:$0xff]
    %v180 = vld [vmem:[#allocation2 + $0x90] sm:$0xff]
    %v181 = vld [vmem:[#allocation2 + $0x98] sm:$0xff]
    %v182 = vld [vmem:[#allocation2 + $0xa0] sm:$0xff]
    %v183 = vld [vmem:[#allocation2 + $0xa8] sm:$0xff]
    %v184 = vld [vmem:[#allocation2 + $0xb0] sm:$0xff]
    %v185 = vld [vmem:[#allocation2 + $0xb8] sm:$0xff]
    %v186 = vld [vmem:[#allocation2 + $0xc0] sm:$0xff]
    %v187 = vld [vmem:[#allocation2 + $0xc8] sm:$0xff]
    %v188 = vld [vmem:[#allocation2 + $0xd0] sm:$0xff]
    %v189 = vld [vmem:[#allocation2 + $0xd8] sm:$0xff]
    %v190 = vld [vmem:[#allocation2 + $0xe0] sm:$0xff]
    %v191 = vld [vmem:[#allocation2 + $0xe8] sm:$0xff]
    %v192 = vld [vmem:[#allocation2 + $0xf0] sm:$0xff]
    %v193 = vld [vmem:[#allocation2 + $0xf8] sm:$0xff]
    %v194 = vld [vmem:[#allocation2 + $0x100] sm:$0xff]
    %v195 = vld [vmem:[#allocation2 + $0x108] sm:$0xff]
    %v196 = vld [vmem:[#allocation2 + $0x110] sm:$0xff]
    %v197 = vld [vmem:[#allocation2 + $0x118] sm:$0xff]
    %v198 = vld [vmem:[#allocation2 + $0x120] sm:$0xff]
    %v199 = vld [vmem:[#allocation2 + $0x128] sm:$0xff]
    %v200 = vld [vmem:[#allocation2 + $0x130] sm:$0xff]
    %v201 = vld [vmem:[#allocation2 + $0x138] sm:$0xff]
    %v202 = vld [vmem:[#allocation2 + $0x140] sm:$0xff]
    %v203 = vld [vmem:[#allocation2 + $0x148] sm:$0xff]
    %v204 = vld [vmem:[#allocation2 + $0x150] sm:$0xff]
    %v205 = vld [vmem:[#allocation2 + $0x158] sm:$0xff]
    %v206 = vld [vmem:[#allocation2 + $0x160] sm:$0xff]
    %v207 = vld [vmem:[#allocation2 + $0x168] sm:$0xff]
    %v208 = vld [vmem:[#allocation2 + $0x170] sm:$0xff]
    %v209 = vld [vmem:[#allocation2 + $0x178] sm:$0xff]
    %v210 = vld [vmem:[#allocation2 + $0x180] sm:$0xff]
    %v211 = vld [vmem:[#allocation2 + $0x188] sm:$0xff]
    %v212 = vld [vmem:[#allocation2 + $0x190] sm:$0xff]
    %v213 = vld [vmem:[#allocation2 + $0x198] sm:$0xff]
    %v214 = vld [vmem:[#allocation2 + $0x1a0] sm:$0xff]
    %v215 = vld [vmem:[#allocation2 + $0x1a8] sm:$0xff]
    %v216 = vld [vmem:[#allocation2 + $0x1b0] sm:$0xff]
    %v217 = vld [vmem:[#allocation2 + $0x1b8] sm:$0xff]
    %v218 = vld [vmem:[#allocation2 + $0x1c0] sm:$0xff]
    %v219 = vld [vmem:[#allocation2 + $0x1c8] sm:$0xff]
    %v220 = vld [vmem:[#allocation2 + $0x1d0] sm:$0xff]
    %v221 = vld [vmem:[#allocation2 + $0x1d8] sm:$0xff]
    %v222 = vld [vmem:[#allocation2 + $0x1e0] sm:$0xff]
    %v223 = vld [vmem:[#allocation2 + $0x1e8] sm:$0xff]
    %v224 = vld [vmem:[#allocation2 + $0x1f0] sm:$0xff]
    %v225 = vld [vmem:[#allocation2 + $0x1f8] sm:$0xff]
    %v226 = vld [vmem:[#allocation2 + $0x200] sm:$0xff]
    %v227 = vld [vmem:[#allocation2 + $0x208] sm:$0xff]
    %v228 = vld [vmem:[#allocation2 + $0x210] sm:$0xff]
    %v229 = vld [vmem:[#allocation2 + $0x218] sm:$0xff]
    %v230 = vld [vmem:[#allocation2 + $0x220] sm:$0xff]
    %v231 = vld [vmem:[#allocation2 + $0x228] sm:$0xff]
    %v232 = vld [vmem:[#allocation2 + $0x230] sm:$0xff]
    %v233 = vld [vmem:[#allocation2 + $0x238] sm:$0xff]
    %v234 = vld [vmem:[#allocation2 + $0x240] sm:$0xff]
    %v235 = vld [vmem:[#allocation2 + $0x248] sm:$0xff]
    %v236 = vld [vmem:[#allocation2 + $0x250] sm:$0xff]
    %v237 = vld [vmem:[#allocation2 + $0x258] sm:$0xff]
    %v238 = vld [vmem:[#allocation2 + $0x260] sm:$0xff]
    %v239 = vld [vmem:[#allocation2 + $0x268] sm:$0xff]
    %v240 = vld [vmem:[#allocation2 + $0x270] sm:$0xff]
    %v241 = vld [vmem:[#allocation2 + $0x278] sm:$0xff]
    %v242 = vld [vmem:[#allocation2 + $0x280] sm:$0xff]
    %v243 = vld [vmem:[#allocation2 + $0x288] sm:$0xff]
    %v244 = vld [vmem:[#allocation2 + $0x290] sm:$0xff]
    %v245 = vld [vmem:[#allocation2 + $0x298] sm:$0xff]
    %v246 = vld [vmem:[#allocation2 + $0x2a0] sm:$0xff]
    %v247 = vld [vmem:[#allocation2 + $0x2a8] sm:$0xff]
    %v248 = vld [vmem:[#allocation2 + $0x2b0] sm:$0xff]
    %v249 = vld [vmem:[#allocation2 + $0x2b8] sm:$0xff]
    %v250 = vld [vmem:[#allocation2 + $0x2c0] sm:$0xff]
    %v251 = vld [vmem:[#allocation2 + $0x2c8] sm:$0xff]
    %v252 = vld [vmem:[#allocation2 + $0x2d0] sm:$0xff]
    %v253 = vld [vmem:[#allocation2 + $0x2d8] sm:$0xff]
    %v254 = vld [vmem:[#allocation2 + $0x2e0] sm:$0xff]
    %v255 = vld [vmem:[#allocation2 + $0x2e8] sm:$0xff]
    %v256 = vld [vmem:[#allocation2 + $0x2f0] sm:$0xff]
    %v257 = vld [vmem:[#allocation2 + $0x2f8] sm:$0xff]
    %v258 = vand.u32 %v193, 4294901760
    %259 = vmatprep.subr.mxu0 %v258
    %v260 = vand.u32 %v192, 4294901760
    %261 = vmatpush1.msra.mxu0 %v260
    %v262 = vand.u32 %v191, 4294901760
    %263 = vmatprep.subr.mxu0 %v262
    %v264 = vand.u32 %v190, 4294901760
    %265 = vmatpush1.msra.mxu0 %v264
    %v266 = vand.u32 %v189, 4294901760
    %267 = vmatprep.subr.mxu0 %v266
    %v268 = vand.u32 %v188, 4294901760
    %269 = vmatpush1.msra.mxu0 %v268
    %v270 = vand.u32 %v187, 4294901760
    %271 = vmatprep.subr.mxu0 %v270
    %v272 = vand.u32 %v186, 4294901760
    %273 = vmatpush1.msra.mxu0 %v272
    %v274 = vand.u32 %v185, 4294901760
    %275 = vmatprep.subr.mxu0 %v274
    %v276 = vand.u32 %v184, 4294901760
    %277 = vmatpush1.msra.mxu0 %v276
    %v278 = vand.u32 %v183, 4294901760
    %279 = vmatprep.subr.mxu0 %v278
    %v280 = vand.u32 %v182, 4294901760
    %281 = vmatpush1.msra.mxu0 %v280
    %v282 = vand.u32 %v181, 4294901760
    %283 = vmatprep.subr.mxu0 %v282
    %v284 = vand.u32 %v180, 4294901760
    %285 = vmatpush1.msra.mxu0 %v284
    %v286 = vand.u32 %v179, 4294901760
    %287 = vmatprep.subr.mxu0 %v286
    %v288 = vand.u32 %v178, 4294901760
    %289 = vmatpush1.msra.mxu0 %v288
    %v290 = vand.u32 %v177, 4294901760
    %291 = vmatprep.subr.mxu0 %v290
    %v292 = vand.u32 %v176, 4294901760
    %293 = vmatpush1.msra.mxu0 %v292
    %v294 = vand.u32 %v175, 4294901760
    %295 = vmatprep.subr.mxu0 %v294
    %v296 = vand.u32 %v174, 4294901760
    %297 = vmatpush1.msra.mxu0 %v296
    %v298 = vand.u32 %v173, 4294901760
    %299 = vmatprep.subr.mxu0 %v298
    %v300 = vand.u32 %v172, 4294901760
    %301 = vmatpush1.msra.mxu0 %v300
    %v302 = vand.u32 %v171, 4294901760
    %303 = vmatprep.subr.mxu0 %v302
    %v304 = vand.u32 %v170, 4294901760
    %305 = vmatpush1.msra.mxu0 %v304
    %v306 = vand.u32 %v169, 4294901760
    %307 = vmatprep.subr.mxu0 %v306
    %v308 = vand.u32 %v168, 4294901760
    %309 = vmatpush1.msra.mxu0 %v308
    %v310 = vand.u32 %v167, 4294901760
    %311 = vmatprep.subr.mxu0 %v310
    %v312 = vand.u32 %v166, 4294901760
    %313 = vmatpush1.msra.mxu0 %v312
    %v314 = vand.u32 %v165, 4294901760
    %315 = vmatprep.subr.mxu0 %v314
    %v316 = vand.u32 %v164, 4294901760
    %317 = vmatpush1.msra.mxu0 %v316
    %v318 = vand.u32 %v163, 4294901760
    %319 = vmatprep.subr.mxu0 %v318
    %v320 = vand.u32 %v162, 4294901760
    %321 = vmatpush1.msra.mxu0 %v320
    %v322 = vand.u32 %v225, 4294901760
    %323 = vmatprep.subr.mxu0 %v322
    %v324 = vand.u32 %v224, 4294901760
    %325 = vmatpush2.msra.mxu0 %v324
    %v326 = vand.u32 %v223, 4294901760
    %327 = vmatprep.subr.mxu0 %v326
    %v328 = vand.u32 %v222, 4294901760
    %329 = vmatpush2.msra.mxu0 %v328
    %v330 = vand.u32 %v221, 4294901760
    %331 = vmatprep.subr.mxu0 %v330
    %v332 = vand.u32 %v220, 4294901760
    %333 = vmatpush2.msra.mxu0 %v332
    %v334 = vand.u32 %v219, 4294901760
    %335 = vmatprep.subr.mxu0 %v334
    %v336 = vand.u32 %v218, 4294901760
    %337 = vmatpush2.msra.mxu0 %v336
    %v338 = vand.u32 %v217, 4294901760
    %339 = vmatprep.subr.mxu0 %v338
    %v340 = vand.u32 %v216, 4294901760
    %341 = vmatpush2.msra.mxu0 %v340
    %v342 = vand.u32 %v215, 4294901760
    %343 = vmatprep.subr.mxu0 %v342
    %v344 = vand.u32 %v214, 4294901760
    %345 = vmatpush2.msra.mxu0 %v344
    %v346 = vand.u32 %v213, 4294901760
    %347 = vmatprep.subr.mxu0 %v346
    %v348 = vand.u32 %v212, 4294901760
    %349 = vmatpush2.msra.mxu0 %v348
    %v350 = vand.u32 %v211, 4294901760
    %351 = vmatprep.subr.mxu0 %v350
    %v352 = vand.u32 %v210, 4294901760
    %353 = vmatpush2.msra.mxu0 %v352
    %v354 = vand.u32 %v209, 4294901760
    %355 = vmatprep.subr.mxu0 %v354
    %v356 = vand.u32 %v208, 4294901760
    %357 = vmatpush2.msra.mxu0 %v356
    %v358 = vand.u32 %v207, 4294901760
    %359 = vmatprep.subr.mxu0 %v358
    %v360 = vand.u32 %v206, 4294901760
    %361 = vmatpush2.msra.mxu0 %v360
    %v362 = vand.u32 %v205, 4294901760
    %363 = vmatprep.subr.mxu0 %v362
    %v364 = vand.u32 %v204, 4294901760
    %365 = vmatpush2.msra.mxu0 %v364
    %v366 = vand.u32 %v203, 4294901760
    %367 = vmatprep.subr.mxu0 %v366
    %v368 = vand.u32 %v202, 4294901760
    %369 = vmatpush2.msra.mxu0 %v368
    %v370 = vand.u32 %v201, 4294901760
    %371 = vmatprep.subr.mxu0 %v370
    %v372 = vand.u32 %v200, 4294901760
    %373 = vmatpush2.msra.mxu0 %v372
    %v374 = vand.u32 %v199, 4294901760
    %375 = vmatprep.subr.mxu0 %v374
    %v376 = vand.u32 %v198, 4294901760
    %377 = vmatpush2.msra.mxu0 %v376
    %v378 = vand.u32 %v197, 4294901760
    %379 = vmatprep.subr.mxu0 %v378
    %v380 = vand.u32 %v196, 4294901760
    %381 = vmatpush2.msra.mxu0 %v380
    %v382 = vand.u32 %v195, 4294901760
    %383 = vmatprep.subr.mxu0 %v382
    %v384 = vand.u32 %v194, 4294901760
    %385 = vmatpush2.msra.mxu0 %v384
    %v386 = vand.u32 %v34, 4294901760
    %v387 = vsub.f32 %v34, %v386
    %v388 = vand.u32 %v387, 4294901760
    %v389 = vsub.f32 %v387, %v388
    %v390 = vand.u32 %v389, 4294901760
    %391 = vmatprep.mubr.f32.mxu0 %v390
    %v392 = vand.u32 %v141, 4294901760
    %v393 = vsub.f32 %v141, %v392
    %v394 = vand.u32 %v393, 4294901760
    %v395 = vsub.f32 %v393, %v394
    %v396 = vand.u32 %v395, 4294901760
    %397 = vmatmul.mubr.f32.gmra.mxu0 %v396
    %v398 = vpop.f32.mrf.mxu0
    %v399 = vadd.f32 0.0, %v398
    %v400 = vpop.f32.mrf.mxu0
    %v401 = vadd.f32 0.0, %v400
    %v402 = vand.u32 %v35, 4294901760
    %v403 = vsub.f32 %v35, %v402
    %v404 = vand.u32 %v403, 4294901760
    %v405 = vsub.f32 %v403, %v404
    %v406 = vand.u32 %v405, 4294901760
    %407 = vmatprep.mubr.f32.mxu0 %v406
    %v408 = vand.u32 %v142, 4294901760
    %v409 = vsub.f32 %v142, %v408
    %v410 = vand.u32 %v409, 4294901760
    %v411 = vsub.f32 %v409, %v410
    %v412 = vand.u32 %v411, 4294901760
    %413 = vmatmul.mubr.f32.gmra.mxu0 %v412
    %v414 = vpop.f32.mrf.mxu0
    %v415 = vadd.f32 0.0, %v414
    %v416 = vpop.f32.mrf.mxu0
    %v417 = vadd.f32 0.0, %v416
    %v418 = vand.u32 %v36, 4294901760
    %v419 = vsub.f32 %v36, %v418
    %v420 = vand.u32 %v419, 4294901760
    %v421 = vsub.f32 %v419, %v420
    %v422 = vand.u32 %v421, 4294901760
    %423 = vmatprep.mubr.f32.mxu0 %v422
    %v424 = vand.u32 %v143, 4294901760
    %v425 = vsub.f32 %v143, %v424
    %v426 = vand.u32 %v425, 4294901760
    %v427 = vsub.f32 %v425, %v426
    %v428 = vand.u32 %v427, 4294901760
    %429 = vmatmul.mubr.f32.gmra.mxu0 %v428
    %v430 = vpop.f32.mrf.mxu0
    %v431 = vadd.f32 0.0, %v430
    %v432 = vpop.f32.mrf.mxu0
    %v433 = vadd.f32 0.0, %v432
    %v434 = vand.u32 %v37, 4294901760
    %v435 = vsub.f32 %v37, %v434
    %v436 = vand.u32 %v435, 4294901760
    %v437 = vsub.f32 %v435, %v436
    %v438 = vand.u32 %v437, 4294901760
    %439 = vmatprep.mubr.f32.mxu0 %v438
    %v440 = vand.u32 %v144, 4294901760
    %v441 = vsub.f32 %v144, %v440
    %v442 = vand.u32 %v441, 4294901760
    %v443 = vsub.f32 %v441, %v442
    %v444 = vand.u32 %v443, 4294901760
    %445 = vmatmul.mubr.f32.gmra.mxu0 %v444
    %v446 = vpop.f32.mrf.mxu0
    %v447 = vadd.f32 0.0, %v446
    %v448 = vpop.f32.mrf.mxu0
    %v449 = vadd.f32 0.0, %v448
    %450 = vdwg.mxu0
    %v451 = vand.u32 %v193, 4294901760
    %v452 = vsub.f32 %v193, %v451
    %v453 = vand.u32 %v452, 4294901760
    %v454 = vsub.f32 %v452, %v453
    %v455 = vand.u32 %v454, 4294901760
    %456 = vmatprep.subr.mxu0 %v455
    %v457 = vand.u32 %v192, 4294901760
    %v458 = vsub.f32 %v192, %v457
    %v459 = vand.u32 %v458, 4294901760
    %v460 = vsub.f32 %v458, %v459
    %v461 = vand.u32 %v460, 4294901760
    %462 = vmatpush1.msra.mxu0 %v461
    %v463 = vand.u32 %v191, 4294901760
    %v464 = vsub.f32 %v191, %v463
    %v465 = vand.u32 %v464, 4294901760
    %v466 = vsub.f32 %v464, %v465
    %v467 = vand.u32 %v466, 4294901760
    %468 = vmatprep.subr.mxu0 %v467
    %v469 = vand.u32 %v190, 4294901760
    %v470 = vsub.f32 %v190, %v469
    %v471 = vand.u32 %v470, 4294901760
    %v472 = vsub.f32 %v470, %v471
    %v473 = vand.u32 %v472, 4294901760
    %474 = vmatpush1.msra.mxu0 %v473
    %v475 = vand.u32 %v189, 4294901760
    %v476 = vsub.f32 %v189, %v475
    %v477 = vand.u32 %v476, 4294901760
    %v478 = vsub.f32 %v476, %v477
    %v479 = vand.u32 %v478, 4294901760
    %480 = vmatprep.subr.mxu0 %v479
    %v481 = vand.u32 %v188, 4294901760
    %v482 = vsub.f32 %v188, %v481
    %v483 = vand.u32 %v482, 4294901760
    %v484 = vsub.f32 %v482, %v483
    %v485 = vand.u32 %v484, 4294901760
    %486 = vmatpush1.msra.mxu0 %v485
    %v487 = vand.u32 %v187, 4294901760
    %v488 = vsub.f32 %v187, %v487
    %v489 = vand.u32 %v488, 4294901760
    %v490 = vsub.f32 %v488, %v489
    %v491 = vand.u32 %v490, 4294901760
    %492 = vmatprep.subr.mxu0 %v491
    %v493 = vand.u32 %v186, 4294901760
    %v494 = vsub.f32 %v186, %v493
    %v495 = vand.u32 %v494, 4294901760
    %v496 = vsub.f32 %v494, %v495
    %v497 = vand.u32 %v496, 4294901760
    %498 = vmatpush1.msra.mxu0 %v497
    %v499 = vand.u32 %v185, 4294901760
    %v500 = vsub.f32 %v185, %v499
    %v501 = vand.u32 %v500, 4294901760
    %v502 = vsub.f32 %v500, %v501
    %v503 = vand.u32 %v502, 4294901760
    %504 = vmatprep.subr.mxu0 %v503
    %v505 = vand.u32 %v184, 4294901760
    %v506 = vsub.f32 %v184, %v505
    %v507 = vand.u32 %v506, 4294901760
    %v508 = vsub.f32 %v506, %v507
    %v509 = vand.u32 %v508, 4294901760
    %510 = vmatpush1.msra.mxu0 %v509
    %v511 = vand.u32 %v183, 4294901760
    %v512 = vsub.f32 %v183, %v511
    %v513 = vand.u32 %v512, 4294901760
    %v514 = vsub.f32 %v512, %v513
    %v515 = vand.u32 %v514, 4294901760
    %516 = vmatprep.subr.mxu0 %v515
    %v517 = vand.u32 %v182, 4294901760
    %v518 = vsub.f32 %v182, %v517
    %v519 = vand.u32 %v518, 4294901760
    %v520 = vsub.f32 %v518, %v519
    %v521 = vand.u32 %v520, 4294901760
    %522 = vmatpush1.msra.mxu0 %v521
    %v523 = vand.u32 %v181, 4294901760
    %v524 = vsub.f32 %v181, %v523
    %v525 = vand.u32 %v524, 4294901760
    %v526 = vsub.f32 %v524, %v525
    %v527 = vand.u32 %v526, 4294901760
    %528 = vmatprep.subr.mxu0 %v527
    %v529 = vand.u32 %v180, 4294901760
    %v530 = vsub.f32 %v180, %v529
    %v531 = vand.u32 %v530, 4294901760
    %v532 = vsub.f32 %v530, %v531
    %v533 = vand.u32 %v532, 4294901760
    %534 = vmatpush1.msra.mxu0 %v533
    %v535 = vand.u32 %v179, 4294901760
    %v536 = vsub.f32 %v179, %v535
    %v537 = vand.u32 %v536, 4294901760
    %v538 = vsub.f32 %v536, %v537
    %v539 = vand.u32 %v538, 4294901760
    %540 = vmatprep.subr.mxu0 %v539
    %v541 = vand.u32 %v178, 4294901760
    %v542 = vsub.f32 %v178, %v541
    %v543 = vand.u32 %v542, 4294901760
    %v544 = vsub.f32 %v542, %v543
    %v545 = vand.u32 %v544, 4294901760
    %546 = vmatpush1.msra.mxu0 %v545
    %v547 = vand.u32 %v177, 4294901760
    %v548 = vsub.f32 %v177, %v547
    %v549 = vand.u32 %v548, 4294901760
    %v550 = vsub.f32 %v548, %v549
    %v551 = vand.u32 %v550, 4294901760
    %552 = vmatprep.subr.mxu0 %v551
    %v553 = vand.u32 %v176, 4294901760
    %v554 = vsub.f32 %v176, %v553
    %v555 = vand.u32 %v554, 4294901760
    %v556 = vsub.f32 %v554, %v555
    %v557 = vand.u32 %v556, 4294901760
    %558 = vmatpush1.msra.mxu0 %v557
    %v559 = vand.u32 %v175, 4294901760
    %v560 = vsub.f32 %v175, %v559
    %v561 = vand.u32 %v560, 4294901760
    %v562 = vsub.f32 %v560, %v561
    %v563 = vand.u32 %v562, 4294901760
    %564 = vmatprep.subr.mxu0 %v563
    %v565 = vand.u32 %v174, 4294901760
    %v566 = vsub.f32 %v174, %v565
    %v567 = vand.u32 %v566, 4294901760
    %v568 = vsub.f32 %v566, %v567
    %v569 = vand.u32 %v568, 4294901760
    %570 = vmatpush1.msra.mxu0 %v569
    %v571 = vand.u32 %v173, 4294901760
    %v572 = vsub.f32 %v173, %v571
    %v573 = vand.u32 %v572, 4294901760
    %v574 = vsub.f32 %v572, %v573
    %v575 = vand.u32 %v574, 4294901760
    %576 = vmatprep.subr.mxu0 %v575
    %v577 = vand.u32 %v172, 4294901760
    %v578 = vsub.f32 %v172, %v577
    %v579 = vand.u32 %v578, 4294901760
    %v580 = vsub.f32 %v578, %v579
    %v581 = vand.u32 %v580, 4294901760
    %582 = vmatpush1.msra.mxu0 %v581
    %v583 = vand.u32 %v171, 4294901760
    %v584 = vsub.f32 %v171, %v583
    %v585 = vand.u32 %v584, 4294901760
    %v586 = vsub.f32 %v584, %v585
    %v587 = vand.u32 %v586, 4294901760
    %588 = vmatprep.subr.mxu0 %v587
    %v589 = vand.u32 %v170, 4294901760
    %v590 = vsub.f32 %v170, %v589
    %v591 = vand.u32 %v590, 4294901760
    %v592 = vsub.f32 %v590, %v591
    %v593 = vand.u32 %v592, 4294901760
    %594 = vmatpush1.msra.mxu0 %v593
    %v595 = vand.u32 %v169, 4294901760
    %v596 = vsub.f32 %v169, %v595
    %v597 = vand.u32 %v596, 4294901760
    %v598 = vsub.f32 %v596, %v597
    %v599 = vand.u32 %v598, 4294901760
    %600 = vmatprep.subr.mxu0 %v599
    %v601 = vand.u32 %v168, 4294901760
    %v602 = vsub.f32 %v168, %v601
    %v603 = vand.u32 %v602, 4294901760
    %v604 = vsub.f32 %v602, %v603
    %v605 = vand.u32 %v604, 4294901760
    %606 = vmatpush1.msra.mxu0 %v605
    %v607 = vand.u32 %v167, 4294901760
    %v608 = vsub.f32 %v167, %v607
    %v609 = vand.u32 %v608, 4294901760
    %v610 = vsub.f32 %v608, %v609
    %v611 = vand.u32 %v610, 4294901760
    %612 = vmatprep.subr.mxu0 %v611
    %v613 = vand.u32 %v166, 4294901760
    %v614 = vsub.f32 %v166, %v613
    %v615 = vand.u32 %v614, 4294901760
    %v616 = vsub.f32 %v614, %v615
    %v617 = vand.u32 %v616, 4294901760
    %618 = vmatpush1.msra.mxu0 %v617
    %v619 = vand.u32 %v165, 4294901760
    %v620 = vsub.f32 %v165, %v619
    %v621 = vand.u32 %v620, 4294901760
    %v622 = vsub.f32 %v620, %v621
    %v623 = vand.u32 %v622, 4294901760
    %624 = vmatprep.subr.mxu0 %v623
    %v625 = vand.u32 %v164, 4294901760
    %v626 = vsub.f32 %v164, %v625
    %v627 = vand.u32 %v626, 4294901760
    %v628 = vsub.f32 %v626, %v627
    %v629 = vand.u32 %v628, 4294901760
    %630 = vmatpush1.msra.mxu0 %v629
    %v631 = vand.u32 %v163, 4294901760
    %v632 = vsub.f32 %v163, %v631
    %v633 = vand.u32 %v632, 4294901760
    %v634 = vsub.f32 %v632, %v633
    %v635 = vand.u32 %v634, 4294901760
    %636 = vmatprep.subr.mxu0 %v635
    %v637 = vand.u32 %v162, 4294901760
    %v638 = vsub.f32 %v162, %v637
    %v639 = vand.u32 %v638, 4294901760
    %v640 = vsub.f32 %v638, %v639
    %v641 = vand.u32 %v640, 4294901760
    %642 = vmatpush1.msra.mxu0 %v641
    %v643 = vand.u32 %v225, 4294901760
    %v644 = vsub.f32 %v225, %v643
    %v645 = vand.u32 %v644, 4294901760
    %v646 = vsub.f32 %v644, %v645
    %v647 = vand.u32 %v646, 4294901760
    %648 = vmatprep.subr.mxu0 %v647
    %v649 = vand.u32 %v224, 4294901760
    %v650 = vsub.f32 %v224, %v649
    %v651 = vand.u32 %v650, 4294901760
    %v652 = vsub.f32 %v650, %v651
    %v653 = vand.u32 %v652, 4294901760
    %654 = vmatpush2.msra.mxu0 %v653
    %v655 = vand.u32 %v223, 4294901760
    %v656 = vsub.f32 %v223, %v655
    %v657 = vand.u32 %v656, 4294901760
    %v658 = vsub.f32 %v656, %v657
    %v659 = vand.u32 %v658, 4294901760
    %660 = vmatprep.subr.mxu0 %v659
    %v661 = vand.u32 %v222, 4294901760
    %v662 = vsub.f32 %v222, %v661
    %v663 = vand.u32 %v662, 4294901760
    %v664 = vsub.f32 %v662, %v663
    %v665 = vand.u32 %v664, 4294901760
    %666 = vmatpush2.msra.mxu0 %v665
    %v667 = vand.u32 %v221, 4294901760
    %v668 = vsub.f32 %v221, %v667
    %v669 = vand.u32 %v668, 4294901760
    %v670 = vsub.f32 %v668, %v669
    %v671 = vand.u32 %v670, 4294901760
    %672 = vmatprep.subr.mxu0 %v671
    %v673 = vand.u32 %v220, 4294901760
    %v674 = vsub.f32 %v220, %v673
    %v675 = vand.u32 %v674, 4294901760
    %v676 = vsub.f32 %v674, %v675
    %v677 = vand.u32 %v676, 4294901760
    %678 = vmatpush2.msra.mxu0 %v677
    %v679 = vand.u32 %v219, 4294901760
    %v680 = vsub.f32 %v219, %v679
    %v681 = vand.u32 %v680, 4294901760
    %v682 = vsub.f32 %v680, %v681
    %v683 = vand.u32 %v682, 4294901760
    %684 = vmatprep.subr.mxu0 %v683
    %v685 = vand.u32 %v218, 4294901760
    %v686 = vsub.f32 %v218, %v685
    %v687 = vand.u32 %v686, 4294901760
    %v688 = vsub.f32 %v686, %v687
    %v689 = vand.u32 %v688, 4294901760
    %690 = vmatpush2.msra.mxu0 %v689
    %v691 = vand.u32 %v217, 4294901760
    %v692 = vsub.f32 %v217, %v691
    %v693 = vand.u32 %v692, 4294901760
    %v694 = vsub.f32 %v692, %v693
    %v695 = vand.u32 %v694, 4294901760
    %696 = vmatprep.subr.mxu0 %v695
    %v697 = vand.u32 %v216, 4294901760
    %v698 = vsub.f32 %v216, %v697
    %v699 = vand.u32 %v698, 4294901760
    %v700 = vsub.f32 %v698, %v699
    %v701 = vand.u32 %v700, 4294901760
    %702 = vmatpush2.msra.mxu0 %v701
    %v703 = vand.u32 %v215, 4294901760
    %v704 = vsub.f32 %v215, %v703
    %v705 = vand.u32 %v704, 4294901760
    %v706 = vsub.f32 %v704, %v705
    %v707 = vand.u32 %v706, 4294901760
    %708 = vmatprep.subr.mxu0 %v707
    %v709 = vand.u32 %v214, 4294901760
    %v710 = vsub.f32 %v214, %v709
    %v711 = vand.u32 %v710, 4294901760
    %v712 = vsub.f32 %v710, %v711
    %v713 = vand.u32 %v712, 4294901760
    %714 = vmatpush2.msra.mxu0 %v713
    %v715 = vand.u32 %v213, 4294901760
    %v716 = vsub.f32 %v213, %v715
    %v717 = vand.u32 %v716, 4294901760
    %v718 = vsub.f32 %v716, %v717
    %v719 = vand.u32 %v718, 4294901760
    %720 = vmatprep.subr.mxu0 %v719
    %v721 = vand.u32 %v212, 4294901760
    %v722 = vsub.f32 %v212, %v721
    %v723 = vand.u32 %v722, 4294901760
    %v724 = vsub.f32 %v722, %v723
    %v725 = vand.u32 %v724, 4294901760
    %726 = vmatpush2.msra.mxu0 %v725
    %v727 = vand.u32 %v211, 4294901760
    %v728 = vsub.f32 %v211, %v727
    %v729 = vand.u32 %v728, 4294901760
    %v730 = vsub.f32 %v728, %v729
    %v731 = vand.u32 %v730, 4294901760
    %732 = vmatprep.subr.mxu0 %v731
    %v733 = vand.u32 %v210, 4294901760
    %v734 = vsub.f32 %v210, %v733
    %v735 = vand.u32 %v734, 4294901760
    %v736 = vsub.f32 %v734, %v735
    %v737 = vand.u32 %v736, 4294901760
    %738 = vmatpush2.msra.mxu0 %v737
    %v739 = vand.u32 %v209, 4294901760
    %v740 = vsub.f32 %v209, %v739
    %v741 = vand.u32 %v740, 4294901760
    %v742 = vsub.f32 %v740, %v741
    %v743 = vand.u32 %v742, 4294901760
    %744 = vmatprep.subr.mxu0 %v743
    %v745 = vand.u32 %v208, 4294901760
    %v746 = vsub.f32 %v208, %v745
    %v747 = vand.u32 %v746, 4294901760
    %v748 = vsub.f32 %v746, %v747
    %v749 = vand.u32 %v748, 4294901760
    %750 = vmatpush2.msra.mxu0 %v749
    %v751 = vand.u32 %v207, 4294901760
    %v752 = vsub.f32 %v207, %v751
    %v753 = vand.u32 %v752, 4294901760
    %v754 = vsub.f32 %v752, %v753
    %v755 = vand.u32 %v754, 4294901760
    %756 = vmatprep.subr.mxu0 %v755
    %v757 = vand.u32 %v206, 4294901760
    %v758 = vsub.f32 %v206, %v757
    %v759 = vand.u32 %v758, 4294901760
    %v760 = vsub.f32 %v758, %v759
    %v761 = vand.u32 %v760, 4294901760
    %762 = vmatpush2.msra.mxu0 %v761
    %v763 = vand.u32 %v205, 4294901760
    %v764 = vsub.f32 %v205, %v763
    %v765 = vand.u32 %v764, 4294901760
    %v766 = vsub.f32 %v764, %v765
    %v767 = vand.u32 %v766, 4294901760
    %768 = vmatprep.subr.mxu0 %v767
    %v769 = vand.u32 %v204, 4294901760
    %v770 = vsub.f32 %v204, %v769
    %v771 = vand.u32 %v770, 4294901760
    %v772 = vsub.f32 %v770, %v771
    %v773 = vand.u32 %v772, 4294901760
    %774 = vmatpush2.msra.mxu0 %v773
    %v775 = vand.u32 %v203, 4294901760
    %v776 = vsub.f32 %v203, %v775
    %v777 = vand.u32 %v776, 4294901760
    %v778 = vsub.f32 %v776, %v777
    %v779 = vand.u32 %v778, 4294901760
    %780 = vmatprep.subr.mxu0 %v779
    %v781 = vand.u32 %v202, 4294901760
    %v782 = vsub.f32 %v202, %v781
    %v783 = vand.u32 %v782, 4294901760
    %v784 = vsub.f32 %v782, %v783
    %v785 = vand.u32 %v784, 4294901760
    %786 = vmatpush2.msra.mxu0 %v785
    %v787 = vand.u32 %v201, 4294901760
    %v788 = vsub.f32 %v201, %v787
    %v789 = vand.u32 %v788, 4294901760
    %v790 = vsub.f32 %v788, %v789
    %v791 = vand.u32 %v790, 4294901760
    %792 = vmatprep.subr.mxu0 %v791
    %v793 = vand.u32 %v200, 4294901760
    %v794 = vsub.f32 %v200, %v793
    %v795 = vand.u32 %v794, 4294901760
    %v796 = vsub.f32 %v794, %v795
    %v797 = vand.u32 %v796, 4294901760
    %798 = vmatpush2.msra.mxu0 %v797
    %v799 = vand.u32 %v199, 4294901760
    %v800 = vsub.f32 %v199, %v799
    %v801 = vand.u32 %v800, 4294901760
    %v802 = vsub.f32 %v800, %v801
    %v803 = vand.u32 %v802, 4294901760
    %804 = vmatprep.subr.mxu0 %v803
    %v805 = vand.u32 %v198, 4294901760
    %v806 = vsub.f32 %v198, %v805
    %v807 = vand.u32 %v806, 4294901760
    %v808 = vsub.f32 %v806, %v807
    %v809 = vand.u32 %v808, 4294901760
    %810 = vmatpush2.msra.mxu0 %v809
    %v811 = vand.u32 %v197, 4294901760
    %v812 = vsub.f32 %v197, %v811
    %v813 = vand.u32 %v812, 4294901760
    %v814 = vsub.f32 %v812, %v813
    %v815 = vand.u32 %v814, 4294901760
    %816 = vmatprep.subr.mxu0 %v815
    %v817 = vand.u32 %v196, 4294901760
    %v818 = vsub.f32 %v196, %v817
    %v819 = vand.u32 %v818, 4294901760
    %v820 = vsub.f32 %v818, %v819
    %v821 = vand.u32 %v820, 4294901760
    %822 = vmatpush2.msra.mxu0 %v821
    %v823 = vand.u32 %v195, 4294901760
    %v824 = vsub.f32 %v195, %v823
    %v825 = vand.u32 %v824, 4294901760
    %v826 = vsub.f32 %v824, %v825
    %v827 = vand.u32 %v826, 4294901760
    %828 = vmatprep.subr.mxu0 %v827
    %v829 = vand.u32 %v194, 4294901760
    %v830 = vsub.f32 %v194, %v829
    %v831 = vand.u32 %v830, 4294901760
    %v832 = vsub.f32 %v830, %v831
    %v833 = vand.u32 %v832, 4294901760
    %834 = vmatpush2.msra.mxu0 %v833
    %v835 = vand.u32 %v34, 4294901760
    %836 = vmatprep.mubr.f32.mxu0 %v835
    %v837 = vand.u32 %v141, 4294901760
    %838 = vmatmul.mubr.f32.gmra.mxu0 %v837
    %v839 = vpop.f32.mrf.mxu0
    %v840 = vadd.f32 %v399, %v839
    %v841 = vpop.f32.mrf.mxu0
    %v842 = vadd.f32 %v401, %v841
    %v843 = vand.u32 %v35, 4294901760
    %844 = vmatprep.mubr.f32.mxu0 %v843
    %v845 = vand.u32 %v142, 4294901760
    %846 = vmatmul.mubr.f32.gmra.mxu0 %v845
    %v847 = vpop.f32.mrf.mxu0
    %v848 = vadd.f32 %v415, %v847
    %v849 = vpop.f32.mrf.mxu0
    %v850 = vadd.f32 %v417, %v849
    %v851 = vand.u32 %v36, 4294901760
    %852 = vmatprep.mubr.f32.mxu0 %v851
    %v853 = vand.u32 %v143, 4294901760
    %854 = vmatmul.mubr.f32.gmra.mxu0 %v853
    %v855 = vpop.f32.mrf.mxu0
    %v856 = vadd.f32 %v431, %v855
    %v857 = vpop.f32.mrf.mxu0
    %v858 = vadd.f32 %v433, %v857
    %v859 = vand.u32 %v37, 4294901760
    %860 = vmatprep.mubr.f32.mxu0 %v859
    %v861 = vand.u32 %v144, 4294901760
    %862 = vmatmul.mubr.f32.gmra.mxu0 %v861
    %v863 = vpop.f32.mrf.mxu0
    %v864 = vadd.f32 %v447, %v863
    %v865 = vpop.f32.mrf.mxu0
    %v866 = vadd.f32 %v449, %v865
    %867 = vdwg.mxu0
    %v868 = vand.u32 %v193, 4294901760
    %v869 = vsub.f32 %v193, %v868
    %870 = vmatprep.subr.mxu0 %v869
    %v871 = vand.u32 %v192, 4294901760
    %v872 = vsub.f32 %v192, %v871
    %873 = vmatpush1.msra.mxu0 %v872
    %v874 = vand.u32 %v191, 4294901760
    %v875 = vsub.f32 %v191, %v874
    %876 = vmatprep.subr.mxu0 %v875
    %v877 = vand.u32 %v190, 4294901760
    %v878 = vsub.f32 %v190, %v877
    %879 = vmatpush1.msra.mxu0 %v878
    %v880 = vand.u32 %v189, 4294901760
    %v881 = vsub.f32 %v189, %v880
    %882 = vmatprep.subr.mxu0 %v881
    %v883 = vand.u32 %v188, 4294901760
    %v884 = vsub.f32 %v188, %v883
    %885 = vmatpush1.msra.mxu0 %v884
    %v886 = vand.u32 %v187, 4294901760
    %v887 = vsub.f32 %v187, %v886
    %888 = vmatprep.subr.mxu0 %v887
    %v889 = vand.u32 %v186, 4294901760
    %v890 = vsub.f32 %v186, %v889
    %891 = vmatpush1.msra.mxu0 %v890
    %v892 = vand.u32 %v185, 4294901760
    %v893 = vsub.f32 %v185, %v892
    %894 = vmatprep.subr.mxu0 %v893
    %v895 = vand.u32 %v184, 4294901760
    %v896 = vsub.f32 %v184, %v895
    %897 = vmatpush1.msra.mxu0 %v896
    %v898 = vand.u32 %v183, 4294901760
    %v899 = vsub.f32 %v183, %v898
    %900 = vmatprep.subr.mxu0 %v899
    %v901 = vand.u32 %v182, 4294901760
    %v902 = vsub.f32 %v182, %v901
    %903 = vmatpush1.msra.mxu0 %v902
    %v904 = vand.u32 %v181, 4294901760
    %v905 = vsub.f32 %v181, %v904
    %906 = vmatprep.subr.mxu0 %v905
    %v907 = vand.u32 %v180, 4294901760
    %v908 = vsub.f32 %v180, %v907
    %909 = vmatpush1.msra.mxu0 %v908
    %v910 = vand.u32 %v179, 4294901760
    %v911 = vsub.f32 %v179, %v910
    %912 = vmatprep.subr.mxu0 %v911
    %v913 = vand.u32 %v178, 4294901760
    %v914 = vsub.f32 %v178, %v913
    %915 = vmatpush1.msra.mxu0 %v914
    %v916 = vand.u32 %v177, 4294901760
    %v917 = vsub.f32 %v177, %v916
    %918 = vmatprep.subr.mxu0 %v917
    %v919 = vand.u32 %v176, 4294901760
    %v920 = vsub.f32 %v176, %v919
    %921 = vmatpush1.msra.mxu0 %v920
    %v922 = vand.u32 %v175, 4294901760
    %v923 = vsub.f32 %v175, %v922
    %924 = vmatprep.subr.mxu0 %v923
    %v925 = vand.u32 %v174, 4294901760
    %v926 = vsub.f32 %v174, %v925
    %927 = vmatpush1.msra.mxu0 %v926
    %v928 = vand.u32 %v173, 4294901760
    %v929 = vsub.f32 %v173, %v928
    %930 = vmatprep.subr.mxu0 %v929
    %v931 = vand.u32 %v172, 4294901760
    %v932 = vsub.f32 %v172, %v931
    %933 = vmatpush1.msra.mxu0 %v932
    %v934 = vand.u32 %v171, 4294901760
    %v935 = vsub.f32 %v171, %v934
    %936 = vmatprep.subr.mxu0 %v935
    %v937 = vand.u32 %v170, 4294901760
    %v938 = vsub.f32 %v170, %v937
    %939 = vmatpush1.msra.mxu0 %v938
    %v940 = vand.u32 %v169, 4294901760
    %v941 = vsub.f32 %v169, %v940
    %942 = vmatprep.subr.mxu0 %v941
    %v943 = vand.u32 %v168, 4294901760
    %v944 = vsub.f32 %v168, %v943
    %945 = vmatpush1.msra.mxu0 %v944
    %v946 = vand.u32 %v167, 4294901760
    %v947 = vsub.f32 %v167, %v946
    %948 = vmatprep.subr.mxu0 %v947
    %v949 = vand.u32 %v166, 4294901760
    %v950 = vsub.f32 %v166, %v949
    %951 = vmatpush1.msra.mxu0 %v950
    %v952 = vand.u32 %v165, 4294901760
    %v953 = vsub.f32 %v165, %v952
    %954 = vmatprep.subr.mxu0 %v953
    %v955 = vand.u32 %v164, 4294901760
    %v956 = vsub.f32 %v164, %v955
    %957 = vmatpush1.msra.mxu0 %v956
    %v958 = vand.u32 %v163, 4294901760
    %v959 = vsub.f32 %v163, %v958
    %960 = vmatprep.subr.mxu0 %v959
    %v961 = vand.u32 %v162, 4294901760
    %v962 = vsub.f32 %v162, %v961
    %963 = vmatpush1.msra.mxu0 %v962
    %v964 = vand.u32 %v225, 4294901760
    %v965 = vsub.f32 %v225, %v964
    %966 = vmatprep.subr.mxu0 %v965
    %v967 = vand.u32 %v224, 4294901760
    %v968 = vsub.f32 %v224, %v967
    %969 = vmatpush2.msra.mxu0 %v968
    %v970 = vand.u32 %v223, 4294901760
    %v971 = vsub.f32 %v223, %v970
    %972 = vmatprep.subr.mxu0 %v971
    %v973 = vand.u32 %v222, 4294901760
    %v974 = vsub.f32 %v222, %v973
    %975 = vmatpush2.msra.mxu0 %v974
    %v976 = vand.u32 %v221, 4294901760
    %v977 = vsub.f32 %v221, %v976
    %978 = vmatprep.subr.mxu0 %v977
    %v979 = vand.u32 %v220, 4294901760
    %v980 = vsub.f32 %v220, %v979
    %981 = vmatpush2.msra.mxu0 %v980
    %v982 = vand.u32 %v219, 4294901760
    %v983 = vsub.f32 %v219, %v982
    %984 = vmatprep.subr.mxu0 %v983
    %v985 = vand.u32 %v218, 4294901760
    %v986 = vsub.f32 %v218, %v985
    %987 = vmatpush2.msra.mxu0 %v986
    %v988 = vand.u32 %v217, 4294901760
    %v989 = vsub.f32 %v217, %v988
    %990 = vmatprep.subr.mxu0 %v989
    %v991 = vand.u32 %v216, 4294901760
    %v992 = vsub.f32 %v216, %v991
    %993 = vmatpush2.msra.mxu0 %v992
    %v994 = vand.u32 %v215, 4294901760
    %v995 = vsub.f32 %v215, %v994
    %996 = vmatprep.subr.mxu0 %v995
    %v997 = vand.u32 %v214, 4294901760
    %v998 = vsub.f32 %v214, %v997
    %999 = vmatpush2.msra.mxu0 %v998
    %v1000 = vand.u32 %v213, 4294901760
    %v1001 = vsub.f32 %v213, %v1000
    %1002 = vmatprep.subr.mxu0 %v1001
    %v1003 = vand.u32 %v212, 4294901760
    %v1004 = vsub.f32 %v212, %v1003
    %1005 = vmatpush2.msra.mxu0 %v1004
    %v1006 = vand.u32 %v211, 4294901760
    %v1007 = vsub.f32 %v211, %v1006
    %1008 = vmatprep.subr.mxu0 %v1007
    %v1009 = vand.u32 %v210, 4294901760
    %v1010 = vsub.f32 %v210, %v1009
    %1011 = vmatpush2.msra.mxu0 %v1010
    %v1012 = vand.u32 %v209, 4294901760
    %v1013 = vsub.f32 %v209, %v1012
    %1014 = vmatprep.subr.mxu0 %v1013
    %v1015 = vand.u32 %v208, 4294901760
    %v1016 = vsub.f32 %v208, %v1015
    %1017 = vmatpush2.msra.mxu0 %v1016
    %v1018 = vand.u32 %v207, 4294901760
    %v1019 = vsub.f32 %v207, %v1018
    %1020 = vmatprep.subr.mxu0 %v1019
    %v1021 = vand.u32 %v206, 4294901760
    %v1022 = vsub.f32 %v206, %v1021
    %1023 = vmatpush2.msra.mxu0 %v1022
    %v1024 = vand.u32 %v205, 4294901760
    %v1025 = vsub.f32 %v205, %v1024
    %1026 = vmatprep.subr.mxu0 %v1025
    %v1027 = vand.u32 %v204, 4294901760
    %v1028 = vsub.f32 %v204, %v1027
    %1029 = vmatpush2.msra.mxu0 %v1028
    %v1030 = vand.u32 %v203, 4294901760
    %v1031 = vsub.f32 %v203, %v1030
    %1032 = vmatprep.subr.mxu0 %v1031
    %v1033 = vand.u32 %v202, 4294901760
    %v1034 = vsub.f32 %v202, %v1033
    %1035 = vmatpush2.msra.mxu0 %v1034
    %v1036 = vand.u32 %v201, 4294901760
    %v1037 = vsub.f32 %v201, %v1036
    %1038 = vmatprep.subr.mxu0 %v1037
    %v1039 = vand.u32 %v200, 4294901760
    %v1040 = vsub.f32 %v200, %v1039
    %1041 = vmatpush2.msra.mxu0 %v1040
    %v1042 = vand.u32 %v199, 4294901760
    %v1043 = vsub.f32 %v199, %v1042
    %1044 = vmatprep.subr.mxu0 %v1043
    %v1045 = vand.u32 %v198, 4294901760
    %v1046 = vsub.f32 %v198, %v1045
    %1047 = vmatpush2.msra.mxu0 %v1046
    %v1048 = vand.u32 %v197, 4294901760
    %v1049 = vsub.f32 %v197, %v1048
    %1050 = vmatprep.subr.mxu0 %v1049
    %v1051 = vand.u32 %v196, 4294901760
    %v1052 = vsub.f32 %v196, %v1051
    %1053 = vmatpush2.msra.mxu0 %v1052
    %v1054 = vand.u32 %v195, 4294901760
    %v1055 = vsub.f32 %v195, %v1054
    %1056 = vmatprep.subr.mxu0 %v1055
    %v1057 = vand.u32 %v194, 4294901760
    %v1058 = vsub.f32 %v194, %v1057
    %1059 = vmatpush2.msra.mxu0 %v1058
    %v1060 = vand.u32 %v34, 4294901760
    %v1061 = vsub.f32 %v34, %v1060
    %1062 = vmatprep.mubr.f32.mxu0 %v1061
    %v1063 = vand.u32 %v141, 4294901760
    %v1064 = vsub.f32 %v141, %v1063
    %1065 = vmatmul.mubr.f32.gmra.mxu0 %v1064
    %v1066 = vpop.f32.mrf.mxu0
    %v1067 = vadd.f32 %v840, %v1066
    %v1068 = vpop.f32.mrf.mxu0
    %v1069 = vadd.f32 %v842, %v1068
    %v1070 = vand.u32 %v35, 4294901760
    %v1071 = vsub.f32 %v35, %v1070
    %1072 = vmatprep.mubr.f32.mxu0 %v1071
    %v1073 = vand.u32 %v142, 4294901760
    %v1074 = vsub.f32 %v142, %v1073
    %1075 = vmatmul.mubr.f32.gmra.mxu0 %v1074
    %v1076 = vpop.f32.mrf.mxu0
    %v1077 = vadd.f32 %v848, %v1076
    %v1078 = vpop.f32.mrf.mxu0
    %v1079 = vadd.f32 %v850, %v1078
    %v1080 = vand.u32 %v36, 4294901760
    %v1081 = vsub.f32 %v36, %v1080
    %1082 = vmatprep.mubr.f32.mxu0 %v1081
    %v1083 = vand.u32 %v143, 4294901760
    %v1084 = vsub.f32 %v143, %v1083
    %1085 = vmatmul.mubr.f32.gmra.mxu0 %v1084
    %v1086 = vpop.f32.mrf.mxu0
    %v1087 = vadd.f32 %v856, %v1086
    %v1088 = vpop.f32.mrf.mxu0
    %v1089 = vadd.f32 %v858, %v1088
    %v1090 = vand.u32 %v37, 4294901760
    %v1091 = vsub.f32 %v37, %v1090
    %1092 = vmatprep.mubr.f32.mxu0 %v1091
    %v1093 = vand.u32 %v144, 4294901760
    %v1094 = vsub.f32 %v144, %v1093
    %1095 = vmatmul.mubr.f32.gmra.mxu0 %v1094
    %v1096 = vpop.f32.mrf.mxu0
    %v1097 = vadd.f32 %v864, %v1096
    %v1098 = vpop.f32.mrf.mxu0
    %v1099 = vadd.f32 %v866, %v1098
    %1100 = vdwg.mxu0
    %v1101 = vand.u32 %v193, 4294901760
    %1102 = vmatprep.subr.mxu0 %v1101
    %v1103 = vand.u32 %v192, 4294901760
    %1104 = vmatpush1.msra.mxu0 %v1103
    %v1105 = vand.u32 %v191, 4294901760
    %1106 = vmatprep.subr.mxu0 %v1105
    %v1107 = vand.u32 %v190, 4294901760
    %1108 = vmatpush1.msra.mxu0 %v1107
    %v1109 = vand.u32 %v189, 4294901760
    %1110 = vmatprep.subr.mxu0 %v1109
    %v1111 = vand.u32 %v188, 4294901760
    %1112 = vmatpush1.msra.mxu0 %v1111
    %v1113 = vand.u32 %v187, 4294901760
    %1114 = vmatprep.subr.mxu0 %v1113
    %v1115 = vand.u32 %v186, 4294901760
    %1116 = vmatpush1.msra.mxu0 %v1115
    %v1117 = vand.u32 %v185, 4294901760
    %1118 = vmatprep.subr.mxu0 %v1117
    %v1119 = vand.u32 %v184, 4294901760
    %1120 = vmatpush1.msra.mxu0 %v1119
    %v1121 = vand.u32 %v183, 4294901760
    %1122 = vmatprep.subr.mxu0 %v1121
    %v1123 = vand.u32 %v182, 4294901760
    %1124 = vmatpush1.msra.mxu0 %v1123
    %v1125 = vand.u32 %v181, 4294901760
    %1126 = vmatprep.subr.mxu0 %v1125
    %v1127 = vand.u32 %v180, 4294901760
    %1128 = vmatpush1.msra.mxu0 %v1127
    %v1129 = vand.u32 %v179, 4294901760
    %1130 = vmatprep.subr.mxu0 %v1129
    %v1131 = vand.u32 %v178, 4294901760
    %1132 = vmatpush1.msra.mxu0 %v1131
    %v1133 = vand.u32 %v177, 4294901760
    %1134 = vmatprep.subr.mxu0 %v1133
    %v1135 = vand.u32 %v176, 4294901760
    %1136 = vmatpush1.msra.mxu0 %v1135
    %v1137 = vand.u32 %v175, 4294901760
    %1138 = vmatprep.subr.mxu0 %v1137
    %v1139 = vand.u32 %v174, 4294901760
    %1140 = vmatpush1.msra.mxu0 %v1139
    %v1141 = vand.u32 %v173, 4294901760
    %1142 = vmatprep.subr.mxu0 %v1141
    %v1143 = vand.u32 %v172, 4294901760
    %1144 = vmatpush1.msra.mxu0 %v1143
    %v1145 = vand.u32 %v171, 4294901760
    %1146 = vmatprep.subr.mxu0 %v1145
    %v1147 = vand.u32 %v170, 4294901760
    %1148 = vmatpush1.msra.mxu0 %v1147
    %v1149 = vand.u32 %v169, 4294901760
    %1150 = vmatprep.subr.mxu0 %v1149
    %v1151 = vand.u32 %v168, 4294901760
    %1152 = vmatpush1.msra.mxu0 %v1151
    %v1153 = vand.u32 %v167, 4294901760
    %1154 = vmatprep.subr.mxu0 %v1153
    %v1155 = vand.u32 %v166, 4294901760
    %1156 = vmatpush1.msra.mxu0 %v1155
    %v1157 = vand.u32 %v165, 4294901760
    %1158 = vmatprep.subr.mxu0 %v1157
    %v1159 = vand.u32 %v164, 4294901760
    %1160 = vmatpush1.msra.mxu0 %v1159
    %v1161 = vand.u32 %v163, 4294901760
    %1162 = vmatprep.subr.mxu0 %v1161
    %v1163 = vand.u32 %v162, 4294901760
    %1164 = vmatpush1.msra.mxu0 %v1163
    %v1165 = vand.u32 %v225, 4294901760
    %1166 = vmatprep.subr.mxu0 %v1165
    %v1167 = vand.u32 %v224, 4294901760
    %1168 = vmatpush2.msra.mxu0 %v1167
    %v1169 = vand.u32 %v223, 4294901760
    %1170 = vmatprep.subr.mxu0 %v1169
    %v1171 = vand.u32 %v222, 4294901760
    %1172 = vmatpush2.msra.mxu0 %v1171
    %v1173 = vand.u32 %v221, 4294901760
    %1174 = vmatprep.subr.mxu0 %v1173
    %v1175 = vand.u32 %v220, 4294901760
    %1176 = vmatpush2.msra.mxu0 %v1175
    %v1177 = vand.u32 %v219, 4294901760
    %1178 = vmatprep.subr.mxu0 %v1177
    %v1179 = vand.u32 %v218, 4294901760
    %1180 = vmatpush2.msra.mxu0 %v1179
    %v1181 = vand.u32 %v217, 4294901760
    %1182 = vmatprep.subr.mxu0 %v1181
    %v1183 = vand.u32 %v216, 4294901760
    %1184 = vmatpush2.msra.mxu0 %v1183
    %v1185 = vand.u32 %v215, 4294901760
    %1186 = vmatprep.subr.mxu0 %v1185
    %v1187 = vand.u32 %v214, 4294901760
    %1188 = vmatpush2.msra.mxu0 %v1187
    %v1189 = vand.u32 %v213, 4294901760
    %1190 = vmatprep.subr.mxu0 %v1189
    %v1191 = vand.u32 %v212, 4294901760
    %1192 = vmatpush2.msra.mxu0 %v1191
    %v1193 = vand.u32 %v211, 4294901760
    %1194 = vmatprep.subr.mxu0 %v1193
    %v1195 = vand.u32 %v210, 4294901760
    %1196 = vmatpush2.msra.mxu0 %v1195
    %v1197 = vand.u32 %v209, 4294901760
    %1198 = vmatprep.subr.mxu0 %v1197
    %v1199 = vand.u32 %v208, 4294901760
    %1200 = vmatpush2.msra.mxu0 %v1199
    %v1201 = vand.u32 %v207, 4294901760
    %1202 = vmatprep.subr.mxu0 %v1201
    %v1203 = vand.u32 %v206, 4294901760
    %1204 = vmatpush2.msra.mxu0 %v1203
    %v1205 = vand.u32 %v205, 4294901760
    %1206 = vmatprep.subr.mxu0 %v1205
    %v1207 = vand.u32 %v204, 4294901760
    %1208 = vmatpush2.msra.mxu0 %v1207
    %v1209 = vand.u32 %v203, 4294901760
    %1210 = vmatprep.subr.mxu0 %v1209
    %v1211 = vand.u32 %v202, 4294901760
    %1212 = vmatpush2.msra.mxu0 %v1211
    %v1213 = vand.u32 %v201, 4294901760
    %1214 = vmatprep.subr.mxu0 %v1213
    %v1215 = vand.u32 %v200, 4294901760
    %1216 = vmatpush2.msra.mxu0 %v1215
    %v1217 = vand.u32 %v199, 4294901760
    %1218 = vmatprep.subr.mxu0 %v1217
    %v1219 = vand.u32 %v198, 4294901760
    %1220 = vmatpush2.msra.mxu0 %v1219
    %v1221 = vand.u32 %v197, 4294901760
    %1222 = vmatprep.subr.mxu0 %v1221
    %v1223 = vand.u32 %v196, 4294901760
    %1224 = vmatpush2.msra.mxu0 %v1223
    %v1225 = vand.u32 %v195, 4294901760
    %1226 = vmatprep.subr.mxu0 %v1225
    %v1227 = vand.u32 %v194, 4294901760
    %1228 = vmatpush2.msra.mxu0 %v1227
    %v1229 = vand.u32 %v34, 4294901760
    %v1230 = vsub.f32 %v34, %v1229
    %v1231 = vand.u32 %v1230, 4294901760
    %1232 = vmatprep.mubr.f32.mxu0 %v1231
    %v1233 = vand.u32 %v141, 4294901760
    %v1234 = vsub.f32 %v141, %v1233
    %v1235 = vand.u32 %v1234, 4294901760
    %1236 = vmatmul.mubr.f32.gmra.mxu0 %v1235
    %v1237 = vpop.f32.mrf.mxu0
    %v1238 = vadd.f32 %v1067, %v1237
    %v1239 = vpop.f32.mrf.mxu0
    %v1240 = vadd.f32 %v1069, %v1239
    %v1241 = vand.u32 %v35, 4294901760
    %v1242 = vsub.f32 %v35, %v1241
    %v1243 = vand.u32 %v1242, 4294901760
    %1244 = vmatprep.mubr.f32.mxu0 %v1243
    %v1245 = vand.u32 %v142, 4294901760
    %v1246 = vsub.f32 %v142, %v1245
    %v1247 = vand.u32 %v1246, 4294901760
    %1248 = vmatmul.mubr.f32.gmra.mxu0 %v1247
    %v1249 = vpop.f32.mrf.mxu0
    %v1250 = vadd.f32 %v1077, %v1249
    %v1251 = vpop.f32.mrf.mxu0
    %v1252 = vadd.f32 %v1079, %v1251
    %v1253 = vand.u32 %v36, 4294901760
    %v1254 = vsub.f32 %v36, %v1253
    %v1255 = vand.u32 %v1254, 4294901760
    %1256 = vmatprep.mubr.f32.mxu0 %v1255
    %v1257 = vand.u32 %v143, 4294901760
    %v1258 = vsub.f32 %v143, %v1257
    %v1259 = vand.u32 %v1258, 4294901760
    %1260 = vmatmul.mubr.f32.gmra.mxu0 %v1259
    %v1261 = vpop.f32.mrf.mxu0
    %v1262 = vadd.f32 %v1087, %v1261
    %v1263 = vpop.f32.mrf.mxu0
    %v1264 = vadd.f32 %v1089, %v1263
    %v1265 = vand.u32 %v37, 4294901760
    %v1266 = vsub.f32 %v37, %v1265
    %v1267 = vand.u32 %v1266, 4294901760
    %1268 = vmatprep.mubr.f32.mxu0 %v1267
    %v1269 = vand.u32 %v144, 4294901760
    %v1270 = vsub.f32 %v144, %v1269
    %v1271 = vand.u32 %v1270, 4294901760
    %1272 = vmatmul.mubr.f32.gmra.mxu0 %v1271
    %v1273 = vpop.f32.mrf.mxu0
    %v1274 = vadd.f32 %v1097, %v1273
    %v1275 = vpop.f32.mrf.mxu0
    %v1276 = vadd.f32 %v1099, %v1275
    %1277 = vdwg.mxu0
    %v1278 = vand.u32 %v193, 4294901760
    %v1279 = vsub.f32 %v193, %v1278
    %v1280 = vand.u32 %v1279, 4294901760
    %1281 = vmatprep.subr.mxu0 %v1280
    %v1282 = vand.u32 %v192, 4294901760
    %v1283 = vsub.f32 %v192, %v1282
    %v1284 = vand.u32 %v1283, 4294901760
    %1285 = vmatpush1.msra.mxu0 %v1284
    %v1286 = vand.u32 %v191, 4294901760
    %v1287 = vsub.f32 %v191, %v1286
    %v1288 = vand.u32 %v1287, 4294901760
    %1289 = vmatprep.subr.mxu0 %v1288
    %v1290 = vand.u32 %v190, 4294901760
    %v1291 = vsub.f32 %v190, %v1290
    %v1292 = vand.u32 %v1291, 4294901760
    %1293 = vmatpush1.msra.mxu0 %v1292
    %v1294 = vand.u32 %v189, 4294901760
    %v1295 = vsub.f32 %v189, %v1294
    %v1296 = vand.u32 %v1295, 4294901760
    %1297 = vmatprep.subr.mxu0 %v1296
    %v1298 = vand.u32 %v188, 4294901760
    %v1299 = vsub.f32 %v188, %v1298
    %v1300 = vand.u32 %v1299, 4294901760
    %1301 = vmatpush1.msra.mxu0 %v1300
    %v1302 = vand.u32 %v187, 4294901760
    %v1303 = vsub.f32 %v187, %v1302
    %v1304 = vand.u32 %v1303, 4294901760
    %1305 = vmatprep.subr.mxu0 %v1304
    %v1306 = vand.u32 %v186, 4294901760
    %v1307 = vsub.f32 %v186, %v1306
    %v1308 = vand.u32 %v1307, 4294901760
    %1309 = vmatpush1.msra.mxu0 %v1308
    %v1310 = vand.u32 %v185, 4294901760
    %v1311 = vsub.f32 %v185, %v1310
    %v1312 = vand.u32 %v1311, 4294901760
    %1313 = vmatprep.subr.mxu0 %v1312
    %v1314 = vand.u32 %v184, 4294901760
    %v1315 = vsub.f32 %v184, %v1314
    %v1316 = vand.u32 %v1315, 4294901760
    %1317 = vmatpush1.msra.mxu0 %v1316
    %v1318 = vand.u32 %v183, 4294901760
    %v1319 = vsub.f32 %v183, %v1318
    %v1320 = vand.u32 %v1319, 4294901760
    %1321 = vmatprep.subr.mxu0 %v1320
    %v1322 = vand.u32 %v182, 4294901760
    %v1323 = vsub.f32 %v182, %v1322
    %v1324 = vand.u32 %v1323, 4294901760
    %1325 = vmatpush1.msra.mxu0 %v1324
    %v1326 = vand.u32 %v181, 4294901760
    %v1327 = vsub.f32 %v181, %v1326
    %v1328 = vand.u32 %v1327, 4294901760
    %1329 = vmatprep.subr.mxu0 %v1328
    %v1330 = vand.u32 %v180, 4294901760
    %v1331 = vsub.f32 %v180, %v1330
    %v1332 = vand.u32 %v1331, 4294901760
    %1333 = vmatpush1.msra.mxu0 %v1332
    %v1334 = vand.u32 %v179, 4294901760
    %v1335 = vsub.f32 %v179, %v1334
    %v1336 = vand.u32 %v1335, 4294901760
    %1337 = vmatprep.subr.mxu0 %v1336
    %v1338 = vand.u32 %v178, 4294901760
    %v1339 = vsub.f32 %v178, %v1338
    %v1340 = vand.u32 %v1339, 4294901760
    %1341 = vmatpush1.msra.mxu0 %v1340
    %v1342 = vand.u32 %v177, 4294901760
    %v1343 = vsub.f32 %v177, %v1342
    %v1344 = vand.u32 %v1343, 4294901760
    %1345 = vmatprep.subr.mxu0 %v1344
    %v1346 = vand.u32 %v176, 4294901760
    %v1347 = vsub.f32 %v176, %v1346
    %v1348 = vand.u32 %v1347, 4294901760
    %1349 = vmatpush1.msra.mxu0 %v1348
    %v1350 = vand.u32 %v175, 4294901760
    %v1351 = vsub.f32 %v175, %v1350
    %v1352 = vand.u32 %v1351, 4294901760
    %1353 = vmatprep.subr.mxu0 %v1352
    %v1354 = vand.u32 %v174, 4294901760
    %v1355 = vsub.f32 %v174, %v1354
    %v1356 = vand.u32 %v1355, 4294901760
    %1357 = vmatpush1.msra.mxu0 %v1356
    %v1358 = vand.u32 %v173, 4294901760
    %v1359 = vsub.f32 %v173, %v1358
    %v1360 = vand.u32 %v1359, 4294901760
    %1361 = vmatprep.subr.mxu0 %v1360
    %v1362 = vand.u32 %v172, 4294901760
    %v1363 = vsub.f32 %v172, %v1362
    %v1364 = vand.u32 %v1363, 4294901760
    %1365 = vmatpush1.msra.mxu0 %v1364
    %v1366 = vand.u32 %v171, 4294901760
    %v1367 = vsub.f32 %v171, %v1366
    %v1368 = vand.u32 %v1367, 4294901760
    %1369 = vmatprep.subr.mxu0 %v1368
    %v1370 = vand.u32 %v170, 4294901760
    %v1371 = vsub.f32 %v170, %v1370
    %v1372 = vand.u32 %v1371, 4294901760
    %1373 = vmatpush1.msra.mxu0 %v1372
    %v1374 = vand.u32 %v169, 4294901760
    %v1375 = vsub.f32 %v169, %v1374
    %v1376 = vand.u32 %v1375, 4294901760
    %1377 = vmatprep.subr.mxu0 %v1376
    %v1378 = vand.u32 %v168, 4294901760
    %v1379 = vsub.f32 %v168, %v1378
    %v1380 = vand.u32 %v1379, 4294901760
    %1381 = vmatpush1.msra.mxu0 %v1380
    %v1382 = vand.u32 %v167, 4294901760
    %v1383 = vsub.f32 %v167, %v1382
    %v1384 = vand.u32 %v1383, 4294901760
    %1385 = vmatprep.subr.mxu0 %v1384
    %v1386 = vand.u32 %v166, 4294901760
    %v1387 = vsub.f32 %v166, %v1386
    %v1388 = vand.u32 %v1387, 4294901760
    %1389 = vmatpush1.msra.mxu0 %v1388
    %v1390 = vand.u32 %v165, 4294901760
    %v1391 = vsub.f32 %v165, %v1390
    %v1392 = vand.u32 %v1391, 4294901760
    %1393 = vmatprep.subr.mxu0 %v1392
    %v1394 = vand.u32 %v164, 4294901760
    %v1395 = vsub.f32 %v164, %v1394
    %v1396 = vand.u32 %v1395, 4294901760
    %1397 = vmatpush1.msra.mxu0 %v1396
    %v1398 = vand.u32 %v163, 4294901760
    %v1399 = vsub.f32 %v163, %v1398
    %v1400 = vand.u32 %v1399, 4294901760
    %1401 = vmatprep.subr.mxu0 %v1400
    %v1402 = vand.u32 %v162, 4294901760
    %v1403 = vsub.f32 %v162, %v1402
    %v1404 = vand.u32 %v1403, 4294901760
    %1405 = vmatpush1.msra.mxu0 %v1404
    %v1406 = vand.u32 %v225, 4294901760
    %v1407 = vsub.f32 %v225, %v1406
    %v1408 = vand.u32 %v1407, 4294901760
    %1409 = vmatprep.subr.mxu0 %v1408
    %v1410 = vand.u32 %v224, 4294901760
    %v1411 = vsub.f32 %v224, %v1410
    %v1412 = vand.u32 %v1411, 4294901760
    %1413 = vmatpush2.msra.mxu0 %v1412
    %v1414 = vand.u32 %v223, 4294901760
    %v1415 = vsub.f32 %v223, %v1414
    %v1416 = vand.u32 %v1415, 4294901760
    %1417 = vmatprep.subr.mxu0 %v1416
    %v1418 = vand.u32 %v222, 4294901760
    %v1419 = vsub.f32 %v222, %v1418
    %v1420 = vand.u32 %v1419, 4294901760
    %1421 = vmatpush2.msra.mxu0 %v1420
    %v1422 = vand.u32 %v221, 4294901760
    %v1423 = vsub.f32 %v221, %v1422
    %v1424 = vand.u32 %v1423, 4294901760
    %1425 = vmatprep.subr.mxu0 %v1424
    %v1426 = vand.u32 %v220, 4294901760
    %v1427 = vsub.f32 %v220, %v1426
    %v1428 = vand.u32 %v1427, 4294901760
    %1429 = vmatpush2.msra.mxu0 %v1428
    %v1430 = vand.u32 %v219, 4294901760
    %v1431 = vsub.f32 %v219, %v1430
    %v1432 = vand.u32 %v1431, 4294901760
    %1433 = vmatprep.subr.mxu0 %v1432
    %v1434 = vand.u32 %v218, 4294901760
    %v1435 = vsub.f32 %v218, %v1434
    %v1436 = vand.u32 %v1435, 4294901760
    %1437 = vmatpush2.msra.mxu0 %v1436
    %v1438 = vand.u32 %v217, 4294901760
    %v1439 = vsub.f32 %v217, %v1438
    %v1440 = vand.u32 %v1439, 4294901760
    %1441 = vmatprep.subr.mxu0 %v1440
    %v1442 = vand.u32 %v216, 4294901760
    %v1443 = vsub.f32 %v216, %v1442
    %v1444 = vand.u32 %v1443, 4294901760
    %1445 = vmatpush2.msra.mxu0 %v1444
    %v1446 = vand.u32 %v215, 4294901760
    %v1447 = vsub.f32 %v215, %v1446
    %v1448 = vand.u32 %v1447, 4294901760
    %1449 = vmatprep.subr.mxu0 %v1448
    %v1450 = vand.u32 %v214, 4294901760
    %v1451 = vsub.f32 %v214, %v1450
    %v1452 = vand.u32 %v1451, 4294901760
    %1453 = vmatpush2.msra.mxu0 %v1452
    %v1454 = vand.u32 %v213, 4294901760
    %v1455 = vsub.f32 %v213, %v1454
    %v1456 = vand.u32 %v1455, 4294901760
    %1457 = vmatprep.subr.mxu0 %v1456
    %v1458 = vand.u32 %v212, 4294901760
    %v1459 = vsub.f32 %v212, %v1458
    %v1460 = vand.u32 %v1459, 4294901760
    %1461 = vmatpush2.msra.mxu0 %v1460
    %v1462 = vand.u32 %v211, 4294901760
    %v1463 = vsub.f32 %v211, %v1462
    %v1464 = vand.u32 %v1463, 4294901760
    %1465 = vmatprep.subr.mxu0 %v1464
    %v1466 = vand.u32 %v210, 4294901760
    %v1467 = vsub.f32 %v210, %v1466
    %v1468 = vand.u32 %v1467, 4294901760
    %1469 = vmatpush2.msra.mxu0 %v1468
    %v1470 = vand.u32 %v209, 4294901760
    %v1471 = vsub.f32 %v209, %v1470
    %v1472 = vand.u32 %v1471, 4294901760
    %1473 = vmatprep.subr.mxu0 %v1472
    %v1474 = vand.u32 %v208, 4294901760
    %v1475 = vsub.f32 %v208, %v1474
    %v1476 = vand.u32 %v1475, 4294901760
    %1477 = vmatpush2.msra.mxu0 %v1476
    %v1478 = vand.u32 %v207, 4294901760
    %v1479 = vsub.f32 %v207, %v1478
    %v1480 = vand.u32 %v1479, 4294901760
    %1481 = vmatprep.subr.mxu0 %v1480
    %v1482 = vand.u32 %v206, 4294901760
    %v1483 = vsub.f32 %v206, %v1482
    %v1484 = vand.u32 %v1483, 4294901760
    %1485 = vmatpush2.msra.mxu0 %v1484
    %v1486 = vand.u32 %v205, 4294901760
    %v1487 = vsub.f32 %v205, %v1486
    %v1488 = vand.u32 %v1487, 4294901760
    %1489 = vmatprep.subr.mxu0 %v1488
    %v1490 = vand.u32 %v204, 4294901760
    %v1491 = vsub.f32 %v204, %v1490
    %v1492 = vand.u32 %v1491, 4294901760
    %1493 = vmatpush2.msra.mxu0 %v1492
    %v1494 = vand.u32 %v203, 4294901760
    %v1495 = vsub.f32 %v203, %v1494
    %v1496 = vand.u32 %v1495, 4294901760
    %1497 = vmatprep.subr.mxu0 %v1496
    %v1498 = vand.u32 %v202, 4294901760
    %v1499 = vsub.f32 %v202, %v1498
    %v1500 = vand.u32 %v1499, 4294901760
    %1501 = vmatpush2.msra.mxu0 %v1500
    %v1502 = vand.u32 %v201, 4294901760
    %v1503 = vsub.f32 %v201, %v1502
    %v1504 = vand.u32 %v1503, 4294901760
    %1505 = vmatprep.subr.mxu0 %v1504
    %v1506 = vand.u32 %v200, 4294901760
    %v1507 = vsub.f32 %v200, %v1506
    %v1508 = vand.u32 %v1507, 4294901760
    %1509 = vmatpush2.msra.mxu0 %v1508
    %v1510 = vand.u32 %v199, 4294901760
    %v1511 = vsub.f32 %v199, %v1510
    %v1512 = vand.u32 %v1511, 4294901760
    %1513 = vmatprep.subr.mxu0 %v1512
    %v1514 = vand.u32 %v198, 4294901760
    %v1515 = vsub.f32 %v198, %v1514
    %v1516 = vand.u32 %v1515, 4294901760
    %1517 = vmatpush2.msra.mxu0 %v1516
    %v1518 = vand.u32 %v197, 4294901760
    %v1519 = vsub.f32 %v197, %v1518
    %v1520 = vand.u32 %v1519, 4294901760
    %1521 = vmatprep.subr.mxu0 %v1520
    %v1522 = vand.u32 %v196, 4294901760
    %v1523 = vsub.f32 %v196, %v1522
    %v1524 = vand.u32 %v1523, 4294901760
    %1525 = vmatpush2.msra.mxu0 %v1524
    %v1526 = vand.u32 %v195, 4294901760
    %v1527 = vsub.f32 %v195, %v1526
    %v1528 = vand.u32 %v1527, 4294901760
    %1529 = vmatprep.subr.mxu0 %v1528
    %v1530 = vand.u32 %v194, 4294901760
    %v1531 = vsub.f32 %v194, %v1530
    %v1532 = vand.u32 %v1531, 4294901760
    %1533 = vmatpush2.msra.mxu0 %v1532
    %v1534 = vand.u32 %v34, 4294901760
    %1535 = vmatprep.mubr.f32.mxu0 %v1534
    %v1536 = vand.u32 %v141, 4294901760
    %1537 = vmatmul.mubr.f32.gmra.mxu0 %v1536
    %v1538 = vpop.f32.mrf.mxu0
    %v1539 = vadd.f32 %v1238, %v1538
    %v1540 = vpop.f32.mrf.mxu0
    %v1541 = vadd.f32 %v1240, %v1540
    %v1542 = vand.u32 %v35, 4294901760
    %1543 = vmatprep.mubr.f32.mxu0 %v1542
    %v1544 = vand.u32 %v142, 4294901760
    %1545 = vmatmul.mubr.f32.gmra.mxu0 %v1544
    %v1546 = vpop.f32.mrf.mxu0
    %v1547 = vadd.f32 %v1250, %v1546
    %v1548 = vpop.f32.mrf.mxu0
    %v1549 = vadd.f32 %v1252, %v1548
    %v1550 = vand.u32 %v36, 4294901760
    %1551 = vmatprep.mubr.f32.mxu0 %v1550
    %v1552 = vand.u32 %v143, 4294901760
    %1553 = vmatmul.mubr.f32.gmra.mxu0 %v1552
    %v1554 = vpop.f32.mrf.mxu0
    %v1555 = vadd.f32 %v1262, %v1554
    %v1556 = vpop.f32.mrf.mxu0
    %v1557 = vadd.f32 %v1264, %v1556
    %v1558 = vand.u32 %v37, 4294901760
    %1559 = vmatprep.mubr.f32.mxu0 %v1558
    %v1560 = vand.u32 %v144, 4294901760
    %1561 = vmatmul.mubr.f32.gmra.mxu0 %v1560
    %v1562 = vpop.f32.mrf.mxu0
    %v1563 = vadd.f32 %v1274, %v1562
    %v1564 = vpop.f32.mrf.mxu0
    %v1565 = vadd.f32 %v1276, %v1564
    %1566 = vdwg.mxu0
    %v1567 = vand.u32 %v193, 4294901760
    %1568 = vmatprep.subr.mxu0 %v1567
    %v1569 = vand.u32 %v192, 4294901760
    %1570 = vmatpush1.msra.mxu0 %v1569
    %v1571 = vand.u32 %v191, 4294901760
    %1572 = vmatprep.subr.mxu0 %v1571
    %v1573 = vand.u32 %v190, 4294901760
    %1574 = vmatpush1.msra.mxu0 %v1573
    %v1575 = vand.u32 %v189, 4294901760
    %1576 = vmatprep.subr.mxu0 %v1575
    %v1577 = vand.u32 %v188, 4294901760
    %1578 = vmatpush1.msra.mxu0 %v1577
    %v1579 = vand.u32 %v187, 4294901760
    %1580 = vmatprep.subr.mxu0 %v1579
    %v1581 = vand.u32 %v186, 4294901760
    %1582 = vmatpush1.msra.mxu0 %v1581
    %v1583 = vand.u32 %v185, 4294901760
    %1584 = vmatprep.subr.mxu0 %v1583
    %v1585 = vand.u32 %v184, 4294901760
    %1586 = vmatpush1.msra.mxu0 %v1585
    %v1587 = vand.u32 %v183, 4294901760
    %1588 = vmatprep.subr.mxu0 %v1587
    %v1589 = vand.u32 %v182, 4294901760
    %1590 = vmatpush1.msra.mxu0 %v1589
    %v1591 = vand.u32 %v181, 4294901760
    %1592 = vmatprep.subr.mxu0 %v1591
    %v1593 = vand.u32 %v180, 4294901760
    %1594 = vmatpush1.msra.mxu0 %v1593
    %v1595 = vand.u32 %v179, 4294901760
    %1596 = vmatprep.subr.mxu0 %v1595
    %v1597 = vand.u32 %v178, 4294901760
    %1598 = vmatpush1.msra.mxu0 %v1597
    %v1599 = vand.u32 %v177, 4294901760
    %1600 = vmatprep.subr.mxu0 %v1599
    %v1601 = vand.u32 %v176, 4294901760
    %1602 = vmatpush1.msra.mxu0 %v1601
    %v1603 = vand.u32 %v175, 4294901760
    %1604 = vmatprep.subr.mxu0 %v1603
    %v1605 = vand.u32 %v174, 4294901760
    %1606 = vmatpush1.msra.mxu0 %v1605
    %v1607 = vand.u32 %v173, 4294901760
    %1608 = vmatprep.subr.mxu0 %v1607
    %v1609 = vand.u32 %v172, 4294901760
    %1610 = vmatpush1.msra.mxu0 %v1609
    %v1611 = vand.u32 %v171, 4294901760
    %1612 = vmatprep.subr.mxu0 %v1611
    %v1613 = vand.u32 %v170, 4294901760
    %1614 = vmatpush1.msra.mxu0 %v1613
    %v1615 = vand.u32 %v169, 4294901760
    %1616 = vmatprep.subr.mxu0 %v1615
    %v1617 = vand.u32 %v168, 4294901760
    %1618 = vmatpush1.msra.mxu0 %v1617
    %v1619 = vand.u32 %v167, 4294901760
    %1620 = vmatprep.subr.mxu0 %v1619
    %v1621 = vand.u32 %v166, 4294901760
    %1622 = vmatpush1.msra.mxu0 %v1621
    %v1623 = vand.u32 %v165, 4294901760
    %1624 = vmatprep.subr.mxu0 %v1623
    %v1625 = vand.u32 %v164, 4294901760
    %1626 = vmatpush1.msra.mxu0 %v1625
    %v1627 = vand.u32 %v163, 4294901760
    %1628 = vmatprep.subr.mxu0 %v1627
    %v1629 = vand.u32 %v162, 4294901760
    %1630 = vmatpush1.msra.mxu0 %v1629
    %v1631 = vand.u32 %v225, 4294901760
    %1632 = vmatprep.subr.mxu0 %v1631
    %v1633 = vand.u32 %v224, 4294901760
    %1634 = vmatpush2.msra.mxu0 %v1633
    %v1635 = vand.u32 %v223, 4294901760
    %1636 = vmatprep.subr.mxu0 %v1635
    %v1637 = vand.u32 %v222, 4294901760
    %1638 = vmatpush2.msra.mxu0 %v1637
    %v1639 = vand.u32 %v221, 4294901760
    %1640 = vmatprep.subr.mxu0 %v1639
    %v1641 = vand.u32 %v220, 4294901760
    %1642 = vmatpush2.msra.mxu0 %v1641
    %v1643 = vand.u32 %v219, 4294901760
    %1644 = vmatprep.subr.mxu0 %v1643
    %v1645 = vand.u32 %v218, 4294901760
    %1646 = vmatpush2.msra.mxu0 %v1645
    %v1647 = vand.u32 %v217, 4294901760
    %1648 = vmatprep.subr.mxu0 %v1647
    %v1649 = vand.u32 %v216, 4294901760
    %1650 = vmatpush2.msra.mxu0 %v1649
    %v1651 = vand.u32 %v215, 4294901760
    %1652 = vmatprep.subr.mxu0 %v1651
    %v1653 = vand.u32 %v214, 4294901760
    %1654 = vmatpush2.msra.mxu0 %v1653
    %v1655 = vand.u32 %v213, 4294901760
    %1656 = vmatprep.subr.mxu0 %v1655
    %v1657 = vand.u32 %v212, 4294901760
    %1658 = vmatpush2.msra.mxu0 %v1657
    %v1659 = vand.u32 %v211, 4294901760
    %1660 = vmatprep.subr.mxu0 %v1659
    %v1661 = vand.u32 %v210, 4294901760
    %1662 = vmatpush2.msra.mxu0 %v1661
    %v1663 = vand.u32 %v209, 4294901760
    %1664 = vmatprep.subr.mxu0 %v1663
    %v1665 = vand.u32 %v208, 4294901760
    %1666 = vmatpush2.msra.mxu0 %v1665
    %v1667 = vand.u32 %v207, 4294901760
    %1668 = vmatprep.subr.mxu0 %v1667
    %v1669 = vand.u32 %v206, 4294901760
    %1670 = vmatpush2.msra.mxu0 %v1669
    %v1671 = vand.u32 %v205, 4294901760
    %1672 = vmatprep.subr.mxu0 %v1671
    %v1673 = vand.u32 %v204, 4294901760
    %1674 = vmatpush2.msra.mxu0 %v1673
    %v1675 = vand.u32 %v203, 4294901760
    %1676 = vmatprep.subr.mxu0 %v1675
    %v1677 = vand.u32 %v202, 4294901760
    %1678 = vmatpush2.msra.mxu0 %v1677
    %v1679 = vand.u32 %v201, 4294901760
    %1680 = vmatprep.subr.mxu0 %v1679
    %v1681 = vand.u32 %v200, 4294901760
    %1682 = vmatpush2.msra.mxu0 %v1681
    %v1683 = vand.u32 %v199, 4294901760
    %1684 = vmatprep.subr.mxu0 %v1683
    %v1685 = vand.u32 %v198, 4294901760
    %1686 = vmatpush2.msra.mxu0 %v1685
    %v1687 = vand.u32 %v197, 4294901760
    %1688 = vmatprep.subr.mxu0 %v1687
    %v1689 = vand.u32 %v196, 4294901760
    %1690 = vmatpush2.msra.mxu0 %v1689
    %v1691 = vand.u32 %v195, 4294901760
    %1692 = vmatprep.subr.mxu0 %v1691
    %v1693 = vand.u32 %v194, 4294901760
    %1694 = vmatpush2.msra.mxu0 %v1693
    %v1695 = vand.u32 %v34, 4294901760
    %1696 = vmatprep.mubr.f32.mxu0 %v1695
    %v1697 = vand.u32 %v141, 4294901760
    %1698 = vmatmul.mubr.f32.gmra.mxu0 %v1697
    %v1699 = vpop.f32.mrf.mxu0
    %v1700 = vadd.f32 %v1539, %v1699
    %v1701 = vpop.f32.mrf.mxu0
    %v1702 = vadd.f32 %v1541, %v1701
    %v1703 = vand.u32 %v35, 4294901760
    %1704 = vmatprep.mubr.f32.mxu0 %v1703
    %v1705 = vand.u32 %v142, 4294901760
    %1706 = vmatmul.mubr.f32.gmra.mxu0 %v1705
    %v1707 = vpop.f32.mrf.mxu0
    %v1708 = vadd.f32 %v1547, %v1707
    %v1709 = vpop.f32.mrf.mxu0
    %v1710 = vadd.f32 %v1549, %v1709
    %v1711 = vand.u32 %v36, 4294901760
    %1712 = vmatprep.mubr.f32.mxu0 %v1711
    %v1713 = vand.u32 %v143, 4294901760
    %1714 = vmatmul.mubr.f32.gmra.mxu0 %v1713
    %v1715 = vpop.f32.mrf.mxu0
    %v1716 = vadd.f32 %v1555, %v1715
    %v1717 = vpop.f32.mrf.mxu0
    %v1718 = vadd.f32 %v1557, %v1717
    %v1719 = vand.u32 %v37, 4294901760
    %1720 = vmatprep.mubr.f32.mxu0 %v1719
    %v1721 = vand.u32 %v144, 4294901760
    %1722 = vmatmul.mubr.f32.gmra.mxu0 %v1721
    %v1723 = vpop.f32.mrf.mxu0
    %v1724 = vadd.f32 %v1563, %v1723
    %v1725 = vpop.f32.mrf.mxu0
    %v1726 = vadd.f32 %v1565, %v1725
    %1727 = vdwg.mxu0
    %v1728 = vand.u32 %v257, 4294901760
    %1729 = vmatprep.subr.mxu0 %v1728
    %v1730 = vand.u32 %v256, 4294901760
    %1731 = vmatpush1.msra.mxu0 %v1730
    %v1732 = vand.u32 %v255, 4294901760
    %1733 = vmatprep.subr.mxu0 %v1732
    %v1734 = vand.u32 %v254, 4294901760
    %1735 = vmatpush1.msra.mxu0 %v1734
    %v1736 = vand.u32 %v253, 4294901760
    %1737 = vmatprep.subr.mxu0 %v1736
    %v1738 = vand.u32 %v252, 4294901760
    %1739 = vmatpush1.msra.mxu0 %v1738
    %v1740 = vand.u32 %v251, 4294901760
    %1741 = vmatprep.subr.mxu0 %v1740
    %v1742 = vand.u32 %v250, 4294901760
    %1743 = vmatpush1.msra.mxu0 %v1742
    %v1744 = vand.u32 %v249, 4294901760
    %1745 = vmatprep.subr.mxu0 %v1744
    %v1746 = vand.u32 %v248, 4294901760
    %1747 = vmatpush1.msra.mxu0 %v1746
    %v1748 = vand.u32 %v247, 4294901760
    %1749 = vmatprep.subr.mxu0 %v1748
    %v1750 = vand.u32 %v246, 4294901760
    %1751 = vmatpush1.msra.mxu0 %v1750
    %v1752 = vand.u32 %v245, 4294901760
    %1753 = vmatprep.subr.mxu0 %v1752
    %v1754 = vand.u32 %v244, 4294901760
    %1755 = vmatpush1.msra.mxu0 %v1754
    %v1756 = vand.u32 %v243, 4294901760
    %1757 = vmatprep.subr.mxu0 %v1756
    %v1758 = vand.u32 %v242, 4294901760
    %1759 = vmatpush1.msra.mxu0 %v1758
    %v1760 = vand.u32 %v241, 4294901760
    %1761 = vmatprep.subr.mxu0 %v1760
    %v1762 = vand.u32 %v240, 4294901760
    %1763 = vmatpush1.msra.mxu0 %v1762
    %v1764 = vand.u32 %v239, 4294901760
    %1765 = vmatprep.subr.mxu0 %v1764
    %v1766 = vand.u32 %v238, 4294901760
    %1767 = vmatpush1.msra.mxu0 %v1766
    %v1768 = vand.u32 %v237, 4294901760
    %1769 = vmatprep.subr.mxu0 %v1768
    %v1770 = vand.u32 %v236, 4294901760
    %1771 = vmatpush1.msra.mxu0 %v1770
    %v1772 = vand.u32 %v235, 4294901760
    %1773 = vmatprep.subr.mxu0 %v1772
    %v1774 = vand.u32 %v234, 4294901760
    %1775 = vmatpush1.msra.mxu0 %v1774
    %v1776 = vand.u32 %v233, 4294901760
    %1777 = vmatprep.subr.mxu0 %v1776
    %v1778 = vand.u32 %v232, 4294901760
    %1779 = vmatpush1.msra.mxu0 %v1778
    %v1780 = vand.u32 %v231, 4294901760
    %1781 = vmatprep.subr.mxu0 %v1780
    %v1782 = vand.u32 %v230, 4294901760
    %1783 = vmatpush1.msra.mxu0 %v1782
    %v1784 = vand.u32 %v229, 4294901760
    %1785 = vmatprep.subr.mxu0 %v1784
    %v1786 = vand.u32 %v228, 4294901760
    %1787 = vmatpush1.msra.mxu0 %v1786
    %v1788 = vand.u32 %v227, 4294901760
    %1789 = vmatprep.subr.mxu0 %v1788
    %v1790 = vand.u32 %v226, 4294901760
    %1791 = vmatpush1.msra.mxu0 %v1790
    %1792 = vmatprep.subr.mxu0 0.0
    %1793 = vmatpush2.msra.mxu0 0.0
    %1794 = vmatprep.subr.mxu0 0.0
    %1795 = vmatpush2.msra.mxu0 0.0
    %1796 = vmatprep.subr.mxu0 0.0
    %1797 = vmatpush2.msra.mxu0 0.0
    %1798 = vmatprep.subr.mxu0 0.0
    %1799 = vmatpush2.msra.mxu0 0.0
    %1800 = vmatprep.subr.mxu0 0.0
    %1801 = vmatpush2.msra.mxu0 0.0
    %1802 = vmatprep.subr.mxu0 0.0
    %1803 = vmatpush2.msra.mxu0 0.0
    %1804 = vmatprep.subr.mxu0 0.0
    %1805 = vmatpush2.msra.mxu0 0.0
    %1806 = vmatprep.subr.mxu0 0.0
    %1807 = vmatpush2.msra.mxu0 0.0
    %1808 = vmatprep.subr.mxu0 0.0
    %1809 = vmatpush2.msra.mxu0 0.0
    %1810 = vmatprep.subr.mxu0 0.0
    %1811 = vmatpush2.msra.mxu0 0.0
    %1812 = vmatprep.subr.mxu0 0.0
    %1813 = vmatpush2.msra.mxu0 0.0
    %1814 = vmatprep.subr.mxu0 0.0
    %1815 = vmatpush2.msra.mxu0 0.0
    %1816 = vmatprep.subr.mxu0 0.0
    %1817 = vmatpush2.msra.mxu0 0.0
    %1818 = vmatprep.subr.mxu0 0.0
    %1819 = vmatpush2.msra.mxu0 0.0
    %1820 = vmatprep.subr.mxu0 0.0
    %1821 = vmatpush2.msra.mxu0 0.0
    %1822 = vmatprep.subr.mxu0 0.0
    %1823 = vmatpush2.msra.mxu0 0.0
    %1824 = vmatprep.mubr.f32.mxu0 0.0
    %v1825 = vand.u32 %v158, 4294901760
    %v1826 = vsub.f32 %v158, %v1825
    %v1827 = vand.u32 %v1826, 4294901760
    %v1828 = vsub.f32 %v1826, %v1827
    %v1829 = vand.u32 %v1828, 4294901760
    %1830 = vmatmul.mubr.f32.gmra.mxu0 %v1829
    %v1831 = vpop.f32.mrf.mxu0
    %v1832 = vadd.f32 %v1700, %v1831
    %v1833 = vpop.f32.mrf.mxu0
    %v1834 = vadd.f32 %v1702, %v1833
    %1835 = vmatprep.mubr.f32.mxu0 0.0
    %v1836 = vand.u32 %v159, 4294901760
    %v1837 = vsub.f32 %v159, %v1836
    %v1838 = vand.u32 %v1837, 4294901760
    %v1839 = vsub.f32 %v1837, %v1838
    %v1840 = vand.u32 %v1839, 4294901760
    %1841 = vmatmul.mubr.f32.gmra.mxu0 %v1840
    %v1842 = vpop.f32.mrf.mxu0
    %v1843 = vadd.f32 %v1708, %v1842
    %v1844 = vpop.f32.mrf.mxu0
    %v1845 = vadd.f32 %v1710, %v1844
    %1846 = vmatprep.mubr.f32.mxu0 0.0
    %v1847 = vand.u32 %v160, 4294901760
    %v1848 = vsub.f32 %v160, %v1847
    %v1849 = vand.u32 %v1848, 4294901760
    %v1850 = vsub.f32 %v1848, %v1849
    %v1851 = vand.u32 %v1850, 4294901760
    %1852 = vmatmul.mubr.f32.gmra.mxu0 %v1851
    %v1853 = vpop.f32.mrf.mxu0
    %v1854 = vadd.f32 %v1716, %v1853
    %v1855 = vpop.f32.mrf.mxu0
    %v1856 = vadd.f32 %v1718, %v1855
    %1857 = vmatprep.mubr.f32.mxu0 0.0
    %v1858 = vand.u32 %v161, 4294901760
    %v1859 = vsub.f32 %v161, %v1858
    %v1860 = vand.u32 %v1859, 4294901760
    %v1861 = vsub.f32 %v1859, %v1860
    %v1862 = vand.u32 %v1861, 4294901760
    %1863 = vmatmul.mubr.f32.gmra.mxu0 %v1862
    %v1864 = vpop.f32.mrf.mxu0
    %v1865 = vadd.f32 %v1724, %v1864
    %v1866 = vpop.f32.mrf.mxu0
    %v1867 = vadd.f32 %v1726, %v1866
    %1868 = vdwg.mxu0
    %v1869 = vand.u32 %v257, 4294901760
    %v1870 = vsub.f32 %v257, %v1869
    %v1871 = vand.u32 %v1870, 4294901760
    %v1872 = vsub.f32 %v1870, %v1871
    %v1873 = vand.u32 %v1872, 4294901760
    %1874 = vmatprep.subr.mxu0 %v1873
    %v1875 = vand.u32 %v256, 4294901760
    %v1876 = vsub.f32 %v256, %v1875
    %v1877 = vand.u32 %v1876, 4294901760
    %v1878 = vsub.f32 %v1876, %v1877
    %v1879 = vand.u32 %v1878, 4294901760
    %1880 = vmatpush1.msra.mxu0 %v1879
    %v1881 = vand.u32 %v255, 4294901760
    %v1882 = vsub.f32 %v255, %v1881
    %v1883 = vand.u32 %v1882, 4294901760
    %v1884 = vsub.f32 %v1882, %v1883
    %v1885 = vand.u32 %v1884, 4294901760
    %1886 = vmatprep.subr.mxu0 %v1885
    %v1887 = vand.u32 %v254, 4294901760
    %v1888 = vsub.f32 %v254, %v1887
    %v1889 = vand.u32 %v1888, 4294901760
    %v1890 = vsub.f32 %v1888, %v1889
    %v1891 = vand.u32 %v1890, 4294901760
    %1892 = vmatpush1.msra.mxu0 %v1891
    %v1893 = vand.u32 %v253, 4294901760
    %v1894 = vsub.f32 %v253, %v1893
    %v1895 = vand.u32 %v1894, 4294901760
    %v1896 = vsub.f32 %v1894, %v1895
    %v1897 = vand.u32 %v1896, 4294901760
    %1898 = vmatprep.subr.mxu0 %v1897
    %v1899 = vand.u32 %v252, 4294901760
    %v1900 = vsub.f32 %v252, %v1899
    %v1901 = vand.u32 %v1900, 4294901760
    %v1902 = vsub.f32 %v1900, %v1901
    %v1903 = vand.u32 %v1902, 4294901760
    %1904 = vmatpush1.msra.mxu0 %v1903
    %v1905 = vand.u32 %v251, 4294901760
    %v1906 = vsub.f32 %v251, %v1905
    %v1907 = vand.u32 %v1906, 4294901760
    %v1908 = vsub.f32 %v1906, %v1907
    %v1909 = vand.u32 %v1908, 4294901760
    %1910 = vmatprep.subr.mxu0 %v1909
    %v1911 = vand.u32 %v250, 4294901760
    %v1912 = vsub.f32 %v250, %v1911
    %v1913 = vand.u32 %v1912, 4294901760
    %v1914 = vsub.f32 %v1912, %v1913
    %v1915 = vand.u32 %v1914, 4294901760
    %1916 = vmatpush1.msra.mxu0 %v1915
    %v1917 = vand.u32 %v249, 4294901760
    %v1918 = vsub.f32 %v249, %v1917
    %v1919 = vand.u32 %v1918, 4294901760
    %v1920 = vsub.f32 %v1918, %v1919
    %v1921 = vand.u32 %v1920, 4294901760
    %1922 = vmatprep.subr.mxu0 %v1921
    %v1923 = vand.u32 %v248, 4294901760
    %v1924 = vsub.f32 %v248, %v1923
    %v1925 = vand.u32 %v1924, 4294901760
    %v1926 = vsub.f32 %v1924, %v1925
    %v1927 = vand.u32 %v1926, 4294901760
    %1928 = vmatpush1.msra.mxu0 %v1927
    %v1929 = vand.u32 %v247, 4294901760
    %v1930 = vsub.f32 %v247, %v1929
    %v1931 = vand.u32 %v1930, 4294901760
    %v1932 = vsub.f32 %v1930, %v1931
    %v1933 = vand.u32 %v1932, 4294901760
    %1934 = vmatprep.subr.mxu0 %v1933
    %v1935 = vand.u32 %v246, 4294901760
    %v1936 = vsub.f32 %v246, %v1935
    %v1937 = vand.u32 %v1936, 4294901760
    %v1938 = vsub.f32 %v1936, %v1937
    %v1939 = vand.u32 %v1938, 4294901760
    %1940 = vmatpush1.msra.mxu0 %v1939
    %v1941 = vand.u32 %v245, 4294901760
    %v1942 = vsub.f32 %v245, %v1941
    %v1943 = vand.u32 %v1942, 4294901760
    %v1944 = vsub.f32 %v1942, %v1943
    %v1945 = vand.u32 %v1944, 4294901760
    %1946 = vmatprep.subr.mxu0 %v1945
    %v1947 = vand.u32 %v244, 4294901760
    %v1948 = vsub.f32 %v244, %v1947
    %v1949 = vand.u32 %v1948, 4294901760
    %v1950 = vsub.f32 %v1948, %v1949
    %v1951 = vand.u32 %v1950, 4294901760
    %1952 = vmatpush1.msra.mxu0 %v1951
    %v1953 = vand.u32 %v243, 4294901760
    %v1954 = vsub.f32 %v243, %v1953
    %v1955 = vand.u32 %v1954, 4294901760
    %v1956 = vsub.f32 %v1954, %v1955
    %v1957 = vand.u32 %v1956, 4294901760
    %1958 = vmatprep.subr.mxu0 %v1957
    %v1959 = vand.u32 %v242, 4294901760
    %v1960 = vsub.f32 %v242, %v1959
    %v1961 = vand.u32 %v1960, 4294901760
    %v1962 = vsub.f32 %v1960, %v1961
    %v1963 = vand.u32 %v1962, 4294901760
    %1964 = vmatpush1.msra.mxu0 %v1963
    %v1965 = vand.u32 %v241, 4294901760
    %v1966 = vsub.f32 %v241, %v1965
    %v1967 = vand.u32 %v1966, 4294901760
    %v1968 = vsub.f32 %v1966, %v1967
    %v1969 = vand.u32 %v1968, 4294901760
    %1970 = vmatprep.subr.mxu0 %v1969
    %v1971 = vand.u32 %v240, 4294901760
    %v1972 = vsub.f32 %v240, %v1971
    %v1973 = vand.u32 %v1972, 4294901760
    %v1974 = vsub.f32 %v1972, %v1973
    %v1975 = vand.u32 %v1974, 4294901760
    %1976 = vmatpush1.msra.mxu0 %v1975
    %v1977 = vand.u32 %v239, 4294901760
    %v1978 = vsub.f32 %v239, %v1977
    %v1979 = vand.u32 %v1978, 4294901760
    %v1980 = vsub.f32 %v1978, %v1979
    %v1981 = vand.u32 %v1980, 4294901760
    %1982 = vmatprep.subr.mxu0 %v1981
    %v1983 = vand.u32 %v238, 4294901760
    %v1984 = vsub.f32 %v238, %v1983
    %v1985 = vand.u32 %v1984, 4294901760
    %v1986 = vsub.f32 %v1984, %v1985
    %v1987 = vand.u32 %v1986, 4294901760
    %1988 = vmatpush1.msra.mxu0 %v1987
    %v1989 = vand.u32 %v237, 4294901760
    %v1990 = vsub.f32 %v237, %v1989
    %v1991 = vand.u32 %v1990, 4294901760
    %v1992 = vsub.f32 %v1990, %v1991
    %v1993 = vand.u32 %v1992, 4294901760
    %1994 = vmatprep.subr.mxu0 %v1993
    %v1995 = vand.u32 %v236, 4294901760
    %v1996 = vsub.f32 %v236, %v1995
    %v1997 = vand.u32 %v1996, 4294901760
    %v1998 = vsub.f32 %v1996, %v1997
    %v1999 = vand.u32 %v1998, 4294901760
    %2000 = vmatpush1.msra.mxu0 %v1999
    %v2001 = vand.u32 %v235, 4294901760
    %v2002 = vsub.f32 %v235, %v2001
    %v2003 = vand.u32 %v2002, 4294901760
    %v2004 = vsub.f32 %v2002, %v2003
    %v2005 = vand.u32 %v2004, 4294901760
    %2006 = vmatprep.subr.mxu0 %v2005
    %v2007 = vand.u32 %v234, 4294901760
    %v2008 = vsub.f32 %v234, %v2007
    %v2009 = vand.u32 %v2008, 4294901760
    %v2010 = vsub.f32 %v2008, %v2009
    %v2011 = vand.u32 %v2010, 4294901760
    %2012 = vmatpush1.msra.mxu0 %v2011
    %v2013 = vand.u32 %v233, 4294901760
    %v2014 = vsub.f32 %v233, %v2013
    %v2015 = vand.u32 %v2014, 4294901760
    %v2016 = vsub.f32 %v2014, %v2015
    %v2017 = vand.u32 %v2016, 4294901760
    %2018 = vmatprep.subr.mxu0 %v2017
    %v2019 = vand.u32 %v232, 4294901760
    %v2020 = vsub.f32 %v232, %v2019
    %v2021 = vand.u32 %v2020, 4294901760
    %v2022 = vsub.f32 %v2020, %v2021
    %v2023 = vand.u32 %v2022, 4294901760
    %2024 = vmatpush1.msra.mxu0 %v2023
    %v2025 = vand.u32 %v231, 4294901760
    %v2026 = vsub.f32 %v231, %v2025
    %v2027 = vand.u32 %v2026, 4294901760
    %v2028 = vsub.f32 %v2026, %v2027
    %v2029 = vand.u32 %v2028, 4294901760
    %2030 = vmatprep.subr.mxu0 %v2029
    %v2031 = vand.u32 %v230, 4294901760
    %v2032 = vsub.f32 %v230, %v2031
    %v2033 = vand.u32 %v2032, 4294901760
    %v2034 = vsub.f32 %v2032, %v2033
    %v2035 = vand.u32 %v2034, 4294901760
    %2036 = vmatpush1.msra.mxu0 %v2035
    %v2037 = vand.u32 %v229, 4294901760
    %v2038 = vsub.f32 %v229, %v2037
    %v2039 = vand.u32 %v2038, 4294901760
    %v2040 = vsub.f32 %v2038, %v2039
    %v2041 = vand.u32 %v2040, 4294901760
    %2042 = vmatprep.subr.mxu0 %v2041
    %v2043 = vand.u32 %v228, 4294901760
    %v2044 = vsub.f32 %v228, %v2043
    %v2045 = vand.u32 %v2044, 4294901760
    %v2046 = vsub.f32 %v2044, %v2045
    %v2047 = vand.u32 %v2046, 4294901760
    %2048 = vmatpush1.msra.mxu0 %v2047
    %v2049 = vand.u32 %v227, 4294901760
    %v2050 = vsub.f32 %v227, %v2049
    %v2051 = vand.u32 %v2050, 4294901760
    %v2052 = vsub.f32 %v2050, %v2051
    %v2053 = vand.u32 %v2052, 4294901760
    %2054 = vmatprep.subr.mxu0 %v2053
    %v2055 = vand.u32 %v226, 4294901760
    %v2056 = vsub.f32 %v226, %v2055
    %v2057 = vand.u32 %v2056, 4294901760
    %v2058 = vsub.f32 %v2056, %v2057
    %v2059 = vand.u32 %v2058, 4294901760
    %2060 = vmatpush1.msra.mxu0 %v2059
    %2061 = vmatprep.subr.mxu0 0.0
    %2062 = vmatpush2.msra.mxu0 0.0
    %2063 = vmatprep.subr.mxu0 0.0
    %2064 = vmatpush2.msra.mxu0 0.0
    %2065 = vmatprep.subr.mxu0 0.0
    %2066 = vmatpush2.msra.mxu0 0.0
    %2067 = vmatprep.subr.mxu0 0.0
    %2068 = vmatpush2.msra.mxu0 0.0
    %2069 = vmatprep.subr.mxu0 0.0
    %2070 = vmatpush2.msra.mxu0 0.0
    %2071 = vmatprep.subr.mxu0 0.0
    %2072 = vmatpush2.msra.mxu0 0.0
    %2073 = vmatprep.subr.mxu0 0.0
    %2074 = vmatpush2.msra.mxu0 0.0
    %2075 = vmatprep.subr.mxu0 0.0
    %2076 = vmatpush2.msra.mxu0 0.0
    %2077 = vmatprep.subr.mxu0 0.0
    %2078 = vmatpush2.msra.mxu0 0.0
    %2079 = vmatprep.subr.mxu0 0.0
    %2080 = vmatpush2.msra.mxu0 0.0
    %2081 = vmatprep.subr.mxu0 0.0
    %2082 = vmatpush2.msra.mxu0 0.0
    %2083 = vmatprep.subr.mxu0 0.0
    %2084 = vmatpush2.msra.mxu0 0.0
    %2085 = vmatprep.subr.mxu0 0.0
    %2086 = vmatpush2.msra.mxu0 0.0
    %2087 = vmatprep.subr.mxu0 0.0
    %2088 = vmatpush2.msra.mxu0 0.0
    %2089 = vmatprep.subr.mxu0 0.0
    %2090 = vmatpush2.msra.mxu0 0.0
    %2091 = vmatprep.subr.mxu0 0.0
    %2092 = vmatpush2.msra.mxu0 0.0
    %2093 = vmatprep.mubr.f32.mxu0 0.0
    %v2094 = vand.u32 %v158, 4294901760
    %2095 = vmatmul.mubr.f32.gmra.mxu0 %v2094
    %v2096 = vpop.f32.mrf.mxu0
    %v2097 = vadd.f32 %v1832, %v2096
    %v2098 = vpop.f32.mrf.mxu0
    %v2099 = vadd.f32 %v1834, %v2098
    %2100 = vmatprep.mubr.f32.mxu0 0.0
    %v2101 = vand.u32 %v159, 4294901760
    %2102 = vmatmul.mubr.f32.gmra.mxu0 %v2101
    %v2103 = vpop.f32.mrf.mxu0
    %v2104 = vadd.f32 %v1843, %v2103
    %v2105 = vpop.f32.mrf.mxu0
    %v2106 = vadd.f32 %v1845, %v2105
    %2107 = vmatprep.mubr.f32.mxu0 0.0
    %v2108 = vand.u32 %v160, 4294901760
    %2109 = vmatmul.mubr.f32.gmra.mxu0 %v2108
    %v2110 = vpop.f32.mrf.mxu0
    %v2111 = vadd.f32 %v1854, %v2110
    %v2112 = vpop.f32.mrf.mxu0
    %v2113 = vadd.f32 %v1856, %v2112
    %2114 = vmatprep.mubr.f32.mxu0 0.0
    %v2115 = vand.u32 %v161, 4294901760
    %2116 = vmatmul.mubr.f32.gmra.mxu0 %v2115
    %v2117 = vpop.f32.mrf.mxu0
    %v2118 = vadd.f32 %v1865, %v2117
    %v2119 = vpop.f32.mrf.mxu0
    %v2120 = vadd.f32 %v1867, %v2119
    %2121 = vdwg.mxu0
    %v2122 = vand.u32 %v257, 4294901760
    %v2123 = vsub.f32 %v257, %v2122
    %2124 = vmatprep.subr.mxu0 %v2123
    %v2125 = vand.u32 %v256, 4294901760
    %v2126 = vsub.f32 %v256, %v2125
    %2127 = vmatpush1.msra.mxu0 %v2126
    %v2128 = vand.u32 %v255, 4294901760
    %v2129 = vsub.f32 %v255, %v2128
    %2130 = vmatprep.subr.mxu0 %v2129
    %v2131 = vand.u32 %v254, 4294901760
    %v2132 = vsub.f32 %v254, %v2131
    %2133 = vmatpush1.msra.mxu0 %v2132
    %v2134 = vand.u32 %v253, 4294901760
    %v2135 = vsub.f32 %v253, %v2134
    %2136 = vmatprep.subr.mxu0 %v2135
    %v2137 = vand.u32 %v252, 4294901760
    %v2138 = vsub.f32 %v252, %v2137
    %2139 = vmatpush1.msra.mxu0 %v2138
    %v2140 = vand.u32 %v251, 4294901760
    %v2141 = vsub.f32 %v251, %v2140
    %2142 = vmatprep.subr.mxu0 %v2141
    %v2143 = vand.u32 %v250, 4294901760
    %v2144 = vsub.f32 %v250, %v2143
    %2145 = vmatpush1.msra.mxu0 %v2144
    %v2146 = vand.u32 %v249, 4294901760
    %v2147 = vsub.f32 %v249, %v2146
    %2148 = vmatprep.subr.mxu0 %v2147
    %v2149 = vand.u32 %v248, 4294901760
    %v2150 = vsub.f32 %v248, %v2149
    %2151 = vmatpush1.msra.mxu0 %v2150
    %v2152 = vand.u32 %v247, 4294901760
    %v2153 = vsub.f32 %v247, %v2152
    %2154 = vmatprep.subr.mxu0 %v2153
    %v2155 = vand.u32 %v246, 4294901760
    %v2156 = vsub.f32 %v246, %v2155
    %2157 = vmatpush1.msra.mxu0 %v2156
    %v2158 = vand.u32 %v245, 4294901760
    %v2159 = vsub.f32 %v245, %v2158
    %2160 = vmatprep.subr.mxu0 %v2159
    %v2161 = vand.u32 %v244, 4294901760
    %v2162 = vsub.f32 %v244, %v2161
    %2163 = vmatpush1.msra.mxu0 %v2162
    %v2164 = vand.u32 %v243, 4294901760
    %v2165 = vsub.f32 %v243, %v2164
    %2166 = vmatprep.subr.mxu0 %v2165
    %v2167 = vand.u32 %v242, 4294901760
    %v2168 = vsub.f32 %v242, %v2167
    %2169 = vmatpush1.msra.mxu0 %v2168
    %v2170 = vand.u32 %v241, 4294901760
    %v2171 = vsub.f32 %v241, %v2170
    %2172 = vmatprep.subr.mxu0 %v2171
    %v2173 = vand.u32 %v240, 4294901760
    %v2174 = vsub.f32 %v240, %v2173
    %2175 = vmatpush1.msra.mxu0 %v2174
    %v2176 = vand.u32 %v239, 4294901760
    %v2177 = vsub.f32 %v239, %v2176
    %2178 = vmatprep.subr.mxu0 %v2177
    %v2179 = vand.u32 %v238, 4294901760
    %v2180 = vsub.f32 %v238, %v2179
    %2181 = vmatpush1.msra.mxu0 %v2180
    %v2182 = vand.u32 %v237, 4294901760
    %v2183 = vsub.f32 %v237, %v2182
    %2184 = vmatprep.subr.mxu0 %v2183
    %v2185 = vand.u32 %v236, 4294901760
    %v2186 = vsub.f32 %v236, %v2185
    %2187 = vmatpush1.msra.mxu0 %v2186
    %v2188 = vand.u32 %v235, 4294901760
    %v2189 = vsub.f32 %v235, %v2188
    %2190 = vmatprep.subr.mxu0 %v2189
    %v2191 = vand.u32 %v234, 4294901760
    %v2192 = vsub.f32 %v234, %v2191
    %2193 = vmatpush1.msra.mxu0 %v2192
    %v2194 = vand.u32 %v233, 4294901760
    %v2195 = vsub.f32 %v233, %v2194
    %2196 = vmatprep.subr.mxu0 %v2195
    %v2197 = vand.u32 %v232, 4294901760
    %v2198 = vsub.f32 %v232, %v2197
    %2199 = vmatpush1.msra.mxu0 %v2198
    %v2200 = vand.u32 %v231, 4294901760
    %v2201 = vsub.f32 %v231, %v2200
    %2202 = vmatprep.subr.mxu0 %v2201
    %v2203 = vand.u32 %v230, 4294901760
    %v2204 = vsub.f32 %v230, %v2203
    %2205 = vmatpush1.msra.mxu0 %v2204
    %v2206 = vand.u32 %v229, 4294901760
    %v2207 = vsub.f32 %v229, %v2206
    %2208 = vmatprep.subr.mxu0 %v2207
    %v2209 = vand.u32 %v228, 4294901760
    %v2210 = vsub.f32 %v228, %v2209
    %2211 = vmatpush1.msra.mxu0 %v2210
    %v2212 = vand.u32 %v227, 4294901760
    %v2213 = vsub.f32 %v227, %v2212
    %2214 = vmatprep.subr.mxu0 %v2213
    %v2215 = vand.u32 %v226, 4294901760
    %v2216 = vsub.f32 %v226, %v2215
    %2217 = vmatpush1.msra.mxu0 %v2216
    %2218 = vmatprep.subr.mxu0 0.0
    %2219 = vmatpush2.msra.mxu0 0.0
    %2220 = vmatprep.subr.mxu0 0.0
    %2221 = vmatpush2.msra.mxu0 0.0
    %2222 = vmatprep.subr.mxu0 0.0
    %2223 = vmatpush2.msra.mxu0 0.0
    %2224 = vmatprep.subr.mxu0 0.0
    %2225 = vmatpush2.msra.mxu0 0.0
    %2226 = vmatprep.subr.mxu0 0.0
    %2227 = vmatpush2.msra.mxu0 0.0
    %2228 = vmatprep.subr.mxu0 0.0
    %2229 = vmatpush2.msra.mxu0 0.0
    %2230 = vmatprep.subr.mxu0 0.0
    %2231 = vmatpush2.msra.mxu0 0.0
    %2232 = vmatprep.subr.mxu0 0.0
    %2233 = vmatpush2.msra.mxu0 0.0
    %2234 = vmatprep.subr.mxu0 0.0
    %2235 = vmatpush2.msra.mxu0 0.0
    %2236 = vmatprep.subr.mxu0 0.0
    %2237 = vmatpush2.msra.mxu0 0.0
    %2238 = vmatprep.subr.mxu0 0.0
    %2239 = vmatpush2.msra.mxu0 0.0
    %2240 = vmatprep.subr.mxu0 0.0
    %2241 = vmatpush2.msra.mxu0 0.0
    %2242 = vmatprep.subr.mxu0 0.0
    %2243 = vmatpush2.msra.mxu0 0.0
    %2244 = vmatprep.subr.mxu0 0.0
    %2245 = vmatpush2.msra.mxu0 0.0
    %2246 = vmatprep.subr.mxu0 0.0
    %2247 = vmatpush2.msra.mxu0 0.0
    %2248 = vmatprep.subr.mxu0 0.0
    %2249 = vmatpush2.msra.mxu0 0.0
    %2250 = vmatprep.mubr.f32.mxu0 0.0
    %v2251 = vand.u32 %v158, 4294901760
    %v2252 = vsub.f32 %v158, %v2251
    %2253 = vmatmul.mubr.f32.gmra.mxu0 %v2252
    %v2254 = vpop.f32.mrf.mxu0
    %v2255 = vadd.f32 %v2097, %v2254
    %v2256 = vpop.f32.mrf.mxu0
    %v2257 = vadd.f32 %v2099, %v2256
    %2258 = vmatprep.mubr.f32.mxu0 0.0
    %v2259 = vand.u32 %v159, 4294901760
    %v2260 = vsub.f32 %v159, %v2259
    %2261 = vmatmul.mubr.f32.gmra.mxu0 %v2260
    %v2262 = vpop.f32.mrf.mxu0
    %v2263 = vadd.f32 %v2104, %v2262
    %v2264 = vpop.f32.mrf.mxu0
    %v2265 = vadd.f32 %v2106, %v2264
    %2266 = vmatprep.mubr.f32.mxu0 0.0
    %v2267 = vand.u32 %v160, 4294901760
    %v2268 = vsub.f32 %v160, %v2267
    %2269 = vmatmul.mubr.f32.gmra.mxu0 %v2268
    %v2270 = vpop.f32.mrf.mxu0
    %v2271 = vadd.f32 %v2111, %v2270
    %v2272 = vpop.f32.mrf.mxu0
    %v2273 = vadd.f32 %v2113, %v2272
    %2274 = vmatprep.mubr.f32.mxu0 0.0
    %v2275 = vand.u32 %v161, 4294901760
    %v2276 = vsub.f32 %v161, %v2275
    %2277 = vmatmul.mubr.f32.gmra.mxu0 %v2276
    %v2278 = vpop.f32.mrf.mxu0
    %v2279 = vadd.f32 %v2118, %v2278
    %v2280 = vpop.f32.mrf.mxu0
    %v2281 = vadd.f32 %v2120, %v2280
    %2282 = vdwg.mxu0
    %v2283 = vand.u32 %v257, 4294901760
    %2284 = vmatprep.subr.mxu0 %v2283
    %v2285 = vand.u32 %v256, 4294901760
    %2286 = vmatpush1.msra.mxu0 %v2285
    %v2287 = vand.u32 %v255, 4294901760
    %2288 = vmatprep.subr.mxu0 %v2287
    %v2289 = vand.u32 %v254, 4294901760
    %2290 = vmatpush1.msra.mxu0 %v2289
    %v2291 = vand.u32 %v253, 4294901760
    %2292 = vmatprep.subr.mxu0 %v2291
    %v2293 = vand.u32 %v252, 4294901760
    %2294 = vmatpush1.msra.mxu0 %v2293
    %v2295 = vand.u32 %v251, 4294901760
    %2296 = vmatprep.subr.mxu0 %v2295
    %v2297 = vand.u32 %v250, 4294901760
    %2298 = vmatpush1.msra.mxu0 %v2297
    %v2299 = vand.u32 %v249, 4294901760
    %2300 = vmatprep.subr.mxu0 %v2299
    %v2301 = vand.u32 %v248, 4294901760
    %2302 = vmatpush1.msra.mxu0 %v2301
    %v2303 = vand.u32 %v247, 4294901760
    %2304 = vmatprep.subr.mxu0 %v2303
    %v2305 = vand.u32 %v246, 4294901760
    %2306 = vmatpush1.msra.mxu0 %v2305
    %v2307 = vand.u32 %v245, 4294901760
    %2308 = vmatprep.subr.mxu0 %v2307
    %v2309 = vand.u32 %v244, 4294901760
    %2310 = vmatpush1.msra.mxu0 %v2309
    %v2311 = vand.u32 %v243, 4294901760
    %2312 = vmatprep.subr.mxu0 %v2311
    %v2313 = vand.u32 %v242, 4294901760
    %2314 = vmatpush1.msra.mxu0 %v2313
    %v2315 = vand.u32 %v241, 4294901760
    %2316 = vmatprep.subr.mxu0 %v2315
    %v2317 = vand.u32 %v240, 4294901760
    %2318 = vmatpush1.msra.mxu0 %v2317
    %v2319 = vand.u32 %v239, 4294901760
    %2320 = vmatprep.subr.mxu0 %v2319
    %v2321 = vand.u32 %v238, 4294901760
    %2322 = vmatpush1.msra.mxu0 %v2321
    %v2323 = vand.u32 %v237, 4294901760
    %2324 = vmatprep.subr.mxu0 %v2323
    %v2325 = vand.u32 %v236, 4294901760
    %2326 = vmatpush1.msra.mxu0 %v2325
    %v2327 = vand.u32 %v235, 4294901760
    %2328 = vmatprep.subr.mxu0 %v2327
    %v2329 = vand.u32 %v234, 4294901760
    %2330 = vmatpush1.msra.mxu0 %v2329
    %v2331 = vand.u32 %v233, 4294901760
    %2332 = vmatprep.subr.mxu0 %v2331
    %v2333 = vand.u32 %v232, 4294901760
    %2334 = vmatpush1.msra.mxu0 %v2333
    %v2335 = vand.u32 %v231, 4294901760
    %2336 = vmatprep.subr.mxu0 %v2335
    %v2337 = vand.u32 %v230, 4294901760
    %2338 = vmatpush1.msra.mxu0 %v2337
    %v2339 = vand.u32 %v229, 4294901760
    %2340 = vmatprep.subr.mxu0 %v2339
    %v2341 = vand.u32 %v228, 4294901760
    %2342 = vmatpush1.msra.mxu0 %v2341
    %v2343 = vand.u32 %v227, 4294901760
    %2344 = vmatprep.subr.mxu0 %v2343
    %v2345 = vand.u32 %v226, 4294901760
    %2346 = vmatpush1.msra.mxu0 %v2345
    %2347 = vmatprep.subr.mxu0 0.0
    %2348 = vmatpush2.msra.mxu0 0.0
    %2349 = vmatprep.subr.mxu0 0.0
    %2350 = vmatpush2.msra.mxu0 0.0
    %2351 = vmatprep.subr.mxu0 0.0
    %2352 = vmatpush2.msra.mxu0 0.0
    %2353 = vmatprep.subr.mxu0 0.0
    %2354 = vmatpush2.msra.mxu0 0.0
    %2355 = vmatprep.subr.mxu0 0.0
    %2356 = vmatpush2.msra.mxu0 0.0
    %2357 = vmatprep.subr.mxu0 0.0
    %2358 = vmatpush2.msra.mxu0 0.0
    %2359 = vmatprep.subr.mxu0 0.0
    %2360 = vmatpush2.msra.mxu0 0.0
    %2361 = vmatprep.subr.mxu0 0.0
    %2362 = vmatpush2.msra.mxu0 0.0
    %2363 = vmatprep.subr.mxu0 0.0
    %2364 = vmatpush2.msra.mxu0 0.0
    %2365 = vmatprep.subr.mxu0 0.0
    %2366 = vmatpush2.msra.mxu0 0.0
    %2367 = vmatprep.subr.mxu0 0.0
    %2368 = vmatpush2.msra.mxu0 0.0
    %2369 = vmatprep.subr.mxu0 0.0
    %2370 = vmatpush2.msra.mxu0 0.0
    %2371 = vmatprep.subr.mxu0 0.0
    %2372 = vmatpush2.msra.mxu0 0.0
    %2373 = vmatprep.subr.mxu0 0.0
    %2374 = vmatpush2.msra.mxu0 0.0
    %2375 = vmatprep.subr.mxu0 0.0
    %2376 = vmatpush2.msra.mxu0 0.0
    %2377 = vmatprep.subr.mxu0 0.0
    %2378 = vmatpush2.msra.mxu0 0.0
    %2379 = vmatprep.mubr.f32.mxu0 0.0
    %v2380 = vand.u32 %v158, 4294901760
    %v2381 = vsub.f32 %v158, %v2380
    %v2382 = vand.u32 %v2381, 4294901760
    %2383 = vmatmul.mubr.f32.gmra.mxu0 %v2382
    %v2384 = vpop.f32.mrf.mxu0
    %v2385 = vadd.f32 %v2255, %v2384
    %v2386 = vpop.f32.mrf.mxu0
    %v2387 = vadd.f32 %v2257, %v2386
    %2388 = vmatprep.mubr.f32.mxu0 0.0
    %v2389 = vand.u32 %v159, 4294901760
    %v2390 = vsub.f32 %v159, %v2389
    %v2391 = vand.u32 %v2390, 4294901760
    %2392 = vmatmul.mubr.f32.gmra.mxu0 %v2391
    %v2393 = vpop.f32.mrf.mxu0
    %v2394 = vadd.f32 %v2263, %v2393
    %v2395 = vpop.f32.mrf.mxu0
    %v2396 = vadd.f32 %v2265, %v2395
    %2397 = vmatprep.mubr.f32.mxu0 0.0
    %v2398 = vand.u32 %v160, 4294901760
    %v2399 = vsub.f32 %v160, %v2398
    %v2400 = vand.u32 %v2399, 4294901760
    %2401 = vmatmul.mubr.f32.gmra.mxu0 %v2400
    %v2402 = vpop.f32.mrf.mxu0
    %v2403 = vadd.f32 %v2271, %v2402
    %v2404 = vpop.f32.mrf.mxu0
    %v2405 = vadd.f32 %v2273, %v2404
    %2406 = vmatprep.mubr.f32.mxu0 0.0
    %v2407 = vand.u32 %v161, 4294901760
    %v2408 = vsub.f32 %v161, %v2407
    %v2409 = vand.u32 %v2408, 4294901760
    %2410 = vmatmul.mubr.f32.gmra.mxu0 %v2409
    %v2411 = vpop.f32.mrf.mxu0
    %v2412 = vadd.f32 %v2279, %v2411
    %v2413 = vpop.f32.mrf.mxu0
    %v2414 = vadd.f32 %v2281, %v2413
    %2415 = vdwg.mxu0
    %v2416 = vand.u32 %v257, 4294901760
    %v2417 = vsub.f32 %v257, %v2416
    %v2418 = vand.u32 %v2417, 4294901760
    %2419 = vmatprep.subr.mxu0 %v2418
    %v2420 = vand.u32 %v256, 4294901760
    %v2421 = vsub.f32 %v256, %v2420
    %v2422 = vand.u32 %v2421, 4294901760
    %2423 = vmatpush1.msra.mxu0 %v2422
    %v2424 = vand.u32 %v255, 4294901760
    %v2425 = vsub.f32 %v255, %v2424
    %v2426 = vand.u32 %v2425, 4294901760
    %2427 = vmatprep.subr.mxu0 %v2426
    %v2428 = vand.u32 %v254, 4294901760
    %v2429 = vsub.f32 %v254, %v2428
    %v2430 = vand.u32 %v2429, 4294901760
    %2431 = vmatpush1.msra.mxu0 %v2430
    %v2432 = vand.u32 %v253, 4294901760
    %v2433 = vsub.f32 %v253, %v2432
    %v2434 = vand.u32 %v2433, 4294901760
    %2435 = vmatprep.subr.mxu0 %v2434
    %v2436 = vand.u32 %v252, 4294901760
    %v2437 = vsub.f32 %v252, %v2436
    %v2438 = vand.u32 %v2437, 4294901760
    %2439 = vmatpush1.msra.mxu0 %v2438
    %v2440 = vand.u32 %v251, 4294901760
    %v2441 = vsub.f32 %v251, %v2440
    %v2442 = vand.u32 %v2441, 4294901760
    %2443 = vmatprep.subr.mxu0 %v2442
    %v2444 = vand.u32 %v250, 4294901760
    %v2445 = vsub.f32 %v250, %v2444
    %v2446 = vand.u32 %v2445, 4294901760
    %2447 = vmatpush1.msra.mxu0 %v2446
    %v2448 = vand.u32 %v249, 4294901760
    %v2449 = vsub.f32 %v249, %v2448
    %v2450 = vand.u32 %v2449, 4294901760
    %2451 = vmatprep.subr.mxu0 %v2450
    %v2452 = vand.u32 %v248, 4294901760
    %v2453 = vsub.f32 %v248, %v2452
    %v2454 = vand.u32 %v2453, 4294901760
    %2455 = vmatpush1.msra.mxu0 %v2454
    %v2456 = vand.u32 %v247, 4294901760
    %v2457 = vsub.f32 %v247, %v2456
    %v2458 = vand.u32 %v2457, 4294901760
    %2459 = vmatprep.subr.mxu0 %v2458
    %v2460 = vand.u32 %v246, 4294901760
    %v2461 = vsub.f32 %v246, %v2460
    %v2462 = vand.u32 %v2461, 4294901760
    %2463 = vmatpush1.msra.mxu0 %v2462
    %v2464 = vand.u32 %v245, 4294901760
    %v2465 = vsub.f32 %v245, %v2464
    %v2466 = vand.u32 %v2465, 4294901760
    %2467 = vmatprep.subr.mxu0 %v2466
    %v2468 = vand.u32 %v244, 4294901760
    %v2469 = vsub.f32 %v244, %v2468
    %v2470 = vand.u32 %v2469, 4294901760
    %2471 = vmatpush1.msra.mxu0 %v2470
    %v2472 = vand.u32 %v243, 4294901760
    %v2473 = vsub.f32 %v243, %v2472
    %v2474 = vand.u32 %v2473, 4294901760
    %2475 = vmatprep.subr.mxu0 %v2474
    %v2476 = vand.u32 %v242, 4294901760
    %v2477 = vsub.f32 %v242, %v2476
    %v2478 = vand.u32 %v2477, 4294901760
    %2479 = vmatpush1.msra.mxu0 %v2478
    %v2480 = vand.u32 %v241, 4294901760
    %v2481 = vsub.f32 %v241, %v2480
    %v2482 = vand.u32 %v2481, 4294901760
    %2483 = vmatprep.subr.mxu0 %v2482
    %v2484 = vand.u32 %v240, 4294901760
    %v2485 = vsub.f32 %v240, %v2484
    %v2486 = vand.u32 %v2485, 4294901760
    %2487 = vmatpush1.msra.mxu0 %v2486
    %v2488 = vand.u32 %v239, 4294901760
    %v2489 = vsub.f32 %v239, %v2488
    %v2490 = vand.u32 %v2489, 4294901760
    %2491 = vmatprep.subr.mxu0 %v2490
    %v2492 = vand.u32 %v238, 4294901760
    %v2493 = vsub.f32 %v238, %v2492
    %v2494 = vand.u32 %v2493, 4294901760
    %2495 = vmatpush1.msra.mxu0 %v2494
    %v2496 = vand.u32 %v237, 4294901760
    %v2497 = vsub.f32 %v237, %v2496
    %v2498 = vand.u32 %v2497, 4294901760
    %2499 = vmatprep.subr.mxu0 %v2498
    %v2500 = vand.u32 %v236, 4294901760
    %v2501 = vsub.f32 %v236, %v2500
    %v2502 = vand.u32 %v2501, 4294901760
    %2503 = vmatpush1.msra.mxu0 %v2502
    %v2504 = vand.u32 %v235, 4294901760
    %v2505 = vsub.f32 %v235, %v2504
    %v2506 = vand.u32 %v2505, 4294901760
    %2507 = vmatprep.subr.mxu0 %v2506
    %v2508 = vand.u32 %v234, 4294901760
    %v2509 = vsub.f32 %v234, %v2508
    %v2510 = vand.u32 %v2509, 4294901760
    %2511 = vmatpush1.msra.mxu0 %v2510
    %v2512 = vand.u32 %v233, 4294901760
    %v2513 = vsub.f32 %v233, %v2512
    %v2514 = vand.u32 %v2513, 4294901760
    %2515 = vmatprep.subr.mxu0 %v2514
    %v2516 = vand.u32 %v232, 4294901760
    %v2517 = vsub.f32 %v232, %v2516
    %v2518 = vand.u32 %v2517, 4294901760
    %2519 = vmatpush1.msra.mxu0 %v2518
    %v2520 = vand.u32 %v231, 4294901760
    %v2521 = vsub.f32 %v231, %v2520
    %v2522 = vand.u32 %v2521, 4294901760
    %2523 = vmatprep.subr.mxu0 %v2522
    %v2524 = vand.u32 %v230, 4294901760
    %v2525 = vsub.f32 %v230, %v2524
    %v2526 = vand.u32 %v2525, 4294901760
    %2527 = vmatpush1.msra.mxu0 %v2526
    %v2528 = vand.u32 %v229, 4294901760
    %v2529 = vsub.f32 %v229, %v2528
    %v2530 = vand.u32 %v2529, 4294901760
    %2531 = vmatprep.subr.mxu0 %v2530
    %v2532 = vand.u32 %v228, 4294901760
    %v2533 = vsub.f32 %v228, %v2532
    %v2534 = vand.u32 %v2533, 4294901760
    %2535 = vmatpush1.msra.mxu0 %v2534
    %v2536 = vand.u32 %v227, 4294901760
    %v2537 = vsub.f32 %v227, %v2536
    %v2538 = vand.u32 %v2537, 4294901760
    %2539 = vmatprep.subr.mxu0 %v2538
    %v2540 = vand.u32 %v226, 4294901760
    %v2541 = vsub.f32 %v226, %v2540
    %v2542 = vand.u32 %v2541, 4294901760
    %2543 = vmatpush1.msra.mxu0 %v2542
    %2544 = vmatprep.subr.mxu0 0.0
    %2545 = vmatpush2.msra.mxu0 0.0
    %2546 = vmatprep.subr.mxu0 0.0
    %2547 = vmatpush2.msra.mxu0 0.0
    %2548 = vmatprep.subr.mxu0 0.0
    %2549 = vmatpush2.msra.mxu0 0.0
    %2550 = vmatprep.subr.mxu0 0.0
    %2551 = vmatpush2.msra.mxu0 0.0
    %2552 = vmatprep.subr.mxu0 0.0
    %2553 = vmatpush2.msra.mxu0 0.0
    %2554 = vmatprep.subr.mxu0 0.0
    %2555 = vmatpush2.msra.mxu0 0.0
    %2556 = vmatprep.subr.mxu0 0.0
    %2557 = vmatpush2.msra.mxu0 0.0
    %2558 = vmatprep.subr.mxu0 0.0
    %2559 = vmatpush2.msra.mxu0 0.0
    %2560 = vmatprep.subr.mxu0 0.0
    %2561 = vmatpush2.msra.mxu0 0.0
    %2562 = vmatprep.subr.mxu0 0.0
    %2563 = vmatpush2.msra.mxu0 0.0
    %2564 = vmatprep.subr.mxu0 0.0
    %2565 = vmatpush2.msra.mxu0 0.0
    %2566 = vmatprep.subr.mxu0 0.0
    %2567 = vmatpush2.msra.mxu0 0.0
    %2568 = vmatprep.subr.mxu0 0.0
    %2569 = vmatpush2.msra.mxu0 0.0
    %2570 = vmatprep.subr.mxu0 0.0
    %2571 = vmatpush2.msra.mxu0 0.0
    %2572 = vmatprep.subr.mxu0 0.0
    %2573 = vmatpush2.msra.mxu0 0.0
    %2574 = vmatprep.subr.mxu0 0.0
    %2575 = vmatpush2.msra.mxu0 0.0
    %2576 = vmatprep.mubr.f32.mxu0 0.0
    %v2577 = vand.u32 %v158, 4294901760
    %2578 = vmatmul.mubr.f32.gmra.mxu0 %v2577
    %v2579 = vpop.f32.mrf.mxu0
    %v2580 = vadd.f32 %v2385, %v2579
    %v2581 = vpop.f32.mrf.mxu0
    %v2582 = vadd.f32 %v2387, %v2581
    %2583 = vmatprep.mubr.f32.mxu0 0.0
    %v2584 = vand.u32 %v159, 4294901760
    %2585 = vmatmul.mubr.f32.gmra.mxu0 %v2584
    %v2586 = vpop.f32.mrf.mxu0
    %v2587 = vadd.f32 %v2394, %v2586
    %v2588 = vpop.f32.mrf.mxu0
    %v2589 = vadd.f32 %v2396, %v2588
    %2590 = vmatprep.mubr.f32.mxu0 0.0
    %v2591 = vand.u32 %v160, 4294901760
    %2592 = vmatmul.mubr.f32.gmra.mxu0 %v2591
    %v2593 = vpop.f32.mrf.mxu0
    %v2594 = vadd.f32 %v2403, %v2593
    %v2595 = vpop.f32.mrf.mxu0
    %v2596 = vadd.f32 %v2405, %v2595
    %2597 = vmatprep.mubr.f32.mxu0 0.0
    %v2598 = vand.u32 %v161, 4294901760
    %2599 = vmatmul.mubr.f32.gmra.mxu0 %v2598
    %v2600 = vpop.f32.mrf.mxu0
    %v2601 = vadd.f32 %v2412, %v2600
    %v2602 = vpop.f32.mrf.mxu0
    %v2603 = vadd.f32 %v2414, %v2602
    %2604 = vdwg.mxu0
    %v2605 = vand.u32 %v257, 4294901760
    %2606 = vmatprep.subr.mxu0 %v2605
    %v2607 = vand.u32 %v256, 4294901760
    %2608 = vmatpush1.msra.mxu0 %v2607
    %v2609 = vand.u32 %v255, 4294901760
    %2610 = vmatprep.subr.mxu0 %v2609
    %v2611 = vand.u32 %v254, 4294901760
    %2612 = vmatpush1.msra.mxu0 %v2611
    %v2613 = vand.u32 %v253, 4294901760
    %2614 = vmatprep.subr.mxu0 %v2613
    %v2615 = vand.u32 %v252, 4294901760
    %2616 = vmatpush1.msra.mxu0 %v2615
    %v2617 = vand.u32 %v251, 4294901760
    %2618 = vmatprep.subr.mxu0 %v2617
    %v2619 = vand.u32 %v250, 4294901760
    %2620 = vmatpush1.msra.mxu0 %v2619
    %v2621 = vand.u32 %v249, 4294901760
    %2622 = vmatprep.subr.mxu0 %v2621
    %v2623 = vand.u32 %v248, 4294901760
    %2624 = vmatpush1.msra.mxu0 %v2623
    %v2625 = vand.u32 %v247, 4294901760
    %2626 = vmatprep.subr.mxu0 %v2625
    %v2627 = vand.u32 %v246, 4294901760
    %2628 = vmatpush1.msra.mxu0 %v2627
    %v2629 = vand.u32 %v245, 4294901760
    %2630 = vmatprep.subr.mxu0 %v2629
    %v2631 = vand.u32 %v244, 4294901760
    %2632 = vmatpush1.msra.mxu0 %v2631
    %v2633 = vand.u32 %v243, 4294901760
    %2634 = vmatprep.subr.mxu0 %v2633
    %v2635 = vand.u32 %v242, 4294901760
    %2636 = vmatpush1.msra.mxu0 %v2635
    %v2637 = vand.u32 %v241, 4294901760
    %2638 = vmatprep.subr.mxu0 %v2637
    %v2639 = vand.u32 %v240, 4294901760
    %2640 = vmatpush1.msra.mxu0 %v2639
    %v2641 = vand.u32 %v239, 4294901760
    %2642 = vmatprep.subr.mxu0 %v2641
    %v2643 = vand.u32 %v238, 4294901760
    %2644 = vmatpush1.msra.mxu0 %v2643
    %v2645 = vand.u32 %v237, 4294901760
    %2646 = vmatprep.subr.mxu0 %v2645
    %v2647 = vand.u32 %v236, 4294901760
    %2648 = vmatpush1.msra.mxu0 %v2647
    %v2649 = vand.u32 %v235, 4294901760
    %2650 = vmatprep.subr.mxu0 %v2649
    %v2651 = vand.u32 %v234, 4294901760
    %2652 = vmatpush1.msra.mxu0 %v2651
    %v2653 = vand.u32 %v233, 4294901760
    %2654 = vmatprep.subr.mxu0 %v2653
    %v2655 = vand.u32 %v232, 4294901760
    %2656 = vmatpush1.msra.mxu0 %v2655
    %v2657 = vand.u32 %v231, 4294901760
    %2658 = vmatprep.subr.mxu0 %v2657
    %v2659 = vand.u32 %v230, 4294901760
    %2660 = vmatpush1.msra.mxu0 %v2659
    %v2661 = vand.u32 %v229, 4294901760
    %2662 = vmatprep.subr.mxu0 %v2661
    %v2663 = vand.u32 %v228, 4294901760
    %2664 = vmatpush1.msra.mxu0 %v2663
    %v2665 = vand.u32 %v227, 4294901760
    %2666 = vmatprep.subr.mxu0 %v2665
    %v2667 = vand.u32 %v226, 4294901760
    %2668 = vmatpush1.msra.mxu0 %v2667
    %2669 = vmatprep.subr.mxu0 0.0
    %2670 = vmatpush2.msra.mxu0 0.0
    %2671 = vmatprep.subr.mxu0 0.0
    %2672 = vmatpush2.msra.mxu0 0.0
    %2673 = vmatprep.subr.mxu0 0.0
    %2674 = vmatpush2.msra.mxu0 0.0
    %2675 = vmatprep.subr.mxu0 0.0
    %2676 = vmatpush2.msra.mxu0 0.0
    %2677 = vmatprep.subr.mxu0 0.0
    %2678 = vmatpush2.msra.mxu0 0.0
    %2679 = vmatprep.subr.mxu0 0.0
    %2680 = vmatpush2.msra.mxu0 0.0
    %2681 = vmatprep.subr.mxu0 0.0
    %2682 = vmatpush2.msra.mxu0 0.0
    %2683 = vmatprep.subr.mxu0 0.0
    %2684 = vmatpush2.msra.mxu0 0.0
    %2685 = vmatprep.subr.mxu0 0.0
    %2686 = vmatpush2.msra.mxu0 0.0
    %2687 = vmatprep.subr.mxu0 0.0
    %2688 = vmatpush2.msra.mxu0 0.0
    %2689 = vmatprep.subr.mxu0 0.0
    %2690 = vmatpush2.msra.mxu0 0.0
    %2691 = vmatprep.subr.mxu0 0.0
    %2692 = vmatpush2.msra.mxu0 0.0
    %2693 = vmatprep.subr.mxu0 0.0
    %2694 = vmatpush2.msra.mxu0 0.0
    %2695 = vmatprep.subr.mxu0 0.0
    %2696 = vmatpush2.msra.mxu0 0.0
    %2697 = vmatprep.subr.mxu0 0.0
    %2698 = vmatpush2.msra.mxu0 0.0
    %2699 = vmatprep.subr.mxu0 0.0
    %2700 = vmatpush2.msra.mxu0 0.0
    %2701 = vmatprep.mubr.f32.mxu0 0.0
    %v2702 = vand.u32 %v158, 4294901760
    %2703 = vmatmul.mubr.f32.gmra.mxu0 %v2702
    %v2704 = vpop.f32.mrf.mxu0
    %v2705 = vadd.f32 %v2580, %v2704
    %v2706 = vpop.f32.mrf.mxu0
    %v2707 = vadd.f32 %v2582, %v2706
    %2708 = vmatprep.mubr.f32.mxu0 0.0
    %v2709 = vand.u32 %v159, 4294901760
    %2710 = vmatmul.mubr.f32.gmra.mxu0 %v2709
    %v2711 = vpop.f32.mrf.mxu0
    %v2712 = vadd.f32 %v2587, %v2711
    %v2713 = vpop.f32.mrf.mxu0
    %v2714 = vadd.f32 %v2589, %v2713
    %2715 = vmatprep.mubr.f32.mxu0 0.0
    %v2716 = vand.u32 %v160, 4294901760
    %2717 = vmatmul.mubr.f32.gmra.mxu0 %v2716
    %v2718 = vpop.f32.mrf.mxu0
    %v2719 = vadd.f32 %v2594, %v2718
    %v2720 = vpop.f32.mrf.mxu0
    %v2721 = vadd.f32 %v2596, %v2720
    %2722 = vmatprep.mubr.f32.mxu0 0.0
    %v2723 = vand.u32 %v161, 4294901760
    %2724 = vmatmul.mubr.f32.gmra.mxu0 %v2723
    %v2725 = vpop.f32.mrf.mxu0
    %v2726 = vadd.f32 %v2601, %v2725
    %v2727 = vpop.f32.mrf.mxu0
    %v2728 = vadd.f32 %v2603, %v2727
    %2729 = vdwg.mxu0
    %v2730 = vlaneseq
    %v2731 = vshrl.u32 %v2730, 7
    %v2732 = vsub.s32 0, %v2731
    %v2733 = vrot.slane %v54, %v2732
    %v2734 = vadd.f32 %v2705, %v2733
    %v2735 = vadd.f32 %v2712, %v2733
    %v2736 = vadd.f32 %v2719, %v2733
    %v2737 = vadd.f32 %v2726, %v2733
    %v2738 = vlaneseq
    %v2739 = vshrl.u32 %v2738, 7
    %v2740 = vsub.s32 2, %v2739
    %v2741 = vrot.slane %v54, %v2740
    %v2742 = vadd.f32 %v2707, %v2741
    %v2743 = vadd.f32 %v2714, %v2741
    %v2744 = vadd.f32 %v2721, %v2741
    %v2745 = vadd.f32 %v2728, %v2741
    %v2746 = vadd.f32 %v2734, %v2735
    %v2747 = vadd.f32 %v2746, %v2736
    %v2748 = vadd.f32 %v2747, %v2737
    %v2749 = vrot.slane %v2748, 4
    %v2750 = vadd.f32 %v2748, %v2749
    %v2751 = vrot.slane %v2750, 2
    %v2752 = vadd.f32 %v2750, %v2751
    %v2753 = vrot.slane %v2752, 1
    %v2754 = vadd.f32 %v2752, %v2753
    %v2755 = vmul.f32 %v2734, %v2734
    %v2756 = vmul.f32 %v2735, %v2735
    %v2757 = vmul.f32 %v2736, %v2736
    %v2758 = vmul.f32 %v2737, %v2737
    %v2759 = vadd.f32 %v2755, %v2756
    %v2760 = vadd.f32 %v2759, %v2757
    %v2761 = vadd.f32 %v2760, %v2758
    %v2762 = vrot.slane %v2761, 4
    %v2763 = vadd.f32 %v2761, %v2762
    %v2764 = vrot.slane %v2763, 2
    %v2765 = vadd.f32 %v2763, %v2764
    %v2766 = vrot.slane %v2765, 1
    %v2767 = vadd.f32 %v2765, %v2766
    %v2768 = vsel %vm128, %v2754, %v2767
    %2769 = vmatprep.subr.mxu0 0.0
    %v2770 = vand.u32 %v53, 4294901760
    %2771 = vmatpush1.msra.mxu0 %v2770
    %2772 = vmatprep.subr.mxu0 0.0
    %v2773 = vand.u32 %v52, 4294901760
    %2774 = vmatpush1.msra.mxu0 %v2773
    %2775 = vmatprep.subr.mxu0 0.0
    %v2776 = vand.u32 %v51, 4294901760
    %2777 = vmatpush1.msra.mxu0 %v2776
    %2778 = vmatprep.subr.mxu0 0.0
    %v2779 = vand.u32 %v50, 4294901760
    %2780 = vmatpush1.msra.mxu0 %v2779
    %2781 = vmatprep.subr.mxu0 0.0
    %v2782 = vand.u32 %v49, 4294901760
    %2783 = vmatpush1.msra.mxu0 %v2782
    %2784 = vmatprep.subr.mxu0 0.0
    %v2785 = vand.u32 %v48, 4294901760
    %2786 = vmatpush1.msra.mxu0 %v2785
    %2787 = vmatprep.subr.mxu0 0.0
    %v2788 = vand.u32 %v47, 4294901760
    %2789 = vmatpush1.msra.mxu0 %v2788
    %2790 = vmatprep.subr.mxu0 0.0
    %v2791 = vand.u32 %v46, 4294901760
    %2792 = vmatpush1.msra.mxu0 %v2791
    %2793 = vmatprep.subr.mxu0 0.0
    %v2794 = vand.u32 %v45, 4294901760
    %2795 = vmatpush1.msra.mxu0 %v2794
    %2796 = vmatprep.subr.mxu0 0.0
    %v2797 = vand.u32 %v44, 4294901760
    %2798 = vmatpush1.msra.mxu0 %v2797
    %2799 = vmatprep.subr.mxu0 0.0
    %v2800 = vand.u32 %v43, 4294901760
    %2801 = vmatpush1.msra.mxu0 %v2800
    %2802 = vmatprep.subr.mxu0 0.0
    %v2803 = vand.u32 %v42, 4294901760
    %2804 = vmatpush1.msra.mxu0 %v2803
    %2805 = vmatprep.subr.mxu0 0.0
    %v2806 = vand.u32 %v41, 4294901760
    %2807 = vmatpush1.msra.mxu0 %v2806
    %2808 = vmatprep.subr.mxu0 0.0
    %v2809 = vand.u32 %v40, 4294901760
    %2810 = vmatpush1.msra.mxu0 %v2809
    %2811 = vmatprep.subr.mxu0 0.0
    %v2812 = vand.u32 %v39, 4294901760
    %2813 = vmatpush1.msra.mxu0 %v2812
    %2814 = vmatprep.subr.mxu0 0.0
    %v2815 = vand.u32 %v38, 4294901760
    %2816 = vmatpush1.msra.mxu0 %v2815
    %2817 = vmatprep.subr.mxu0 0.0
    %2818 = vmatpush2.msra.mxu0 0.0
    %2819 = vmatprep.subr.mxu0 0.0
    %2820 = vmatpush2.msra.mxu0 0.0
    %2821 = vmatprep.subr.mxu0 0.0
    %2822 = vmatpush2.msra.mxu0 0.0
    %2823 = vmatprep.subr.mxu0 0.0
    %2824 = vmatpush2.msra.mxu0 0.0
    %2825 = vmatprep.subr.mxu0 0.0
    %2826 = vmatpush2.msra.mxu0 0.0
    %2827 = vmatprep.subr.mxu0 0.0
    %2828 = vmatpush2.msra.mxu0 0.0
    %2829 = vmatprep.subr.mxu0 0.0
    %2830 = vmatpush2.msra.mxu0 0.0
    %2831 = vmatprep.subr.mxu0 0.0
    %2832 = vmatpush2.msra.mxu0 0.0
    %2833 = vmatprep.subr.mxu0 0.0
    %2834 = vmatpush2.msra.mxu0 0.0
    %2835 = vmatprep.subr.mxu0 0.0
    %2836 = vmatpush2.msra.mxu0 0.0
    %2837 = vmatprep.subr.mxu0 0.0
    %2838 = vmatpush2.msra.mxu0 0.0
    %2839 = vmatprep.subr.mxu0 0.0
    %2840 = vmatpush2.msra.mxu0 0.0
    %2841 = vmatprep.subr.mxu0 0.0
    %2842 = vmatpush2.msra.mxu0 0.0
    %2843 = vmatprep.subr.mxu0 0.0
    %2844 = vmatpush2.msra.mxu0 0.0
    %2845 = vmatprep.subr.mxu0 0.0
    %2846 = vmatpush2.msra.mxu0 0.0
    %2847 = vmatprep.subr.mxu0 0.0
    %2848 = vmatpush2.msra.mxu0 0.0
    %2849 = vmatprep.mubr.f32.mxu0 0.0
    %v2850 = vand.u32 %v2768, 4294901760
    %v2851 = vsub.f32 %v2768, %v2850
    %v2852 = vand.u32 %v2851, 4294901760
    %v2853 = vsub.f32 %v2851, %v2852
    %v2854 = vand.u32 %v2853, 4294901760
    %2855 = vmatmul.mubr.f32.gmra.mxu0 %v2854
    %v2856 = vpop.f32.mrf.mxu0
    %v2857 = vadd.f32 0.0, %v2856
    %v2858 = vpop.f32.mrf.mxu0
    %2859 = vdwg.mxu0
    %2860 = vmatprep.subr.mxu0 0.0
    %v2861 = vand.u32 %v53, 4294901760
    %v2862 = vsub.f32 %v53, %v2861
    %v2863 = vand.u32 %v2862, 4294901760
    %v2864 = vsub.f32 %v2862, %v2863
    %v2865 = vand.u32 %v2864, 4294901760
    %2866 = vmatpush1.msra.mxu0 %v2865
    %2867 = vmatprep.subr.mxu0 0.0
    %v2868 = vand.u32 %v52, 4294901760
    %v2869 = vsub.f32 %v52, %v2868
    %v2870 = vand.u32 %v2869, 4294901760
    %v2871 = vsub.f32 %v2869, %v2870
    %v2872 = vand.u32 %v2871, 4294901760
    %2873 = vmatpush1.msra.mxu0 %v2872
    %2874 = vmatprep.subr.mxu0 0.0
    %v2875 = vand.u32 %v51, 4294901760
    %v2876 = vsub.f32 %v51, %v2875
    %v2877 = vand.u32 %v2876, 4294901760
    %v2878 = vsub.f32 %v2876, %v2877
    %v2879 = vand.u32 %v2878, 4294901760
    %2880 = vmatpush1.msra.mxu0 %v2879
    %2881 = vmatprep.subr.mxu0 0.0
    %v2882 = vand.u32 %v50, 4294901760
    %v2883 = vsub.f32 %v50, %v2882
    %v2884 = vand.u32 %v2883, 4294901760
    %v2885 = vsub.f32 %v2883, %v2884
    %v2886 = vand.u32 %v2885, 4294901760
    %2887 = vmatpush1.msra.mxu0 %v2886
    %2888 = vmatprep.subr.mxu0 0.0
    %v2889 = vand.u32 %v49, 4294901760
    %v2890 = vsub.f32 %v49, %v2889
    %v2891 = vand.u32 %v2890, 4294901760
    %v2892 = vsub.f32 %v2890, %v2891
    %v2893 = vand.u32 %v2892, 4294901760
    %2894 = vmatpush1.msra.mxu0 %v2893
    %2895 = vmatprep.subr.mxu0 0.0
    %v2896 = vand.u32 %v48, 4294901760
    %v2897 = vsub.f32 %v48, %v2896
    %v2898 = vand.u32 %v2897, 4294901760
    %v2899 = vsub.f32 %v2897, %v2898
    %v2900 = vand.u32 %v2899, 4294901760
    %2901 = vmatpush1.msra.mxu0 %v2900
    %2902 = vmatprep.subr.mxu0 0.0
    %v2903 = vand.u32 %v47, 4294901760
    %v2904 = vsub.f32 %v47, %v2903
    %v2905 = vand.u32 %v2904, 4294901760
    %v2906 = vsub.f32 %v2904, %v2905
    %v2907 = vand.u32 %v2906, 4294901760
    %2908 = vmatpush1.msra.mxu0 %v2907
    %2909 = vmatprep.subr.mxu0 0.0
    %v2910 = vand.u32 %v46, 4294901760
    %v2911 = vsub.f32 %v46, %v2910
    %v2912 = vand.u32 %v2911, 4294901760
    %v2913 = vsub.f32 %v2911, %v2912
    %v2914 = vand.u32 %v2913, 4294901760
    %2915 = vmatpush1.msra.mxu0 %v2914
    %2916 = vmatprep.subr.mxu0 0.0
    %v2917 = vand.u32 %v45, 4294901760
    %v2918 = vsub.f32 %v45, %v2917
    %v2919 = vand.u32 %v2918, 4294901760
    %v2920 = vsub.f32 %v2918, %v2919
    %v2921 = vand.u32 %v2920, 4294901760
    %2922 = vmatpush1.msra.mxu0 %v2921
    %2923 = vmatprep.subr.mxu0 0.0
    %v2924 = vand.u32 %v44, 4294901760
    %v2925 = vsub.f32 %v44, %v2924
    %v2926 = vand.u32 %v2925, 4294901760
    %v2927 = vsub.f32 %v2925, %v2926
    %v2928 = vand.u32 %v2927, 4294901760
    %2929 = vmatpush1.msra.mxu0 %v2928
    %2930 = vmatprep.subr.mxu0 0.0
    %v2931 = vand.u32 %v43, 4294901760
    %v2932 = vsub.f32 %v43, %v2931
    %v2933 = vand.u32 %v2932, 4294901760
    %v2934 = vsub.f32 %v2932, %v2933
    %v2935 = vand.u32 %v2934, 4294901760
    %2936 = vmatpush1.msra.mxu0 %v2935
    %2937 = vmatprep.subr.mxu0 0.0
    %v2938 = vand.u32 %v42, 4294901760
    %v2939 = vsub.f32 %v42, %v2938
    %v2940 = vand.u32 %v2939, 4294901760
    %v2941 = vsub.f32 %v2939, %v2940
    %v2942 = vand.u32 %v2941, 4294901760
    %2943 = vmatpush1.msra.mxu0 %v2942
    %2944 = vmatprep.subr.mxu0 0.0
    %v2945 = vand.u32 %v41, 4294901760
    %v2946 = vsub.f32 %v41, %v2945
    %v2947 = vand.u32 %v2946, 4294901760
    %v2948 = vsub.f32 %v2946, %v2947
    %v2949 = vand.u32 %v2948, 4294901760
    %2950 = vmatpush1.msra.mxu0 %v2949
    %2951 = vmatprep.subr.mxu0 0.0
    %v2952 = vand.u32 %v40, 4294901760
    %v2953 = vsub.f32 %v40, %v2952
    %v2954 = vand.u32 %v2953, 4294901760
    %v2955 = vsub.f32 %v2953, %v2954
    %v2956 = vand.u32 %v2955, 4294901760
    %2957 = vmatpush1.msra.mxu0 %v2956
    %2958 = vmatprep.subr.mxu0 0.0
    %v2959 = vand.u32 %v39, 4294901760
    %v2960 = vsub.f32 %v39, %v2959
    %v2961 = vand.u32 %v2960, 4294901760
    %v2962 = vsub.f32 %v2960, %v2961
    %v2963 = vand.u32 %v2962, 4294901760
    %2964 = vmatpush1.msra.mxu0 %v2963
    %2965 = vmatprep.subr.mxu0 0.0
    %v2966 = vand.u32 %v38, 4294901760
    %v2967 = vsub.f32 %v38, %v2966
    %v2968 = vand.u32 %v2967, 4294901760
    %v2969 = vsub.f32 %v2967, %v2968
    %v2970 = vand.u32 %v2969, 4294901760
    %2971 = vmatpush1.msra.mxu0 %v2970
    %2972 = vmatprep.subr.mxu0 0.0
    %2973 = vmatpush2.msra.mxu0 0.0
    %2974 = vmatprep.subr.mxu0 0.0
    %2975 = vmatpush2.msra.mxu0 0.0
    %2976 = vmatprep.subr.mxu0 0.0
    %2977 = vmatpush2.msra.mxu0 0.0
    %2978 = vmatprep.subr.mxu0 0.0
    %2979 = vmatpush2.msra.mxu0 0.0
    %2980 = vmatprep.subr.mxu0 0.0
    %2981 = vmatpush2.msra.mxu0 0.0
    %2982 = vmatprep.subr.mxu0 0.0
    %2983 = vmatpush2.msra.mxu0 0.0
    %2984 = vmatprep.subr.mxu0 0.0
    %2985 = vmatpush2.msra.mxu0 0.0
    %2986 = vmatprep.subr.mxu0 0.0
    %2987 = vmatpush2.msra.mxu0 0.0
    %2988 = vmatprep.subr.mxu0 0.0
    %2989 = vmatpush2.msra.mxu0 0.0
    %2990 = vmatprep.subr.mxu0 0.0
    %2991 = vmatpush2.msra.mxu0 0.0
    %2992 = vmatprep.subr.mxu0 0.0
    %2993 = vmatpush2.msra.mxu0 0.0
    %2994 = vmatprep.subr.mxu0 0.0
    %2995 = vmatpush2.msra.mxu0 0.0
    %2996 = vmatprep.subr.mxu0 0.0
    %2997 = vmatpush2.msra.mxu0 0.0
    %2998 = vmatprep.subr.mxu0 0.0
    %2999 = vmatpush2.msra.mxu0 0.0
    %3000 = vmatprep.subr.mxu0 0.0
    %3001 = vmatpush2.msra.mxu0 0.0
    %3002 = vmatprep.subr.mxu0 0.0
    %3003 = vmatpush2.msra.mxu0 0.0
    %3004 = vmatprep.mubr.f32.mxu0 0.0
    %v3005 = vand.u32 %v2768, 4294901760
    %3006 = vmatmul.mubr.f32.gmra.mxu0 %v3005
    %v3007 = vpop.f32.mrf.mxu0
    %v3008 = vadd.f32 %v2857, %v3007
    %v3009 = vpop.f32.mrf.mxu0
    %3010 = vdwg.mxu0
    %3011 = vmatprep.subr.mxu0 0.0
    %v3012 = vand.u32 %v53, 4294901760
    %v3013 = vsub.f32 %v53, %v3012
    %3014 = vmatpush1.msra.mxu0 %v3013
    %3015 = vmatprep.subr.mxu0 0.0
    %v3016 = vand.u32 %v52, 4294901760
    %v3017 = vsub.f32 %v52, %v3016
    %3018 = vmatpush1.msra.mxu0 %v3017
    %3019 = vmatprep.subr.mxu0 0.0
    %v3020 = vand.u32 %v51, 4294901760
    %v3021 = vsub.f32 %v51, %v3020
    %3022 = vmatpush1.msra.mxu0 %v3021
    %3023 = vmatprep.subr.mxu0 0.0
    %v3024 = vand.u32 %v50, 4294901760
    %v3025 = vsub.f32 %v50, %v3024
    %3026 = vmatpush1.msra.mxu0 %v3025
    %3027 = vmatprep.subr.mxu0 0.0
    %v3028 = vand.u32 %v49, 4294901760
    %v3029 = vsub.f32 %v49, %v3028
    %3030 = vmatpush1.msra.mxu0 %v3029
    %3031 = vmatprep.subr.mxu0 0.0
    %v3032 = vand.u32 %v48, 4294901760
    %v3033 = vsub.f32 %v48, %v3032
    %3034 = vmatpush1.msra.mxu0 %v3033
    %3035 = vmatprep.subr.mxu0 0.0
    %v3036 = vand.u32 %v47, 4294901760
    %v3037 = vsub.f32 %v47, %v3036
    %3038 = vmatpush1.msra.mxu0 %v3037
    %3039 = vmatprep.subr.mxu0 0.0
    %v3040 = vand.u32 %v46, 4294901760
    %v3041 = vsub.f32 %v46, %v3040
    %3042 = vmatpush1.msra.mxu0 %v3041
    %3043 = vmatprep.subr.mxu0 0.0
    %v3044 = vand.u32 %v45, 4294901760
    %v3045 = vsub.f32 %v45, %v3044
    %3046 = vmatpush1.msra.mxu0 %v3045
    %3047 = vmatprep.subr.mxu0 0.0
    %v3048 = vand.u32 %v44, 4294901760
    %v3049 = vsub.f32 %v44, %v3048
    %3050 = vmatpush1.msra.mxu0 %v3049
    %3051 = vmatprep.subr.mxu0 0.0
    %v3052 = vand.u32 %v43, 4294901760
    %v3053 = vsub.f32 %v43, %v3052
    %3054 = vmatpush1.msra.mxu0 %v3053
    %3055 = vmatprep.subr.mxu0 0.0
    %v3056 = vand.u32 %v42, 4294901760
    %v3057 = vsub.f32 %v42, %v3056
    %3058 = vmatpush1.msra.mxu0 %v3057
    %3059 = vmatprep.subr.mxu0 0.0
    %v3060 = vand.u32 %v41, 4294901760
    %v3061 = vsub.f32 %v41, %v3060
    %3062 = vmatpush1.msra.mxu0 %v3061
    %3063 = vmatprep.subr.mxu0 0.0
    %v3064 = vand.u32 %v40, 4294901760
    %v3065 = vsub.f32 %v40, %v3064
    %3066 = vmatpush1.msra.mxu0 %v3065
    %3067 = vmatprep.subr.mxu0 0.0
    %v3068 = vand.u32 %v39, 4294901760
    %v3069 = vsub.f32 %v39, %v3068
    %3070 = vmatpush1.msra.mxu0 %v3069
    %3071 = vmatprep.subr.mxu0 0.0
    %v3072 = vand.u32 %v38, 4294901760
    %v3073 = vsub.f32 %v38, %v3072
    %3074 = vmatpush1.msra.mxu0 %v3073
    %3075 = vmatprep.subr.mxu0 0.0
    %3076 = vmatpush2.msra.mxu0 0.0
    %3077 = vmatprep.subr.mxu0 0.0
    %3078 = vmatpush2.msra.mxu0 0.0
    %3079 = vmatprep.subr.mxu0 0.0
    %3080 = vmatpush2.msra.mxu0 0.0
    %3081 = vmatprep.subr.mxu0 0.0
    %3082 = vmatpush2.msra.mxu0 0.0
    %3083 = vmatprep.subr.mxu0 0.0
    %3084 = vmatpush2.msra.mxu0 0.0
    %3085 = vmatprep.subr.mxu0 0.0
    %3086 = vmatpush2.msra.mxu0 0.0
    %3087 = vmatprep.subr.mxu0 0.0
    %3088 = vmatpush2.msra.mxu0 0.0
    %3089 = vmatprep.subr.mxu0 0.0
    %3090 = vmatpush2.msra.mxu0 0.0
    %3091 = vmatprep.subr.mxu0 0.0
    %3092 = vmatpush2.msra.mxu0 0.0
    %3093 = vmatprep.subr.mxu0 0.0
    %3094 = vmatpush2.msra.mxu0 0.0
    %3095 = vmatprep.subr.mxu0 0.0
    %3096 = vmatpush2.msra.mxu0 0.0
    %3097 = vmatprep.subr.mxu0 0.0
    %3098 = vmatpush2.msra.mxu0 0.0
    %3099 = vmatprep.subr.mxu0 0.0
    %3100 = vmatpush2.msra.mxu0 0.0
    %3101 = vmatprep.subr.mxu0 0.0
    %3102 = vmatpush2.msra.mxu0 0.0
    %3103 = vmatprep.subr.mxu0 0.0
    %3104 = vmatpush2.msra.mxu0 0.0
    %3105 = vmatprep.subr.mxu0 0.0
    %3106 = vmatpush2.msra.mxu0 0.0
    %3107 = vmatprep.mubr.f32.mxu0 0.0
    %v3108 = vand.u32 %v2768, 4294901760
    %v3109 = vsub.f32 %v2768, %v3108
    %3110 = vmatmul.mubr.f32.gmra.mxu0 %v3109
    %v3111 = vpop.f32.mrf.mxu0
    %v3112 = vadd.f32 %v3008, %v3111
    %v3113 = vpop.f32.mrf.mxu0
    %3114 = vdwg.mxu0
    %3115 = vmatprep.subr.mxu0 0.0
    %v3116 = vand.u32 %v53, 4294901760
    %3117 = vmatpush1.msra.mxu0 %v3116
    %3118 = vmatprep.subr.mxu0 0.0
    %v3119 = vand.u32 %v52, 4294901760
    %3120 = vmatpush1.msra.mxu0 %v3119
    %3121 = vmatprep.subr.mxu0 0.0
    %v3122 = vand.u32 %v51, 4294901760
    %3123 = vmatpush1.msra.mxu0 %v3122
    %3124 = vmatprep.subr.mxu0 0.0
    %v3125 = vand.u32 %v50, 4294901760
    %3126 = vmatpush1.msra.mxu0 %v3125
    %3127 = vmatprep.subr.mxu0 0.0
    %v3128 = vand.u32 %v49, 4294901760
    %3129 = vmatpush1.msra.mxu0 %v3128
    %3130 = vmatprep.subr.mxu0 0.0
    %v3131 = vand.u32 %v48, 4294901760
    %3132 = vmatpush1.msra.mxu0 %v3131
    %3133 = vmatprep.subr.mxu0 0.0
    %v3134 = vand.u32 %v47, 4294901760
    %3135 = vmatpush1.msra.mxu0 %v3134
    %3136 = vmatprep.subr.mxu0 0.0
    %v3137 = vand.u32 %v46, 4294901760
    %3138 = vmatpush1.msra.mxu0 %v3137
    %3139 = vmatprep.subr.mxu0 0.0
    %v3140 = vand.u32 %v45, 4294901760
    %3141 = vmatpush1.msra.mxu0 %v3140
    %3142 = vmatprep.subr.mxu0 0.0
    %v3143 = vand.u32 %v44, 4294901760
    %3144 = vmatpush1.msra.mxu0 %v3143
    %3145 = vmatprep.subr.mxu0 0.0
    %v3146 = vand.u32 %v43, 4294901760
    %3147 = vmatpush1.msra.mxu0 %v3146
    %3148 = vmatprep.subr.mxu0 0.0
    %v3149 = vand.u32 %v42, 4294901760
    %3150 = vmatpush1.msra.mxu0 %v3149
    %3151 = vmatprep.subr.mxu0 0.0
    %v3152 = vand.u32 %v41, 4294901760
    %3153 = vmatpush1.msra.mxu0 %v3152
    %3154 = vmatprep.subr.mxu0 0.0
    %v3155 = vand.u32 %v40, 4294901760
    %3156 = vmatpush1.msra.mxu0 %v3155
    %3157 = vmatprep.subr.mxu0 0.0
    %v3158 = vand.u32 %v39, 4294901760
    %3159 = vmatpush1.msra.mxu0 %v3158
    %3160 = vmatprep.subr.mxu0 0.0
    %v3161 = vand.u32 %v38, 4294901760
    %3162 = vmatpush1.msra.mxu0 %v3161
    %3163 = vmatprep.subr.mxu0 0.0
    %3164 = vmatpush2.msra.mxu0 0.0
    %3165 = vmatprep.subr.mxu0 0.0
    %3166 = vmatpush2.msra.mxu0 0.0
    %3167 = vmatprep.subr.mxu0 0.0
    %3168 = vmatpush2.msra.mxu0 0.0
    %3169 = vmatprep.subr.mxu0 0.0
    %3170 = vmatpush2.msra.mxu0 0.0
    %3171 = vmatprep.subr.mxu0 0.0
    %3172 = vmatpush2.msra.mxu0 0.0
    %3173 = vmatprep.subr.mxu0 0.0
    %3174 = vmatpush2.msra.mxu0 0.0
    %3175 = vmatprep.subr.mxu0 0.0
    %3176 = vmatpush2.msra.mxu0 0.0
    %3177 = vmatprep.subr.mxu0 0.0
    %3178 = vmatpush2.msra.mxu0 0.0
    %3179 = vmatprep.subr.mxu0 0.0
    %3180 = vmatpush2.msra.mxu0 0.0
    %3181 = vmatprep.subr.mxu0 0.0
    %3182 = vmatpush2.msra.mxu0 0.0
    %3183 = vmatprep.subr.mxu0 0.0
    %3184 = vmatpush2.msra.mxu0 0.0
    %3185 = vmatprep.subr.mxu0 0.0
    %3186 = vmatpush2.msra.mxu0 0.0
    %3187 = vmatprep.subr.mxu0 0.0
    %3188 = vmatpush2.msra.mxu0 0.0
    %3189 = vmatprep.subr.mxu0 0.0
    %3190 = vmatpush2.msra.mxu0 0.0
    %3191 = vmatprep.subr.mxu0 0.0
    %3192 = vmatpush2.msra.mxu0 0.0
    %3193 = vmatprep.subr.mxu0 0.0
    %3194 = vmatpush2.msra.mxu0 0.0
    %3195 = vmatprep.mubr.f32.mxu0 0.0
    %v3196 = vand.u32 %v2768, 4294901760
    %v3197 = vsub.f32 %v2768, %v3196
    %v3198 = vand.u32 %v3197, 4294901760
    %3199 = vmatmul.mubr.f32.gmra.mxu0 %v3198
    %v3200 = vpop.f32.mrf.mxu0
    %v3201 = vadd.f32 %v3112, %v3200
    %v3202 = vpop.f32.mrf.mxu0
    %3203 = vdwg.mxu0
    %3204 = vmatprep.subr.mxu0 0.0
    %v3205 = vand.u32 %v53, 4294901760
    %v3206 = vsub.f32 %v53, %v3205
    %v3207 = vand.u32 %v3206, 4294901760
    %3208 = vmatpush1.msra.mxu0 %v3207
    %3209 = vmatprep.subr.mxu0 0.0
    %v3210 = vand.u32 %v52, 4294901760
    %v3211 = vsub.f32 %v52, %v3210
    %v3212 = vand.u32 %v3211, 4294901760
    %3213 = vmatpush1.msra.mxu0 %v3212
    %3214 = vmatprep.subr.mxu0 0.0
    %v3215 = vand.u32 %v51, 4294901760
    %v3216 = vsub.f32 %v51, %v3215
    %v3217 = vand.u32 %v3216, 4294901760
    %3218 = vmatpush1.msra.mxu0 %v3217
    %3219 = vmatprep.subr.mxu0 0.0
    %v3220 = vand.u32 %v50, 4294901760
    %v3221 = vsub.f32 %v50, %v3220
    %v3222 = vand.u32 %v3221, 4294901760
    %3223 = vmatpush1.msra.mxu0 %v3222
    %3224 = vmatprep.subr.mxu0 0.0
    %v3225 = vand.u32 %v49, 4294901760
    %v3226 = vsub.f32 %v49, %v3225
    %v3227 = vand.u32 %v3226, 4294901760
    %3228 = vmatpush1.msra.mxu0 %v3227
    %3229 = vmatprep.subr.mxu0 0.0
    %v3230 = vand.u32 %v48, 4294901760
    %v3231 = vsub.f32 %v48, %v3230
    %v3232 = vand.u32 %v3231, 4294901760
    %3233 = vmatpush1.msra.mxu0 %v3232
    %3234 = vmatprep.subr.mxu0 0.0
    %v3235 = vand.u32 %v47, 4294901760
    %v3236 = vsub.f32 %v47, %v3235
    %v3237 = vand.u32 %v3236, 4294901760
    %3238 = vmatpush1.msra.mxu0 %v3237
    %3239 = vmatprep.subr.mxu0 0.0
    %v3240 = vand.u32 %v46, 4294901760
    %v3241 = vsub.f32 %v46, %v3240
    %v3242 = vand.u32 %v3241, 4294901760
    %3243 = vmatpush1.msra.mxu0 %v3242
    %3244 = vmatprep.subr.mxu0 0.0
    %v3245 = vand.u32 %v45, 4294901760
    %v3246 = vsub.f32 %v45, %v3245
    %v3247 = vand.u32 %v3246, 4294901760
    %3248 = vmatpush1.msra.mxu0 %v3247
    %3249 = vmatprep.subr.mxu0 0.0
    %v3250 = vand.u32 %v44, 4294901760
    %v3251 = vsub.f32 %v44, %v3250
    %v3252 = vand.u32 %v3251, 4294901760
    %3253 = vmatpush1.msra.mxu0 %v3252
    %3254 = vmatprep.subr.mxu0 0.0
    %v3255 = vand.u32 %v43, 4294901760
    %v3256 = vsub.f32 %v43, %v3255
    %v3257 = vand.u32 %v3256, 4294901760
    %3258 = vmatpush1.msra.mxu0 %v3257
    %3259 = vmatprep.subr.mxu0 0.0
    %v3260 = vand.u32 %v42, 4294901760
    %v3261 = vsub.f32 %v42, %v3260
    %v3262 = vand.u32 %v3261, 4294901760
    %3263 = vmatpush1.msra.mxu0 %v3262
    %3264 = vmatprep.subr.mxu0 0.0
    %v3265 = vand.u32 %v41, 4294901760
    %v3266 = vsub.f32 %v41, %v3265
    %v3267 = vand.u32 %v3266, 4294901760
    %3268 = vmatpush1.msra.mxu0 %v3267
    %3269 = vmatprep.subr.mxu0 0.0
    %v3270 = vand.u32 %v40, 4294901760
    %v3271 = vsub.f32 %v40, %v3270
    %v3272 = vand.u32 %v3271, 4294901760
    %3273 = vmatpush1.msra.mxu0 %v3272
    %3274 = vmatprep.subr.mxu0 0.0
    %v3275 = vand.u32 %v39, 4294901760
    %v3276 = vsub.f32 %v39, %v3275
    %v3277 = vand.u32 %v3276, 4294901760
    %3278 = vmatpush1.msra.mxu0 %v3277
    %3279 = vmatprep.subr.mxu0 0.0
    %v3280 = vand.u32 %v38, 4294901760
    %v3281 = vsub.f32 %v38, %v3280
    %v3282 = vand.u32 %v3281, 4294901760
    %3283 = vmatpush1.msra.mxu0 %v3282
    %3284 = vmatprep.subr.mxu0 0.0
    %3285 = vmatpush2.msra.mxu0 0.0
    %3286 = vmatprep.subr.mxu0 0.0
    %3287 = vmatpush2.msra.mxu0 0.0
    %3288 = vmatprep.subr.mxu0 0.0
    %3289 = vmatpush2.msra.mxu0 0.0
    %3290 = vmatprep.subr.mxu0 0.0
    %3291 = vmatpush2.msra.mxu0 0.0
    %3292 = vmatprep.subr.mxu0 0.0
    %3293 = vmatpush2.msra.mxu0 0.0
    %3294 = vmatprep.subr.mxu0 0.0
    %3295 = vmatpush2.msra.mxu0 0.0
    %3296 = vmatprep.subr.mxu0 0.0
    %3297 = vmatpush2.msra.mxu0 0.0
    %3298 = vmatprep.subr.mxu0 0.0
    %3299 = vmatpush2.msra.mxu0 0.0
    %3300 = vmatprep.subr.mxu0 0.0
    %3301 = vmatpush2.msra.mxu0 0.0
    %3302 = vmatprep.subr.mxu0 0.0
    %3303 = vmatpush2.msra.mxu0 0.0
    %3304 = vmatprep.subr.mxu0 0.0
    %3305 = vmatpush2.msra.mxu0 0.0
    %3306 = vmatprep.subr.mxu0 0.0
    %3307 = vmatpush2.msra.mxu0 0.0
    %3308 = vmatprep.subr.mxu0 0.0
    %3309 = vmatpush2.msra.mxu0 0.0
    %3310 = vmatprep.subr.mxu0 0.0
    %3311 = vmatpush2.msra.mxu0 0.0
    %3312 = vmatprep.subr.mxu0 0.0
    %3313 = vmatpush2.msra.mxu0 0.0
    %3314 = vmatprep.subr.mxu0 0.0
    %3315 = vmatpush2.msra.mxu0 0.0
    %3316 = vmatprep.mubr.f32.mxu0 0.0
    %v3317 = vand.u32 %v2768, 4294901760
    %3318 = vmatmul.mubr.f32.gmra.mxu0 %v3317
    %v3319 = vpop.f32.mrf.mxu0
    %v3320 = vadd.f32 %v3201, %v3319
    %v3321 = vpop.f32.mrf.mxu0
    %3322 = vdwg.mxu0
    %3323 = vmatprep.subr.mxu0 0.0
    %v3324 = vand.u32 %v53, 4294901760
    %3325 = vmatpush1.msra.mxu0 %v3324
    %3326 = vmatprep.subr.mxu0 0.0
    %v3327 = vand.u32 %v52, 4294901760
    %3328 = vmatpush1.msra.mxu0 %v3327
    %3329 = vmatprep.subr.mxu0 0.0
    %v3330 = vand.u32 %v51, 4294901760
    %3331 = vmatpush1.msra.mxu0 %v3330
    %3332 = vmatprep.subr.mxu0 0.0
    %v3333 = vand.u32 %v50, 4294901760
    %3334 = vmatpush1.msra.mxu0 %v3333
    %3335 = vmatprep.subr.mxu0 0.0
    %v3336 = vand.u32 %v49, 4294901760
    %3337 = vmatpush1.msra.mxu0 %v3336
    %3338 = vmatprep.subr.mxu0 0.0
    %v3339 = vand.u32 %v48, 4294901760
    %3340 = vmatpush1.msra.mxu0 %v3339
    %3341 = vmatprep.subr.mxu0 0.0
    %v3342 = vand.u32 %v47, 4294901760
    %3343 = vmatpush1.msra.mxu0 %v3342
    %3344 = vmatprep.subr.mxu0 0.0
    %v3345 = vand.u32 %v46, 4294901760
    %3346 = vmatpush1.msra.mxu0 %v3345
    %3347 = vmatprep.subr.mxu0 0.0
    %v3348 = vand.u32 %v45, 4294901760
    %3349 = vmatpush1.msra.mxu0 %v3348
    %3350 = vmatprep.subr.mxu0 0.0
    %v3351 = vand.u32 %v44, 4294901760
    %3352 = vmatpush1.msra.mxu0 %v3351
    %3353 = vmatprep.subr.mxu0 0.0
    %v3354 = vand.u32 %v43, 4294901760
    %3355 = vmatpush1.msra.mxu0 %v3354
    %3356 = vmatprep.subr.mxu0 0.0
    %v3357 = vand.u32 %v42, 4294901760
    %3358 = vmatpush1.msra.mxu0 %v3357
    %3359 = vmatprep.subr.mxu0 0.0
    %v3360 = vand.u32 %v41, 4294901760
    %3361 = vmatpush1.msra.mxu0 %v3360
    %3362 = vmatprep.subr.mxu0 0.0
    %v3363 = vand.u32 %v40, 4294901760
    %3364 = vmatpush1.msra.mxu0 %v3363
    %3365 = vmatprep.subr.mxu0 0.0
    %v3366 = vand.u32 %v39, 4294901760
    %3367 = vmatpush1.msra.mxu0 %v3366
    %3368 = vmatprep.subr.mxu0 0.0
    %v3369 = vand.u32 %v38, 4294901760
    %3370 = vmatpush1.msra.mxu0 %v3369
    %3371 = vmatprep.subr.mxu0 0.0
    %3372 = vmatpush2.msra.mxu0 0.0
    %3373 = vmatprep.subr.mxu0 0.0
    %3374 = vmatpush2.msra.mxu0 0.0
    %3375 = vmatprep.subr.mxu0 0.0
    %3376 = vmatpush2.msra.mxu0 0.0
    %3377 = vmatprep.subr.mxu0 0.0
    %3378 = vmatpush2.msra.mxu0 0.0
    %3379 = vmatprep.subr.mxu0 0.0
    %3380 = vmatpush2.msra.mxu0 0.0
    %3381 = vmatprep.subr.mxu0 0.0
    %3382 = vmatpush2.msra.mxu0 0.0
    %3383 = vmatprep.subr.mxu0 0.0
    %3384 = vmatpush2.msra.mxu0 0.0
    %3385 = vmatprep.subr.mxu0 0.0
    %3386 = vmatpush2.msra.mxu0 0.0
    %3387 = vmatprep.subr.mxu0 0.0
    %3388 = vmatpush2.msra.mxu0 0.0
    %3389 = vmatprep.subr.mxu0 0.0
    %3390 = vmatpush2.msra.mxu0 0.0
    %3391 = vmatprep.subr.mxu0 0.0
    %3392 = vmatpush2.msra.mxu0 0.0
    %3393 = vmatprep.subr.mxu0 0.0
    %3394 = vmatpush2.msra.mxu0 0.0
    %3395 = vmatprep.subr.mxu0 0.0
    %3396 = vmatpush2.msra.mxu0 0.0
    %3397 = vmatprep.subr.mxu0 0.0
    %3398 = vmatpush2.msra.mxu0 0.0
    %3399 = vmatprep.subr.mxu0 0.0
    %3400 = vmatpush2.msra.mxu0 0.0
    %3401 = vmatprep.subr.mxu0 0.0
    %3402 = vmatpush2.msra.mxu0 0.0
    %3403 = vmatprep.mubr.f32.mxu0 0.0
    %v3404 = vand.u32 %v2768, 4294901760
    %3405 = vmatmul.mubr.f32.gmra.mxu0 %v3404
    %v3406 = vpop.f32.mrf.mxu0
    %v3407 = vadd.f32 %v3320, %v3406
    %v3408 = vpop.f32.mrf.mxu0
    %3409 = vdwg.mxu0
    %v3410 = vmul.f32 %v3407, 0.001953125
    %v3411 = vmul.f32 %v3410, %v3410
    %v3413 = vrot.slane %v3411, 7
    %v3415 = vsub.f32 %v3410, %v3413
    %v3416 = vadd.f32 %v3415, 1e-05
    %v3417 = vrsqrt.pop %v3416
    %v3419 = vrot.slane %v3417, 6
    %v3421 = vmul.f32 %v54, %v3419
    %v3422 = vlaneseq
    %v3423 = vshrl.u32 %v3422, 7
    %v3424 = vsub.s32 3, %v3423
    %v3425 = vrot.slane %v3421, %v3424
    %v3426 = vmul.f32 %v2734, %v3425
    %v3427 = vmul.f32 %v2735, %v3425
    %v3428 = vmul.f32 %v2736, %v3425
    %v3429 = vmul.f32 %v2737, %v3425
    %v3431 = vrot.slane %v3421, 3
    %v3433 = vmul.f32 %v3410, %v3431
    %v3435 = vrot.slane %v3433, 4
    %v3437 = vsub.f32 %v54, %v3435
    %v3438 = vlaneseq
    %v3439 = vshrl.u32 %v3438, 7
    %v3440 = vsub.s32 4, %v3439
    %v3441 = vrot.slane %v3437, %v3440
    %v3442 = vadd.f32 %v3426, %v3441
    %v3443 = vadd.f32 %v3427, %v3441
    %v3444 = vadd.f32 %v3428, %v3441
    %v3445 = vadd.f32 %v3429, %v3441
    %v3446 = vmax.f32 %v3442, 0.0
    %v3447 = vmax.f32 %v3443, 0.0
    %v3448 = vmax.f32 %v3444, 0.0
    %v3449 = vmax.f32 %v3445, 0.0
    %v3454 = vrot.slane %v3446, 7
    %v3455 = vrot.slane %v3447, 7
    %v3456 = vsel %vm128, %v3454, %v3455
    %v3457 = vrot.slane %v3448, 7
    %v3458 = vsel %vm128, %v3455, %v3457
    %v3459 = vrot.slane %v3449, 7
    %v3460 = vsel %vm128, %v3457, %v3459
    %v3465 = vsel %vm128, 0.0, %v3454
    %v3466 = vmul.f32 %v3465, %v112
    %v3467 = vmul.f32 %v3456, %v113
    %v3468 = vmul.f32 %v3458, %v114
    %v3469 = vmul.f32 %v3460, %v115
    %v3470 = vrot.slane %v3446, 1
    %v3471 = vrot.slane %v3447, 1
    %v3472 = vsel %vm145, %v3470, %v3471
    %v3473 = vrot.slane %v3448, 1
    %v3474 = vsel %vm145, %v3471, %v3473
    %v3475 = vrot.slane %v3449, 1
    %v3476 = vsel %vm145, %v3473, %v3475
    %v3481 = vsel %vm145, %v3475, 0.0
    %v3482 = vmul.f32 %v3472, %v120
    %v3483 = vmul.f32 %v3474, %v121
    %v3484 = vmul.f32 %v3476, %v122
    %v3485 = vmul.f32 %v3481, %v123
    %v3486 = vld [vmem:[%s2] sm:$0xff]
    %v3487 = vld [vmem:[%s2 + $0x8] sm:$0xff]
    %v3488 = vld [vmem:[%s2 + $0x10] sm:$0xff]
    %v3489 = vld [vmem:[%s2 + $0x18] sm:$0xff]
    %v3490 = vld [vmem:[%s2 + $0x20] sm:$0xff]
    %v3491 = vld [vmem:[%s2 + $0x28] sm:$0xff]
    %v3492 = vld [vmem:[%s2 + $0x30] sm:$0xff]
    %v3493 = vld [vmem:[%s2 + $0x38] sm:$0xff]
    %v3494 = vld [vmem:[%s2 + $0x40] sm:$0xff]
    %v3495 = vld [vmem:[%s2 + $0x48] sm:$0xff]
    %v3496 = vld [vmem:[%s2 + $0x50] sm:$0xff]
    %v3497 = vld [vmem:[%s2 + $0x58] sm:$0xff]
    %v3498 = vld [vmem:[%s2 + $0x60] sm:$0xff]
    %v3499 = vld [vmem:[%s2 + $0x68] sm:$0xff]
    %v3500 = vld [vmem:[%s2 + $0x70] sm:$0xff]
    %v3501 = vld [vmem:[%s2 + $0x78] sm:$0xff]
    %v3502 = vld [vmem:[%s2 + $0x80] sm:$0xff]
    %v3503 = vld [vmem:[%s2 + $0x88] sm:$0xff]
    %v3504 = vld [vmem:[%s2 + $0x90] sm:$0xff]
    %v3505 = vld [vmem:[%s2 + $0x98] sm:$0xff]
    %v3506 = vld [vmem:[%s2 + $0xa0] sm:$0xff]
    %v3507 = vld [vmem:[%s2 + $0xa8] sm:$0xff]
    %v3508 = vld [vmem:[%s2 + $0xb0] sm:$0xff]
    %v3509 = vld [vmem:[%s2 + $0xb8] sm:$0xff]
    %v3510 = vld [vmem:[%s2 + $0xc0] sm:$0xff]
    %v3511 = vld [vmem:[%s2 + $0xc8] sm:$0xff]
    %v3512 = vld [vmem:[%s2 + $0xd0] sm:$0xff]
    %v3513 = vld [vmem:[%s2 + $0xd8] sm:$0xff]
    %v3514 = vld [vmem:[%s2 + $0xe0] sm:$0xff]
    %v3515 = vld [vmem:[%s2 + $0xe8] sm:$0xff]
    %v3516 = vld [vmem:[%s2 + $0xf0] sm:$0xff]
    %v3517 = vld [vmem:[%s2 + $0xf8] sm:$0xff]
    %v3518 = vld [vmem:[%s2 + $0x100] sm:$0xff]
    %v3519 = vld [vmem:[%s2 + $0x108] sm:$0xff]
    %v3520 = vld [vmem:[%s2 + $0x110] sm:$0xff]
    %v3521 = vld [vmem:[%s2 + $0x118] sm:$0xff]
    %v3522 = vld [vmem:[%s2 + $0x120] sm:$0xff]
    %v3523 = vld [vmem:[%s2 + $0x128] sm:$0xff]
    %v3524 = vld [vmem:[%s2 + $0x130] sm:$0xff]
    %v3525 = vld [vmem:[%s2 + $0x138] sm:$0xff]
    %v3526 = vld [vmem:[%s2 + $0x140] sm:$0xff]
    %v3527 = vld [vmem:[%s2 + $0x148] sm:$0xff]
    %v3528 = vld [vmem:[%s2 + $0x150] sm:$0xff]
    %v3529 = vld [vmem:[%s2 + $0x158] sm:$0xff]
    %v3530 = vld [vmem:[%s2 + $0x160] sm:$0xff]
    %v3531 = vld [vmem:[%s2 + $0x168] sm:$0xff]
    %v3532 = vld [vmem:[%s2 + $0x170] sm:$0xff]
    %v3533 = vld [vmem:[%s2 + $0x178] sm:$0xff]
    %v3534 = vlaneseq
    %v3535 = vshrl.u32 %v3534, 7
    %v3536 = vsub.s32 1, %v3535
    %v3537 = vrot.slane %v54, %v3536
    %3538 = vmatprep.subr.mxu0 0.0
    %v3539 = vand.u32 %v3501, 4294901760
    %3540 = vmatpush1.msra.mxu0 %v3539
    %3541 = vmatprep.subr.mxu0 0.0
    %v3542 = vand.u32 %v3500, 4294901760
    %3543 = vmatpush1.msra.mxu0 %v3542
    %3544 = vmatprep.subr.mxu0 0.0
    %v3545 = vand.u32 %v3499, 4294901760
    %3546 = vmatpush1.msra.mxu0 %v3545
    %3547 = vmatprep.subr.mxu0 0.0
    %v3548 = vand.u32 %v3498, 4294901760
    %3549 = vmatpush1.msra.mxu0 %v3548
    %3550 = vmatprep.subr.mxu0 0.0
    %v3551 = vand.u32 %v3497, 4294901760
    %3552 = vmatpush1.msra.mxu0 %v3551
    %3553 = vmatprep.subr.mxu0 0.0
    %v3554 = vand.u32 %v3496, 4294901760
    %3555 = vmatpush1.msra.mxu0 %v3554
    %3556 = vmatprep.subr.mxu0 0.0
    %v3557 = vand.u32 %v3495, 4294901760
    %3558 = vmatpush1.msra.mxu0 %v3557
    %3559 = vmatprep.subr.mxu0 0.0
    %v3560 = vand.u32 %v3494, 4294901760
    %3561 = vmatpush1.msra.mxu0 %v3560
    %3562 = vmatprep.subr.mxu0 0.0
    %v3563 = vand.u32 %v3493, 4294901760
    %3564 = vmatpush1.msra.mxu0 %v3563
    %3565 = vmatprep.subr.mxu0 0.0
    %v3566 = vand.u32 %v3492, 4294901760
    %3567 = vmatpush1.msra.mxu0 %v3566
    %3568 = vmatprep.subr.mxu0 0.0
    %v3569 = vand.u32 %v3491, 4294901760
    %3570 = vmatpush1.msra.mxu0 %v3569
    %3571 = vmatprep.subr.mxu0 0.0
    %v3572 = vand.u32 %v3490, 4294901760
    %3573 = vmatpush1.msra.mxu0 %v3572
    %3574 = vmatprep.subr.mxu0 0.0
    %v3575 = vand.u32 %v3489, 4294901760
    %3576 = vmatpush1.msra.mxu0 %v3575
    %3577 = vmatprep.subr.mxu0 0.0
    %v3578 = vand.u32 %v3488, 4294901760
    %3579 = vmatpush1.msra.mxu0 %v3578
    %3580 = vmatprep.subr.mxu0 0.0
    %v3581 = vand.u32 %v3487, 4294901760
    %3582 = vmatpush1.msra.mxu0 %v3581
    %3583 = vmatprep.subr.mxu0 0.0
    %v3584 = vand.u32 %v3486, 4294901760
    %3585 = vmatpush1.msra.mxu0 %v3584
    %3586 = vmatprep.subr.mxu0 0.0
    %v3587 = vand.u32 %v3517, 4294901760
    %3588 = vmatpush2.msra.mxu0 %v3587
    %3589 = vmatprep.subr.mxu0 0.0
    %v3590 = vand.u32 %v3516, 4294901760
    %3591 = vmatpush2.msra.mxu0 %v3590
    %3592 = vmatprep.subr.mxu0 0.0
    %v3593 = vand.u32 %v3515, 4294901760
    %3594 = vmatpush2.msra.mxu0 %v3593
    %3595 = vmatprep.subr.mxu0 0.0
    %v3596 = vand.u32 %v3514, 4294901760
    %3597 = vmatpush2.msra.mxu0 %v3596
    %3598 = vmatprep.subr.mxu0 0.0
    %v3599 = vand.u32 %v3513, 4294901760
    %3600 = vmatpush2.msra.mxu0 %v3599
    %3601 = vmatprep.subr.mxu0 0.0
    %v3602 = vand.u32 %v3512, 4294901760
    %3603 = vmatpush2.msra.mxu0 %v3602
    %3604 = vmatprep.subr.mxu0 0.0
    %v3605 = vand.u32 %v3511, 4294901760
    %3606 = vmatpush2.msra.mxu0 %v3605
    %3607 = vmatprep.subr.mxu0 0.0
    %v3608 = vand.u32 %v3510, 4294901760
    %3609 = vmatpush2.msra.mxu0 %v3608
    %3610 = vmatprep.subr.mxu0 0.0
    %v3611 = vand.u32 %v3509, 4294901760
    %3612 = vmatpush2.msra.mxu0 %v3611
    %3613 = vmatprep.subr.mxu0 0.0
    %v3614 = vand.u32 %v3508, 4294901760
    %3615 = vmatpush2.msra.mxu0 %v3614
    %3616 = vmatprep.subr.mxu0 0.0
    %v3617 = vand.u32 %v3507, 4294901760
    %3618 = vmatpush2.msra.mxu0 %v3617
    %3619 = vmatprep.subr.mxu0 0.0
    %v3620 = vand.u32 %v3506, 4294901760
    %3621 = vmatpush2.msra.mxu0 %v3620
    %3622 = vmatprep.subr.mxu0 0.0
    %v3623 = vand.u32 %v3505, 4294901760
    %3624 = vmatpush2.msra.mxu0 %v3623
    %3625 = vmatprep.subr.mxu0 0.0
    %v3626 = vand.u32 %v3504, 4294901760
    %3627 = vmatpush2.msra.mxu0 %v3626
    %3628 = vmatprep.subr.mxu0 0.0
    %v3629 = vand.u32 %v3503, 4294901760
    %3630 = vmatpush2.msra.mxu0 %v3629
    %3631 = vmatprep.subr.mxu0 0.0
    %v3632 = vand.u32 %v3502, 4294901760
    %3633 = vmatpush2.msra.mxu0 %v3632
    %v3634 = vand.u32 %v3446, 4294901760
    %v3635 = vsub.f32 %v3446, %v3634
    %v3636 = vand.u32 %v3635, 4294901760
    %v3637 = vsub.f32 %v3635, %v3636
    %v3638 = vand.u32 %v3637, 4294901760
    %3639 = vmatprep.mubr.f32.mxu0 %v3638
    %v3640 = vand.u32 %v3466, 4294901760
    %v3641 = vsub.f32 %v3466, %v3640
    %v3642 = vand.u32 %v3641, 4294901760
    %v3643 = vsub.f32 %v3641, %v3642
    %v3644 = vand.u32 %v3643, 4294901760
    %3645 = vmatmul.mubr.f32.gmra.mxu0 %v3644
    %v3646 = vpop.f32.mrf.mxu0
    %v3647 = vadd.f32 %v3537, %v3646
    %v3648 = vpop.f32.mrf.mxu0
    %v3649 = vand.u32 %v3447, 4294901760
    %v3650 = vsub.f32 %v3447, %v3649
    %v3651 = vand.u32 %v3650, 4294901760
    %v3652 = vsub.f32 %v3650, %v3651
    %v3653 = vand.u32 %v3652, 4294901760
    %3654 = vmatprep.mubr.f32.mxu0 %v3653
    %v3655 = vand.u32 %v3467, 4294901760
    %v3656 = vsub.f32 %v3467, %v3655
    %v3657 = vand.u32 %v3656, 4294901760
    %v3658 = vsub.f32 %v3656, %v3657
    %v3659 = vand.u32 %v3658, 4294901760
    %3660 = vmatmul.mubr.f32.gmra.mxu0 %v3659
    %v3661 = vpop.f32.mrf.mxu0
    %v3662 = vadd.f32 %v3537, %v3661
    %v3663 = vpop.f32.mrf.mxu0
    %v3664 = vand.u32 %v3448, 4294901760
    %v3665 = vsub.f32 %v3448, %v3664
    %v3666 = vand.u32 %v3665, 4294901760
    %v3667 = vsub.f32 %v3665, %v3666
    %v3668 = vand.u32 %v3667, 4294901760
    %3669 = vmatprep.mubr.f32.mxu0 %v3668
    %v3670 = vand.u32 %v3468, 4294901760
    %v3671 = vsub.f32 %v3468, %v3670
    %v3672 = vand.u32 %v3671, 4294901760
    %v3673 = vsub.f32 %v3671, %v3672
    %v3674 = vand.u32 %v3673, 4294901760
    %3675 = vmatmul.mubr.f32.gmra.mxu0 %v3674
    %v3676 = vpop.f32.mrf.mxu0
    %v3677 = vadd.f32 %v3537, %v3676
    %v3678 = vpop.f32.mrf.mxu0
    %v3679 = vand.u32 %v3449, 4294901760
    %v3680 = vsub.f32 %v3449, %v3679
    %v3681 = vand.u32 %v3680, 4294901760
    %v3682 = vsub.f32 %v3680, %v3681
    %v3683 = vand.u32 %v3682, 4294901760
    %3684 = vmatprep.mubr.f32.mxu0 %v3683
    %v3685 = vand.u32 %v3469, 4294901760
    %v3686 = vsub.f32 %v3469, %v3685
    %v3687 = vand.u32 %v3686, 4294901760
    %v3688 = vsub.f32 %v3686, %v3687
    %v3689 = vand.u32 %v3688, 4294901760
    %3690 = vmatmul.mubr.f32.gmra.mxu0 %v3689
    %v3691 = vpop.f32.mrf.mxu0
    %v3692 = vadd.f32 %v3537, %v3691
    %v3693 = vpop.f32.mrf.mxu0
    %3694 = vdwg.mxu0
    %3695 = vmatprep.subr.mxu0 0.0
    %v3696 = vand.u32 %v3501, 4294901760
    %v3697 = vsub.f32 %v3501, %v3696
    %v3698 = vand.u32 %v3697, 4294901760
    %v3699 = vsub.f32 %v3697, %v3698
    %v3700 = vand.u32 %v3699, 4294901760
    %3701 = vmatpush1.msra.mxu0 %v3700
    %3702 = vmatprep.subr.mxu0 0.0
    %v3703 = vand.u32 %v3500, 4294901760
    %v3704 = vsub.f32 %v3500, %v3703
    %v3705 = vand.u32 %v3704, 4294901760
    %v3706 = vsub.f32 %v3704, %v3705
    %v3707 = vand.u32 %v3706, 4294901760
    %3708 = vmatpush1.msra.mxu0 %v3707
    %3709 = vmatprep.subr.mxu0 0.0
    %v3710 = vand.u32 %v3499, 4294901760
    %v3711 = vsub.f32 %v3499, %v3710
    %v3712 = vand.u32 %v3711, 4294901760
    %v3713 = vsub.f32 %v3711, %v3712
    %v3714 = vand.u32 %v3713, 4294901760
    %3715 = vmatpush1.msra.mxu0 %v3714
    %3716 = vmatprep.subr.mxu0 0.0
    %v3717 = vand.u32 %v3498, 4294901760
    %v3718 = vsub.f32 %v3498, %v3717
    %v3719 = vand.u32 %v3718, 4294901760
    %v3720 = vsub.f32 %v3718, %v3719
    %v3721 = vand.u32 %v3720, 4294901760
    %3722 = vmatpush1.msra.mxu0 %v3721
    %3723 = vmatprep.subr.mxu0 0.0
    %v3724 = vand.u32 %v3497, 4294901760
    %v3725 = vsub.f32 %v3497, %v3724
    %v3726 = vand.u32 %v3725, 4294901760
    %v3727 = vsub.f32 %v3725, %v3726
    %v3728 = vand.u32 %v3727, 4294901760
    %3729 = vmatpush1.msra.mxu0 %v3728
    %3730 = vmatprep.subr.mxu0 0.0
    %v3731 = vand.u32 %v3496, 4294901760
    %v3732 = vsub.f32 %v3496, %v3731
    %v3733 = vand.u32 %v3732, 4294901760
    %v3734 = vsub.f32 %v3732, %v3733
    %v3735 = vand.u32 %v3734, 4294901760
    %3736 = vmatpush1.msra.mxu0 %v3735
    %3737 = vmatprep.subr.mxu0 0.0
    %v3738 = vand.u32 %v3495, 4294901760
    %v3739 = vsub.f32 %v3495, %v3738
    %v3740 = vand.u32 %v3739, 4294901760
    %v3741 = vsub.f32 %v3739, %v3740
    %v3742 = vand.u32 %v3741, 4294901760
    %3743 = vmatpush1.msra.mxu0 %v3742
    %3744 = vmatprep.subr.mxu0 0.0
    %v3745 = vand.u32 %v3494, 4294901760
    %v3746 = vsub.f32 %v3494, %v3745
    %v3747 = vand.u32 %v3746, 4294901760
    %v3748 = vsub.f32 %v3746, %v3747
    %v3749 = vand.u32 %v3748, 4294901760
    %3750 = vmatpush1.msra.mxu0 %v3749
    %3751 = vmatprep.subr.mxu0 0.0
    %v3752 = vand.u32 %v3493, 4294901760
    %v3753 = vsub.f32 %v3493, %v3752
    %v3754 = vand.u32 %v3753, 4294901760
    %v3755 = vsub.f32 %v3753, %v3754
    %v3756 = vand.u32 %v3755, 4294901760
    %3757 = vmatpush1.msra.mxu0 %v3756
    %3758 = vmatprep.subr.mxu0 0.0
    %v3759 = vand.u32 %v3492, 4294901760
    %v3760 = vsub.f32 %v3492, %v3759
    %v3761 = vand.u32 %v3760, 4294901760
    %v3762 = vsub.f32 %v3760, %v3761
    %v3763 = vand.u32 %v3762, 4294901760
    %3764 = vmatpush1.msra.mxu0 %v3763
    %3765 = vmatprep.subr.mxu0 0.0
    %v3766 = vand.u32 %v3491, 4294901760
    %v3767 = vsub.f32 %v3491, %v3766
    %v3768 = vand.u32 %v3767, 4294901760
    %v3769 = vsub.f32 %v3767, %v3768
    %v3770 = vand.u32 %v3769, 4294901760
    %3771 = vmatpush1.msra.mxu0 %v3770
    %3772 = vmatprep.subr.mxu0 0.0
    %v3773 = vand.u32 %v3490, 4294901760
    %v3774 = vsub.f32 %v3490, %v3773
    %v3775 = vand.u32 %v3774, 4294901760
    %v3776 = vsub.f32 %v3774, %v3775
    %v3777 = vand.u32 %v3776, 4294901760
    %3778 = vmatpush1.msra.mxu0 %v3777
    %3779 = vmatprep.subr.mxu0 0.0
    %v3780 = vand.u32 %v3489, 4294901760
    %v3781 = vsub.f32 %v3489, %v3780
    %v3782 = vand.u32 %v3781, 4294901760
    %v3783 = vsub.f32 %v3781, %v3782
    %v3784 = vand.u32 %v3783, 4294901760
    %3785 = vmatpush1.msra.mxu0 %v3784
    %3786 = vmatprep.subr.mxu0 0.0
    %v3787 = vand.u32 %v3488, 4294901760
    %v3788 = vsub.f32 %v3488, %v3787
    %v3789 = vand.u32 %v3788, 4294901760
    %v3790 = vsub.f32 %v3788, %v3789
    %v3791 = vand.u32 %v3790, 4294901760
    %3792 = vmatpush1.msra.mxu0 %v3791
    %3793 = vmatprep.subr.mxu0 0.0
    %v3794 = vand.u32 %v3487, 4294901760
    %v3795 = vsub.f32 %v3487, %v3794
    %v3796 = vand.u32 %v3795, 4294901760
    %v3797 = vsub.f32 %v3795, %v3796
    %v3798 = vand.u32 %v3797, 4294901760
    %3799 = vmatpush1.msra.mxu0 %v3798
    %3800 = vmatprep.subr.mxu0 0.0
    %v3801 = vand.u32 %v3486, 4294901760
    %v3802 = vsub.f32 %v3486, %v3801
    %v3803 = vand.u32 %v3802, 4294901760
    %v3804 = vsub.f32 %v3802, %v3803
    %v3805 = vand.u32 %v3804, 4294901760
    %3806 = vmatpush1.msra.mxu0 %v3805
    %3807 = vmatprep.subr.mxu0 0.0
    %v3808 = vand.u32 %v3517, 4294901760
    %v3809 = vsub.f32 %v3517, %v3808
    %v3810 = vand.u32 %v3809, 4294901760
    %v3811 = vsub.f32 %v3809, %v3810
    %v3812 = vand.u32 %v3811, 4294901760
    %3813 = vmatpush2.msra.mxu0 %v3812
    %3814 = vmatprep.subr.mxu0 0.0
    %v3815 = vand.u32 %v3516, 4294901760
    %v3816 = vsub.f32 %v3516, %v3815
    %v3817 = vand.u32 %v3816, 4294901760
    %v3818 = vsub.f32 %v3816, %v3817
    %v3819 = vand.u32 %v3818, 4294901760
    %3820 = vmatpush2.msra.mxu0 %v3819
    %3821 = vmatprep.subr.mxu0 0.0
    %v3822 = vand.u32 %v3515, 4294901760
    %v3823 = vsub.f32 %v3515, %v3822
    %v3824 = vand.u32 %v3823, 4294901760
    %v3825 = vsub.f32 %v3823, %v3824
    %v3826 = vand.u32 %v3825, 4294901760
    %3827 = vmatpush2.msra.mxu0 %v3826
    %3828 = vmatprep.subr.mxu0 0.0
    %v3829 = vand.u32 %v3514, 4294901760
    %v3830 = vsub.f32 %v3514, %v3829
    %v3831 = vand.u32 %v3830, 4294901760
    %v3832 = vsub.f32 %v3830, %v3831
    %v3833 = vand.u32 %v3832, 4294901760
    %3834 = vmatpush2.msra.mxu0 %v3833
    %3835 = vmatprep.subr.mxu0 0.0
    %v3836 = vand.u32 %v3513, 4294901760
    %v3837 = vsub.f32 %v3513, %v3836
    %v3838 = vand.u32 %v3837, 4294901760
    %v3839 = vsub.f32 %v3837, %v3838
    %v3840 = vand.u32 %v3839, 4294901760
    %3841 = vmatpush2.msra.mxu0 %v3840
    %3842 = vmatprep.subr.mxu0 0.0
    %v3843 = vand.u32 %v3512, 4294901760
    %v3844 = vsub.f32 %v3512, %v3843
    %v3845 = vand.u32 %v3844, 4294901760
    %v3846 = vsub.f32 %v3844, %v3845
    %v3847 = vand.u32 %v3846, 4294901760
    %3848 = vmatpush2.msra.mxu0 %v3847
    %3849 = vmatprep.subr.mxu0 0.0
    %v3850 = vand.u32 %v3511, 4294901760
    %v3851 = vsub.f32 %v3511, %v3850
    %v3852 = vand.u32 %v3851, 4294901760
    %v3853 = vsub.f32 %v3851, %v3852
    %v3854 = vand.u32 %v3853, 4294901760
    %3855 = vmatpush2.msra.mxu0 %v3854
    %3856 = vmatprep.subr.mxu0 0.0
    %v3857 = vand.u32 %v3510, 4294901760
    %v3858 = vsub.f32 %v3510, %v3857
    %v3859 = vand.u32 %v3858, 4294901760
    %v3860 = vsub.f32 %v3858, %v3859
    %v3861 = vand.u32 %v3860, 4294901760
    %3862 = vmatpush2.msra.mxu0 %v3861
    %3863 = vmatprep.subr.mxu0 0.0
    %v3864 = vand.u32 %v3509, 4294901760
    %v3865 = vsub.f32 %v3509, %v3864
    %v3866 = vand.u32 %v3865, 4294901760
    %v3867 = vsub.f32 %v3865, %v3866
    %v3868 = vand.u32 %v3867, 4294901760
    %3869 = vmatpush2.msra.mxu0 %v3868
    %3870 = vmatprep.subr.mxu0 0.0
    %v3871 = vand.u32 %v3508, 4294901760
    %v3872 = vsub.f32 %v3508, %v3871
    %v3873 = vand.u32 %v3872, 4294901760
    %v3874 = vsub.f32 %v3872, %v3873
    %v3875 = vand.u32 %v3874, 4294901760
    %3876 = vmatpush2.msra.mxu0 %v3875
    %3877 = vmatprep.subr.mxu0 0.0
    %v3878 = vand.u32 %v3507, 4294901760
    %v3879 = vsub.f32 %v3507, %v3878
    %v3880 = vand.u32 %v3879, 4294901760
    %v3881 = vsub.f32 %v3879, %v3880
    %v3882 = vand.u32 %v3881, 4294901760
    %3883 = vmatpush2.msra.mxu0 %v3882
    %3884 = vmatprep.subr.mxu0 0.0
    %v3885 = vand.u32 %v3506, 4294901760
    %v3886 = vsub.f32 %v3506, %v3885
    %v3887 = vand.u32 %v3886, 4294901760
    %v3888 = vsub.f32 %v3886, %v3887
    %v3889 = vand.u32 %v3888, 4294901760
    %3890 = vmatpush2.msra.mxu0 %v3889
    %3891 = vmatprep.subr.mxu0 0.0
    %v3892 = vand.u32 %v3505, 4294901760
    %v3893 = vsub.f32 %v3505, %v3892
    %v3894 = vand.u32 %v3893, 4294901760
    %v3895 = vsub.f32 %v3893, %v3894
    %v3896 = vand.u32 %v3895, 4294901760
    %3897 = vmatpush2.msra.mxu0 %v3896
    %3898 = vmatprep.subr.mxu0 0.0
    %v3899 = vand.u32 %v3504, 4294901760
    %v3900 = vsub.f32 %v3504, %v3899
    %v3901 = vand.u32 %v3900, 4294901760
    %v3902 = vsub.f32 %v3900, %v3901
    %v3903 = vand.u32 %v3902, 4294901760
    %3904 = vmatpush2.msra.mxu0 %v3903
    %3905 = vmatprep.subr.mxu0 0.0
    %v3906 = vand.u32 %v3503, 4294901760
    %v3907 = vsub.f32 %v3503, %v3906
    %v3908 = vand.u32 %v3907, 4294901760
    %v3909 = vsub.f32 %v3907, %v3908
    %v3910 = vand.u32 %v3909, 4294901760
    %3911 = vmatpush2.msra.mxu0 %v3910
    %3912 = vmatprep.subr.mxu0 0.0
    %v3913 = vand.u32 %v3502, 4294901760
    %v3914 = vsub.f32 %v3502, %v3913
    %v3915 = vand.u32 %v3914, 4294901760
    %v3916 = vsub.f32 %v3914, %v3915
    %v3917 = vand.u32 %v3916, 4294901760
    %3918 = vmatpush2.msra.mxu0 %v3917
    %v3919 = vand.u32 %v3446, 4294901760
    %3920 = vmatprep.mubr.f32.mxu0 %v3919
    %v3921 = vand.u32 %v3466, 4294901760
    %3922 = vmatmul.mubr.f32.gmra.mxu0 %v3921
    %v3923 = vpop.f32.mrf.mxu0
    %v3924 = vadd.f32 %v3647, %v3923
    %v3925 = vpop.f32.mrf.mxu0
    %v3926 = vand.u32 %v3447, 4294901760
    %3927 = vmatprep.mubr.f32.mxu0 %v3926
    %v3928 = vand.u32 %v3467, 4294901760
    %3929 = vmatmul.mubr.f32.gmra.mxu0 %v3928
    %v3930 = vpop.f32.mrf.mxu0
    %v3931 = vadd.f32 %v3662, %v3930
    %v3932 = vpop.f32.mrf.mxu0
    %v3933 = vand.u32 %v3448, 4294901760
    %3934 = vmatprep.mubr.f32.mxu0 %v3933
    %v3935 = vand.u32 %v3468, 4294901760
    %3936 = vmatmul.mubr.f32.gmra.mxu0 %v3935
    %v3937 = vpop.f32.mrf.mxu0
    %v3938 = vadd.f32 %v3677, %v3937
    %v3939 = vpop.f32.mrf.mxu0
    %v3940 = vand.u32 %v3449, 4294901760
    %3941 = vmatprep.mubr.f32.mxu0 %v3940
    %v3942 = vand.u32 %v3469, 4294901760
    %3943 = vmatmul.mubr.f32.gmra.mxu0 %v3942
    %v3944 = vpop.f32.mrf.mxu0
    %v3945 = vadd.f32 %v3692, %v3944
    %v3946 = vpop.f32.mrf.mxu0
    %3947 = vdwg.mxu0
    %3948 = vmatprep.subr.mxu0 0.0
    %v3949 = vand.u32 %v3501, 4294901760
    %v3950 = vsub.f32 %v3501, %v3949
    %3951 = vmatpush1.msra.mxu0 %v3950
    %3952 = vmatprep.subr.mxu0 0.0
    %v3953 = vand.u32 %v3500, 4294901760
    %v3954 = vsub.f32 %v3500, %v3953
    %3955 = vmatpush1.msra.mxu0 %v3954
    %3956 = vmatprep.subr.mxu0 0.0
    %v3957 = vand.u32 %v3499, 4294901760
    %v3958 = vsub.f32 %v3499, %v3957
    %3959 = vmatpush1.msra.mxu0 %v3958
    %3960 = vmatprep.subr.mxu0 0.0
    %v3961 = vand.u32 %v3498, 4294901760
    %v3962 = vsub.f32 %v3498, %v3961
    %3963 = vmatpush1.msra.mxu0 %v3962
    %3964 = vmatprep.subr.mxu0 0.0
    %v3965 = vand.u32 %v3497, 4294901760
    %v3966 = vsub.f32 %v3497, %v3965
    %3967 = vmatpush1.msra.mxu0 %v3966
    %3968 = vmatprep.subr.mxu0 0.0
    %v3969 = vand.u32 %v3496, 4294901760
    %v3970 = vsub.f32 %v3496, %v3969
    %3971 = vmatpush1.msra.mxu0 %v3970
    %3972 = vmatprep.subr.mxu0 0.0
    %v3973 = vand.u32 %v3495, 4294901760
    %v3974 = vsub.f32 %v3495, %v3973
    %3975 = vmatpush1.msra.mxu0 %v3974
    %3976 = vmatprep.subr.mxu0 0.0
    %v3977 = vand.u32 %v3494, 4294901760
    %v3978 = vsub.f32 %v3494, %v3977
    %3979 = vmatpush1.msra.mxu0 %v3978
    %3980 = vmatprep.subr.mxu0 0.0
    %v3981 = vand.u32 %v3493, 4294901760
    %v3982 = vsub.f32 %v3493, %v3981
    %3983 = vmatpush1.msra.mxu0 %v3982
    %3984 = vmatprep.subr.mxu0 0.0
    %v3985 = vand.u32 %v3492, 4294901760
    %v3986 = vsub.f32 %v3492, %v3985
    %3987 = vmatpush1.msra.mxu0 %v3986
    %3988 = vmatprep.subr.mxu0 0.0
    %v3989 = vand.u32 %v3491, 4294901760
    %v3990 = vsub.f32 %v3491, %v3989
    %3991 = vmatpush1.msra.mxu0 %v3990
    %3992 = vmatprep.subr.mxu0 0.0
    %v3993 = vand.u32 %v3490, 4294901760
    %v3994 = vsub.f32 %v3490, %v3993
    %3995 = vmatpush1.msra.mxu0 %v3994
    %3996 = vmatprep.subr.mxu0 0.0
    %v3997 = vand.u32 %v3489, 4294901760
    %v3998 = vsub.f32 %v3489, %v3997
    %3999 = vmatpush1.msra.mxu0 %v3998
    %4000 = vmatprep.subr.mxu0 0.0
    %v4001 = vand.u32 %v3488, 4294901760
    %v4002 = vsub.f32 %v3488, %v4001
    %4003 = vmatpush1.msra.mxu0 %v4002
    %4004 = vmatprep.subr.mxu0 0.0
    %v4005 = vand.u32 %v3487, 4294901760
    %v4006 = vsub.f32 %v3487, %v4005
    %4007 = vmatpush1.msra.mxu0 %v4006
    %4008 = vmatprep.subr.mxu0 0.0
    %v4009 = vand.u32 %v3486, 4294901760
    %v4010 = vsub.f32 %v3486, %v4009
    %4011 = vmatpush1.msra.mxu0 %v4010
    %4012 = vmatprep.subr.mxu0 0.0
    %v4013 = vand.u32 %v3517, 4294901760
    %v4014 = vsub.f32 %v3517, %v4013
    %4015 = vmatpush2.msra.mxu0 %v4014
    %4016 = vmatprep.subr.mxu0 0.0
    %v4017 = vand.u32 %v3516, 4294901760
    %v4018 = vsub.f32 %v3516, %v4017
    %4019 = vmatpush2.msra.mxu0 %v4018
    %4020 = vmatprep.subr.mxu0 0.0
    %v4021 = vand.u32 %v3515, 4294901760
    %v4022 = vsub.f32 %v3515, %v4021
    %4023 = vmatpush2.msra.mxu0 %v4022
    %4024 = vmatprep.subr.mxu0 0.0
    %v4025 = vand.u32 %v3514, 4294901760
    %v4026 = vsub.f32 %v3514, %v4025
    %4027 = vmatpush2.msra.mxu0 %v4026
    %4028 = vmatprep.subr.mxu0 0.0
    %v4029 = vand.u32 %v3513, 4294901760
    %v4030 = vsub.f32 %v3513, %v4029
    %4031 = vmatpush2.msra.mxu0 %v4030
    %4032 = vmatprep.subr.mxu0 0.0
    %v4033 = vand.u32 %v3512, 4294901760
    %v4034 = vsub.f32 %v3512, %v4033
    %4035 = vmatpush2.msra.mxu0 %v4034
    %4036 = vmatprep.subr.mxu0 0.0
    %v4037 = vand.u32 %v3511, 4294901760
    %v4038 = vsub.f32 %v3511, %v4037
    %4039 = vmatpush2.msra.mxu0 %v4038
    %4040 = vmatprep.subr.mxu0 0.0
    %v4041 = vand.u32 %v3510, 4294901760
    %v4042 = vsub.f32 %v3510, %v4041
    %4043 = vmatpush2.msra.mxu0 %v4042
    %4044 = vmatprep.subr.mxu0 0.0
    %v4045 = vand.u32 %v3509, 4294901760
    %v4046 = vsub.f32 %v3509, %v4045
    %4047 = vmatpush2.msra.mxu0 %v4046
    %4048 = vmatprep.subr.mxu0 0.0
    %v4049 = vand.u32 %v3508, 4294901760
    %v4050 = vsub.f32 %v3508, %v4049
    %4051 = vmatpush2.msra.mxu0 %v4050
    %4052 = vmatprep.subr.mxu0 0.0
    %v4053 = vand.u32 %v3507, 4294901760
    %v4054 = vsub.f32 %v3507, %v4053
    %4055 = vmatpush2.msra.mxu0 %v4054
    %4056 = vmatprep.subr.mxu0 0.0
    %v4057 = vand.u32 %v3506, 4294901760
    %v4058 = vsub.f32 %v3506, %v4057
    %4059 = vmatpush2.msra.mxu0 %v4058
    %4060 = vmatprep.subr.mxu0 0.0
    %v4061 = vand.u32 %v3505, 4294901760
    %v4062 = vsub.f32 %v3505, %v4061
    %4063 = vmatpush2.msra.mxu0 %v4062
    %4064 = vmatprep.subr.mxu0 0.0
    %v4065 = vand.u32 %v3504, 4294901760
    %v4066 = vsub.f32 %v3504, %v4065
    %4067 = vmatpush2.msra.mxu0 %v4066
    %4068 = vmatprep.subr.mxu0 0.0
    %v4069 = vand.u32 %v3503, 4294901760
    %v4070 = vsub.f32 %v3503, %v4069
    %4071 = vmatpush2.msra.mxu0 %v4070
    %4072 = vmatprep.subr.mxu0 0.0
    %v4073 = vand.u32 %v3502, 4294901760
    %v4074 = vsub.f32 %v3502, %v4073
    %4075 = vmatpush2.msra.mxu0 %v4074
    %v4076 = vand.u32 %v3446, 4294901760
    %v4077 = vsub.f32 %v3446, %v4076
    %4078 = vmatprep.mubr.f32.mxu0 %v4077
    %v4079 = vand.u32 %v3466, 4294901760
    %v4080 = vsub.f32 %v3466, %v4079
    %4081 = vmatmul.mubr.f32.gmra.mxu0 %v4080
    %v4082 = vpop.f32.mrf.mxu0
    %v4083 = vadd.f32 %v3924, %v4082
    %v4084 = vpop.f32.mrf.mxu0
    %v4085 = vand.u32 %v3447, 4294901760
    %v4086 = vsub.f32 %v3447, %v4085
    %4087 = vmatprep.mubr.f32.mxu0 %v4086
    %v4088 = vand.u32 %v3467, 4294901760
    %v4089 = vsub.f32 %v3467, %v4088
    %4090 = vmatmul.mubr.f32.gmra.mxu0 %v4089
    %v4091 = vpop.f32.mrf.mxu0
    %v4092 = vadd.f32 %v3931, %v4091
    %v4093 = vpop.f32.mrf.mxu0
    %v4094 = vand.u32 %v3448, 4294901760
    %v4095 = vsub.f32 %v3448, %v4094
    %4096 = vmatprep.mubr.f32.mxu0 %v4095
    %v4097 = vand.u32 %v3468, 4294901760
    %v4098 = vsub.f32 %v3468, %v4097
    %4099 = vmatmul.mubr.f32.gmra.mxu0 %v4098
    %v4100 = vpop.f32.mrf.mxu0
    %v4101 = vadd.f32 %v3938, %v4100
    %v4102 = vpop.f32.mrf.mxu0
    %v4103 = vand.u32 %v3449, 4294901760
    %v4104 = vsub.f32 %v3449, %v4103
    %4105 = vmatprep.mubr.f32.mxu0 %v4104
    %v4106 = vand.u32 %v3469, 4294901760
    %v4107 = vsub.f32 %v3469, %v4106
    %4108 = vmatmul.mubr.f32.gmra.mxu0 %v4107
    %v4109 = vpop.f32.mrf.mxu0
    %v4110 = vadd.f32 %v3945, %v4109
    %v4111 = vpop.f32.mrf.mxu0
    %4112 = vdwg.mxu0
    %4113 = vmatprep.subr.mxu0 0.0
    %v4114 = vand.u32 %v3501, 4294901760
    %4115 = vmatpush1.msra.mxu0 %v4114
    %4116 = vmatprep.subr.mxu0 0.0
    %v4117 = vand.u32 %v3500, 4294901760
    %4118 = vmatpush1.msra.mxu0 %v4117
    %4119 = vmatprep.subr.mxu0 0.0
    %v4120 = vand.u32 %v3499, 4294901760
    %4121 = vmatpush1.msra.mxu0 %v4120
    %4122 = vmatprep.subr.mxu0 0.0
    %v4123 = vand.u32 %v3498, 4294901760
    %4124 = vmatpush1.msra.mxu0 %v4123
    %4125 = vmatprep.subr.mxu0 0.0
    %v4126 = vand.u32 %v3497, 4294901760
    %4127 = vmatpush1.msra.mxu0 %v4126
    %4128 = vmatprep.subr.mxu0 0.0
    %v4129 = vand.u32 %v3496, 4294901760
    %4130 = vmatpush1.msra.mxu0 %v4129
    %4131 = vmatprep.subr.mxu0 0.0
    %v4132 = vand.u32 %v3495, 4294901760
    %4133 = vmatpush1.msra.mxu0 %v4132
    %4134 = vmatprep.subr.mxu0 0.0
    %v4135 = vand.u32 %v3494, 4294901760
    %4136 = vmatpush1.msra.mxu0 %v4135
    %4137 = vmatprep.subr.mxu0 0.0
    %v4138 = vand.u32 %v3493, 4294901760
    %4139 = vmatpush1.msra.mxu0 %v4138
    %4140 = vmatprep.subr.mxu0 0.0
    %v4141 = vand.u32 %v3492, 4294901760
    %4142 = vmatpush1.msra.mxu0 %v4141
    %4143 = vmatprep.subr.mxu0 0.0
    %v4144 = vand.u32 %v3491, 4294901760
    %4145 = vmatpush1.msra.mxu0 %v4144
    %4146 = vmatprep.subr.mxu0 0.0
    %v4147 = vand.u32 %v3490, 4294901760
    %4148 = vmatpush1.msra.mxu0 %v4147
    %4149 = vmatprep.subr.mxu0 0.0
    %v4150 = vand.u32 %v3489, 4294901760
    %4151 = vmatpush1.msra.mxu0 %v4150
    %4152 = vmatprep.subr.mxu0 0.0
    %v4153 = vand.u32 %v3488, 4294901760
    %4154 = vmatpush1.msra.mxu0 %v4153
    %4155 = vmatprep.subr.mxu0 0.0
    %v4156 = vand.u32 %v3487, 4294901760
    %4157 = vmatpush1.msra.mxu0 %v4156
    %4158 = vmatprep.subr.mxu0 0.0
    %v4159 = vand.u32 %v3486, 4294901760
    %4160 = vmatpush1.msra.mxu0 %v4159
    %4161 = vmatprep.subr.mxu0 0.0
    %v4162 = vand.u32 %v3517, 4294901760
    %4163 = vmatpush2.msra.mxu0 %v4162
    %4164 = vmatprep.subr.mxu0 0.0
    %v4165 = vand.u32 %v3516, 4294901760
    %4166 = vmatpush2.msra.mxu0 %v4165
    %4167 = vmatprep.subr.mxu0 0.0
    %v4168 = vand.u32 %v3515, 4294901760
    %4169 = vmatpush2.msra.mxu0 %v4168
    %4170 = vmatprep.subr.mxu0 0.0
    %v4171 = vand.u32 %v3514, 4294901760
    %4172 = vmatpush2.msra.mxu0 %v4171
    %4173 = vmatprep.subr.mxu0 0.0
    %v4174 = vand.u32 %v3513, 4294901760
    %4175 = vmatpush2.msra.mxu0 %v4174
    %4176 = vmatprep.subr.mxu0 0.0
    %v4177 = vand.u32 %v3512, 4294901760
    %4178 = vmatpush2.msra.mxu0 %v4177
    %4179 = vmatprep.subr.mxu0 0.0
    %v4180 = vand.u32 %v3511, 4294901760
    %4181 = vmatpush2.msra.mxu0 %v4180
    %4182 = vmatprep.subr.mxu0 0.0
    %v4183 = vand.u32 %v3510, 4294901760
    %4184 = vmatpush2.msra.mxu0 %v4183
    %4185 = vmatprep.subr.mxu0 0.0
    %v4186 = vand.u32 %v3509, 4294901760
    %4187 = vmatpush2.msra.mxu0 %v4186
    %4188 = vmatprep.subr.mxu0 0.0
    %v4189 = vand.u32 %v3508, 4294901760
    %4190 = vmatpush2.msra.mxu0 %v4189
    %4191 = vmatprep.subr.mxu0 0.0
    %v4192 = vand.u32 %v3507, 4294901760
    %4193 = vmatpush2.msra.mxu0 %v4192
    %4194 = vmatprep.subr.mxu0 0.0
    %v4195 = vand.u32 %v3506, 4294901760
    %4196 = vmatpush2.msra.mxu0 %v4195
    %4197 = vmatprep.subr.mxu0 0.0
    %v4198 = vand.u32 %v3505, 4294901760
    %4199 = vmatpush2.msra.mxu0 %v4198
    %4200 = vmatprep.subr.mxu0 0.0
    %v4201 = vand.u32 %v3504, 4294901760
    %4202 = vmatpush2.msra.mxu0 %v4201
    %4203 = vmatprep.subr.mxu0 0.0
    %v4204 = vand.u32 %v3503, 4294901760
    %4205 = vmatpush2.msra.mxu0 %v4204
    %4206 = vmatprep.subr.mxu0 0.0
    %v4207 = vand.u32 %v3502, 4294901760
    %4208 = vmatpush2.msra.mxu0 %v4207
    %v4209 = vand.u32 %v3446, 4294901760
    %v4210 = vsub.f32 %v3446, %v4209
    %v4211 = vand.u32 %v4210, 4294901760
    %4212 = vmatprep.mubr.f32.mxu0 %v4211
    %v4213 = vand.u32 %v3466, 4294901760
    %v4214 = vsub.f32 %v3466, %v4213
    %v4215 = vand.u32 %v4214, 4294901760
    %4216 = vmatmul.mubr.f32.gmra.mxu0 %v4215
    %v4217 = vpop.f32.mrf.mxu0
    %v4218 = vadd.f32 %v4083, %v4217
    %v4219 = vpop.f32.mrf.mxu0
    %v4220 = vand.u32 %v3447, 4294901760
    %v4221 = vsub.f32 %v3447, %v4220
    %v4222 = vand.u32 %v4221, 4294901760
    %4223 = vmatprep.mubr.f32.mxu0 %v4222
    %v4224 = vand.u32 %v3467, 4294901760
    %v4225 = vsub.f32 %v3467, %v4224
    %v4226 = vand.u32 %v4225, 4294901760
    %4227 = vmatmul.mubr.f32.gmra.mxu0 %v4226
    %v4228 = vpop.f32.mrf.mxu0
    %v4229 = vadd.f32 %v4092, %v4228
    %v4230 = vpop.f32.mrf.mxu0
    %v4231 = vand.u32 %v3448, 4294901760
    %v4232 = vsub.f32 %v3448, %v4231
    %v4233 = vand.u32 %v4232, 4294901760
    %4234 = vmatprep.mubr.f32.mxu0 %v4233
    %v4235 = vand.u32 %v3468, 4294901760
    %v4236 = vsub.f32 %v3468, %v4235
    %v4237 = vand.u32 %v4236, 4294901760
    %4238 = vmatmul.mubr.f32.gmra.mxu0 %v4237
    %v4239 = vpop.f32.mrf.mxu0
    %v4240 = vadd.f32 %v4101, %v4239
    %v4241 = vpop.f32.mrf.mxu0
    %v4242 = vand.u32 %v3449, 4294901760
    %v4243 = vsub.f32 %v3449, %v4242
    %v4244 = vand.u32 %v4243, 4294901760
    %4245 = vmatprep.mubr.f32.mxu0 %v4244
    %v4246 = vand.u32 %v3469, 4294901760
    %v4247 = vsub.f32 %v3469, %v4246
    %v4248 = vand.u32 %v4247, 4294901760
    %4249 = vmatmul.mubr.f32.gmra.mxu0 %v4248
    %v4250 = vpop.f32.mrf.mxu0
    %v4251 = vadd.f32 %v4110, %v4250
    %v4252 = vpop.f32.mrf.mxu0
    %4253 = vdwg.mxu0
    %4254 = vmatprep.subr.mxu0 0.0
    %v4255 = vand.u32 %v3501, 4294901760
    %v4256 = vsub.f32 %v3501, %v4255
    %v4257 = vand.u32 %v4256, 4294901760
    %4258 = vmatpush1.msra.mxu0 %v4257
    %4259 = vmatprep.subr.mxu0 0.0
    %v4260 = vand.u32 %v3500, 4294901760
    %v4261 = vsub.f32 %v3500, %v4260
    %v4262 = vand.u32 %v4261, 4294901760
    %4263 = vmatpush1.msra.mxu0 %v4262
    %4264 = vmatprep.subr.mxu0 0.0
    %v4265 = vand.u32 %v3499, 4294901760
    %v4266 = vsub.f32 %v3499, %v4265
    %v4267 = vand.u32 %v4266, 4294901760
    %4268 = vmatpush1.msra.mxu0 %v4267
    %4269 = vmatprep.subr.mxu0 0.0
    %v4270 = vand.u32 %v3498, 4294901760
    %v4271 = vsub.f32 %v3498, %v4270
    %v4272 = vand.u32 %v4271, 4294901760
    %4273 = vmatpush1.msra.mxu0 %v4272
    %4274 = vmatprep.subr.mxu0 0.0
    %v4275 = vand.u32 %v3497, 4294901760
    %v4276 = vsub.f32 %v3497, %v4275
    %v4277 = vand.u32 %v4276, 4294901760
    %4278 = vmatpush1.msra.mxu0 %v4277
    %4279 = vmatprep.subr.mxu0 0.0
    %v4280 = vand.u32 %v3496, 4294901760
    %v4281 = vsub.f32 %v3496, %v4280
    %v4282 = vand.u32 %v4281, 4294901760
    %4283 = vmatpush1.msra.mxu0 %v4282
    %4284 = vmatprep.subr.mxu0 0.0
    %v4285 = vand.u32 %v3495, 4294901760
    %v4286 = vsub.f32 %v3495, %v4285
    %v4287 = vand.u32 %v4286, 4294901760
    %4288 = vmatpush1.msra.mxu0 %v4287
    %4289 = vmatprep.subr.mxu0 0.0
    %v4290 = vand.u32 %v3494, 4294901760
    %v4291 = vsub.f32 %v3494, %v4290
    %v4292 = vand.u32 %v4291, 4294901760
    %4293 = vmatpush1.msra.mxu0 %v4292
    %4294 = vmatprep.subr.mxu0 0.0
    %v4295 = vand.u32 %v3493, 4294901760
    %v4296 = vsub.f32 %v3493, %v4295
    %v4297 = vand.u32 %v4296, 4294901760
    %4298 = vmatpush1.msra.mxu0 %v4297
    %4299 = vmatprep.subr.mxu0 0.0
    %v4300 = vand.u32 %v3492, 4294901760
    %v4301 = vsub.f32 %v3492, %v4300
    %v4302 = vand.u32 %v4301, 4294901760
    %4303 = vmatpush1.msra.mxu0 %v4302
    %4304 = vmatprep.subr.mxu0 0.0
    %v4305 = vand.u32 %v3491, 4294901760
    %v4306 = vsub.f32 %v3491, %v4305
    %v4307 = vand.u32 %v4306, 4294901760
    %4308 = vmatpush1.msra.mxu0 %v4307
    %4309 = vmatprep.subr.mxu0 0.0
    %v4310 = vand.u32 %v3490, 4294901760
    %v4311 = vsub.f32 %v3490, %v4310
    %v4312 = vand.u32 %v4311, 4294901760
    %4313 = vmatpush1.msra.mxu0 %v4312
    %4314 = vmatprep.subr.mxu0 0.0
    %v4315 = vand.u32 %v3489, 4294901760
    %v4316 = vsub.f32 %v3489, %v4315
    %v4317 = vand.u32 %v4316, 4294901760
    %4318 = vmatpush1.msra.mxu0 %v4317
    %4319 = vmatprep.subr.mxu0 0.0
    %v4320 = vand.u32 %v3488, 4294901760
    %v4321 = vsub.f32 %v3488, %v4320
    %v4322 = vand.u32 %v4321, 4294901760
    %4323 = vmatpush1.msra.mxu0 %v4322
    %4324 = vmatprep.subr.mxu0 0.0
    %v4325 = vand.u32 %v3487, 4294901760
    %v4326 = vsub.f32 %v3487, %v4325
    %v4327 = vand.u32 %v4326, 4294901760
    %4328 = vmatpush1.msra.mxu0 %v4327
    %4329 = vmatprep.subr.mxu0 0.0
    %v4330 = vand.u32 %v3486, 4294901760
    %v4331 = vsub.f32 %v3486, %v4330
    %v4332 = vand.u32 %v4331, 4294901760
    %4333 = vmatpush1.msra.mxu0 %v4332
    %4334 = vmatprep.subr.mxu0 0.0
    %v4335 = vand.u32 %v3517, 4294901760
    %v4336 = vsub.f32 %v3517, %v4335
    %v4337 = vand.u32 %v4336, 4294901760
    %4338 = vmatpush2.msra.mxu0 %v4337
    %4339 = vmatprep.subr.mxu0 0.0
    %v4340 = vand.u32 %v3516, 4294901760
    %v4341 = vsub.f32 %v3516, %v4340
    %v4342 = vand.u32 %v4341, 4294901760
    %4343 = vmatpush2.msra.mxu0 %v4342
    %4344 = vmatprep.subr.mxu0 0.0
    %v4345 = vand.u32 %v3515, 4294901760
    %v4346 = vsub.f32 %v3515, %v4345
    %v4347 = vand.u32 %v4346, 4294901760
    %4348 = vmatpush2.msra.mxu0 %v4347
    %4349 = vmatprep.subr.mxu0 0.0
    %v4350 = vand.u32 %v3514, 4294901760
    %v4351 = vsub.f32 %v3514, %v4350
    %v4352 = vand.u32 %v4351, 4294901760
    %4353 = vmatpush2.msra.mxu0 %v4352
    %4354 = vmatprep.subr.mxu0 0.0
    %v4355 = vand.u32 %v3513, 4294901760
    %v4356 = vsub.f32 %v3513, %v4355
    %v4357 = vand.u32 %v4356, 4294901760
    %4358 = vmatpush2.msra.mxu0 %v4357
    %4359 = vmatprep.subr.mxu0 0.0
    %v4360 = vand.u32 %v3512, 4294901760
    %v4361 = vsub.f32 %v3512, %v4360
    %v4362 = vand.u32 %v4361, 4294901760
    %4363 = vmatpush2.msra.mxu0 %v4362
    %4364 = vmatprep.subr.mxu0 0.0
    %v4365 = vand.u32 %v3511, 4294901760
    %v4366 = vsub.f32 %v3511, %v4365
    %v4367 = vand.u32 %v4366, 4294901760
    %4368 = vmatpush2.msra.mxu0 %v4367
    %4369 = vmatprep.subr.mxu0 0.0
    %v4370 = vand.u32 %v3510, 4294901760
    %v4371 = vsub.f32 %v3510, %v4370
    %v4372 = vand.u32 %v4371, 4294901760
    %4373 = vmatpush2.msra.mxu0 %v4372
    %4374 = vmatprep.subr.mxu0 0.0
    %v4375 = vand.u32 %v3509, 4294901760
    %v4376 = vsub.f32 %v3509, %v4375
    %v4377 = vand.u32 %v4376, 4294901760
    %4378 = vmatpush2.msra.mxu0 %v4377
    %4379 = vmatprep.subr.mxu0 0.0
    %v4380 = vand.u32 %v3508, 4294901760
    %v4381 = vsub.f32 %v3508, %v4380
    %v4382 = vand.u32 %v4381, 4294901760
    %4383 = vmatpush2.msra.mxu0 %v4382
    %4384 = vmatprep.subr.mxu0 0.0
    %v4385 = vand.u32 %v3507, 4294901760
    %v4386 = vsub.f32 %v3507, %v4385
    %v4387 = vand.u32 %v4386, 4294901760
    %4388 = vmatpush2.msra.mxu0 %v4387
    %4389 = vmatprep.subr.mxu0 0.0
    %v4390 = vand.u32 %v3506, 4294901760
    %v4391 = vsub.f32 %v3506, %v4390
    %v4392 = vand.u32 %v4391, 4294901760
    %4393 = vmatpush2.msra.mxu0 %v4392
    %4394 = vmatprep.subr.mxu0 0.0
    %v4395 = vand.u32 %v3505, 4294901760
    %v4396 = vsub.f32 %v3505, %v4395
    %v4397 = vand.u32 %v4396, 4294901760
    %4398 = vmatpush2.msra.mxu0 %v4397
    %4399 = vmatprep.subr.mxu0 0.0
    %v4400 = vand.u32 %v3504, 4294901760
    %v4401 = vsub.f32 %v3504, %v4400
    %v4402 = vand.u32 %v4401, 4294901760
    %4403 = vmatpush2.msra.mxu0 %v4402
    %4404 = vmatprep.subr.mxu0 0.0
    %v4405 = vand.u32 %v3503, 4294901760
    %v4406 = vsub.f32 %v3503, %v4405
    %v4407 = vand.u32 %v4406, 4294901760
    %4408 = vmatpush2.msra.mxu0 %v4407
    %4409 = vmatprep.subr.mxu0 0.0
    %v4410 = vand.u32 %v3502, 4294901760
    %v4411 = vsub.f32 %v3502, %v4410
    %v4412 = vand.u32 %v4411, 4294901760
    %4413 = vmatpush2.msra.mxu0 %v4412
    %v4414 = vand.u32 %v3446, 4294901760
    %4415 = vmatprep.mubr.f32.mxu0 %v4414
    %v4416 = vand.u32 %v3466, 4294901760
    %4417 = vmatmul.mubr.f32.gmra.mxu0 %v4416
    %v4418 = vpop.f32.mrf.mxu0
    %v4419 = vadd.f32 %v4218, %v4418
    %v4420 = vpop.f32.mrf.mxu0
    %v4421 = vand.u32 %v3447, 4294901760
    %4422 = vmatprep.mubr.f32.mxu0 %v4421
    %v4423 = vand.u32 %v3467, 4294901760
    %4424 = vmatmul.mubr.f32.gmra.mxu0 %v4423
    %v4425 = vpop.f32.mrf.mxu0
    %v4426 = vadd.f32 %v4229, %v4425
    %v4427 = vpop.f32.mrf.mxu0
    %v4428 = vand.u32 %v3448, 4294901760
    %4429 = vmatprep.mubr.f32.mxu0 %v4428
    %v4430 = vand.u32 %v3468, 4294901760
    %4431 = vmatmul.mubr.f32.gmra.mxu0 %v4430
    %v4432 = vpop.f32.mrf.mxu0
    %v4433 = vadd.f32 %v4240, %v4432
    %v4434 = vpop.f32.mrf.mxu0
    %v4435 = vand.u32 %v3449, 4294901760
    %4436 = vmatprep.mubr.f32.mxu0 %v4435
    %v4437 = vand.u32 %v3469, 4294901760
    %4438 = vmatmul.mubr.f32.gmra.mxu0 %v4437
    %v4439 = vpop.f32.mrf.mxu0
    %v4440 = vadd.f32 %v4251, %v4439
    %v4441 = vpop.f32.mrf.mxu0
    %4442 = vdwg.mxu0
    %4443 = vmatprep.subr.mxu0 0.0
    %v4444 = vand.u32 %v3501, 4294901760
    %4445 = vmatpush1.msra.mxu0 %v4444
    %4446 = vmatprep.subr.mxu0 0.0
    %v4447 = vand.u32 %v3500, 4294901760
    %4448 = vmatpush1.msra.mxu0 %v4447
    %4449 = vmatprep.subr.mxu0 0.0
    %v4450 = vand.u32 %v3499, 4294901760
    %4451 = vmatpush1.msra.mxu0 %v4450
    %4452 = vmatprep.subr.mxu0 0.0
    %v4453 = vand.u32 %v3498, 4294901760
    %4454 = vmatpush1.msra.mxu0 %v4453
    %4455 = vmatprep.subr.mxu0 0.0
    %v4456 = vand.u32 %v3497, 4294901760
    %4457 = vmatpush1.msra.mxu0 %v4456
    %4458 = vmatprep.subr.mxu0 0.0
    %v4459 = vand.u32 %v3496, 4294901760
    %4460 = vmatpush1.msra.mxu0 %v4459
    %4461 = vmatprep.subr.mxu0 0.0
    %v4462 = vand.u32 %v3495, 4294901760
    %4463 = vmatpush1.msra.mxu0 %v4462
    %4464 = vmatprep.subr.mxu0 0.0
    %v4465 = vand.u32 %v3494, 4294901760
    %4466 = vmatpush1.msra.mxu0 %v4465
    %4467 = vmatprep.subr.mxu0 0.0
    %v4468 = vand.u32 %v3493, 4294901760
    %4469 = vmatpush1.msra.mxu0 %v4468
    %4470 = vmatprep.subr.mxu0 0.0
    %v4471 = vand.u32 %v3492, 4294901760
    %4472 = vmatpush1.msra.mxu0 %v4471
    %4473 = vmatprep.subr.mxu0 0.0
    %v4474 = vand.u32 %v3491, 4294901760
    %4475 = vmatpush1.msra.mxu0 %v4474
    %4476 = vmatprep.subr.mxu0 0.0
    %v4477 = vand.u32 %v3490, 4294901760
    %4478 = vmatpush1.msra.mxu0 %v4477
    %4479 = vmatprep.subr.mxu0 0.0
    %v4480 = vand.u32 %v3489, 4294901760
    %4481 = vmatpush1.msra.mxu0 %v4480
    %4482 = vmatprep.subr.mxu0 0.0
    %v4483 = vand.u32 %v3488, 4294901760
    %4484 = vmatpush1.msra.mxu0 %v4483
    %4485 = vmatprep.subr.mxu0 0.0
    %v4486 = vand.u32 %v3487, 4294901760
    %4487 = vmatpush1.msra.mxu0 %v4486
    %4488 = vmatprep.subr.mxu0 0.0
    %v4489 = vand.u32 %v3486, 4294901760
    %4490 = vmatpush1.msra.mxu0 %v4489
    %4491 = vmatprep.subr.mxu0 0.0
    %v4492 = vand.u32 %v3517, 4294901760
    %4493 = vmatpush2.msra.mxu0 %v4492
    %4494 = vmatprep.subr.mxu0 0.0
    %v4495 = vand.u32 %v3516, 4294901760
    %4496 = vmatpush2.msra.mxu0 %v4495
    %4497 = vmatprep.subr.mxu0 0.0
    %v4498 = vand.u32 %v3515, 4294901760
    %4499 = vmatpush2.msra.mxu0 %v4498
    %4500 = vmatprep.subr.mxu0 0.0
    %v4501 = vand.u32 %v3514, 4294901760
    %4502 = vmatpush2.msra.mxu0 %v4501
    %4503 = vmatprep.subr.mxu0 0.0
    %v4504 = vand.u32 %v3513, 4294901760
    %4505 = vmatpush2.msra.mxu0 %v4504
    %4506 = vmatprep.subr.mxu0 0.0
    %v4507 = vand.u32 %v3512, 4294901760
    %4508 = vmatpush2.msra.mxu0 %v4507
    %4509 = vmatprep.subr.mxu0 0.0
    %v4510 = vand.u32 %v3511, 4294901760
    %4511 = vmatpush2.msra.mxu0 %v4510
    %4512 = vmatprep.subr.mxu0 0.0
    %v4513 = vand.u32 %v3510, 4294901760
    %4514 = vmatpush2.msra.mxu0 %v4513
    %4515 = vmatprep.subr.mxu0 0.0
    %v4516 = vand.u32 %v3509, 4294901760
    %4517 = vmatpush2.msra.mxu0 %v4516
    %4518 = vmatprep.subr.mxu0 0.0
    %v4519 = vand.u32 %v3508, 4294901760
    %4520 = vmatpush2.msra.mxu0 %v4519
    %4521 = vmatprep.subr.mxu0 0.0
    %v4522 = vand.u32 %v3507, 4294901760
    %4523 = vmatpush2.msra.mxu0 %v4522
    %4524 = vmatprep.subr.mxu0 0.0
    %v4525 = vand.u32 %v3506, 4294901760
    %4526 = vmatpush2.msra.mxu0 %v4525
    %4527 = vmatprep.subr.mxu0 0.0
    %v4528 = vand.u32 %v3505, 4294901760
    %4529 = vmatpush2.msra.mxu0 %v4528
    %4530 = vmatprep.subr.mxu0 0.0
    %v4531 = vand.u32 %v3504, 4294901760
    %4532 = vmatpush2.msra.mxu0 %v4531
    %4533 = vmatprep.subr.mxu0 0.0
    %v4534 = vand.u32 %v3503, 4294901760
    %4535 = vmatpush2.msra.mxu0 %v4534
    %4536 = vmatprep.subr.mxu0 0.0
    %v4537 = vand.u32 %v3502, 4294901760
    %4538 = vmatpush2.msra.mxu0 %v4537
    %v4539 = vand.u32 %v3446, 4294901760
    %4540 = vmatprep.mubr.f32.mxu0 %v4539
    %v4541 = vand.u32 %v3466, 4294901760
    %4542 = vmatmul.mubr.f32.gmra.mxu0 %v4541
    %v4543 = vpop.f32.mrf.mxu0
    %v4544 = vadd.f32 %v4419, %v4543
    %v4545 = vpop.f32.mrf.mxu0
    %v4546 = vand.u32 %v3447, 4294901760
    %4547 = vmatprep.mubr.f32.mxu0 %v4546
    %v4548 = vand.u32 %v3467, 4294901760
    %4549 = vmatmul.mubr.f32.gmra.mxu0 %v4548
    %v4550 = vpop.f32.mrf.mxu0
    %v4551 = vadd.f32 %v4426, %v4550
    %v4552 = vpop.f32.mrf.mxu0
    %v4553 = vand.u32 %v3448, 4294901760
    %4554 = vmatprep.mubr.f32.mxu0 %v4553
    %v4555 = vand.u32 %v3468, 4294901760
    %4556 = vmatmul.mubr.f32.gmra.mxu0 %v4555
    %v4557 = vpop.f32.mrf.mxu0
    %v4558 = vadd.f32 %v4433, %v4557
    %v4559 = vpop.f32.mrf.mxu0
    %v4560 = vand.u32 %v3449, 4294901760
    %4561 = vmatprep.mubr.f32.mxu0 %v4560
    %v4562 = vand.u32 %v3469, 4294901760
    %4563 = vmatmul.mubr.f32.gmra.mxu0 %v4562
    %v4564 = vpop.f32.mrf.mxu0
    %v4565 = vadd.f32 %v4440, %v4564
    %v4566 = vpop.f32.mrf.mxu0
    %4567 = vdwg.mxu0
    %4568 = vmatprep.subr.mxu0 0.0
    %v4569 = vand.u32 %v3533, 4294901760
    %4570 = vmatpush1.msra.mxu0 %v4569
    %4571 = vmatprep.subr.mxu0 0.0
    %v4572 = vand.u32 %v3532, 4294901760
    %4573 = vmatpush1.msra.mxu0 %v4572
    %4574 = vmatprep.subr.mxu0 0.0
    %v4575 = vand.u32 %v3531, 4294901760
    %4576 = vmatpush1.msra.mxu0 %v4575
    %4577 = vmatprep.subr.mxu0 0.0
    %v4578 = vand.u32 %v3530, 4294901760
    %4579 = vmatpush1.msra.mxu0 %v4578
    %4580 = vmatprep.subr.mxu0 0.0
    %v4581 = vand.u32 %v3529, 4294901760
    %4582 = vmatpush1.msra.mxu0 %v4581
    %4583 = vmatprep.subr.mxu0 0.0
    %v4584 = vand.u32 %v3528, 4294901760
    %4585 = vmatpush1.msra.mxu0 %v4584
    %4586 = vmatprep.subr.mxu0 0.0
    %v4587 = vand.u32 %v3527, 4294901760
    %4588 = vmatpush1.msra.mxu0 %v4587
    %4589 = vmatprep.subr.mxu0 0.0
    %v4590 = vand.u32 %v3526, 4294901760
    %4591 = vmatpush1.msra.mxu0 %v4590
    %4592 = vmatprep.subr.mxu0 0.0
    %v4593 = vand.u32 %v3525, 4294901760
    %4594 = vmatpush1.msra.mxu0 %v4593
    %4595 = vmatprep.subr.mxu0 0.0
    %v4596 = vand.u32 %v3524, 4294901760
    %4597 = vmatpush1.msra.mxu0 %v4596
    %4598 = vmatprep.subr.mxu0 0.0
    %v4599 = vand.u32 %v3523, 4294901760
    %4600 = vmatpush1.msra.mxu0 %v4599
    %4601 = vmatprep.subr.mxu0 0.0
    %v4602 = vand.u32 %v3522, 4294901760
    %4603 = vmatpush1.msra.mxu0 %v4602
    %4604 = vmatprep.subr.mxu0 0.0
    %v4605 = vand.u32 %v3521, 4294901760
    %4606 = vmatpush1.msra.mxu0 %v4605
    %4607 = vmatprep.subr.mxu0 0.0
    %v4608 = vand.u32 %v3520, 4294901760
    %4609 = vmatpush1.msra.mxu0 %v4608
    %4610 = vmatprep.subr.mxu0 0.0
    %v4611 = vand.u32 %v3519, 4294901760
    %4612 = vmatpush1.msra.mxu0 %v4611
    %4613 = vmatprep.subr.mxu0 0.0
    %v4614 = vand.u32 %v3518, 4294901760
    %4615 = vmatpush1.msra.mxu0 %v4614
    %4616 = vmatprep.subr.mxu0 0.0
    %4617 = vmatpush2.msra.mxu0 0.0
    %4618 = vmatprep.subr.mxu0 0.0
    %4619 = vmatpush2.msra.mxu0 0.0
    %4620 = vmatprep.subr.mxu0 0.0
    %4621 = vmatpush2.msra.mxu0 0.0
    %4622 = vmatprep.subr.mxu0 0.0
    %4623 = vmatpush2.msra.mxu0 0.0
    %4624 = vmatprep.subr.mxu0 0.0
    %4625 = vmatpush2.msra.mxu0 0.0
    %4626 = vmatprep.subr.mxu0 0.0
    %4627 = vmatpush2.msra.mxu0 0.0
    %4628 = vmatprep.subr.mxu0 0.0
    %4629 = vmatpush2.msra.mxu0 0.0
    %4630 = vmatprep.subr.mxu0 0.0
    %4631 = vmatpush2.msra.mxu0 0.0
    %4632 = vmatprep.subr.mxu0 0.0
    %4633 = vmatpush2.msra.mxu0 0.0
    %4634 = vmatprep.subr.mxu0 0.0
    %4635 = vmatpush2.msra.mxu0 0.0
    %4636 = vmatprep.subr.mxu0 0.0
    %4637 = vmatpush2.msra.mxu0 0.0
    %4638 = vmatprep.subr.mxu0 0.0
    %4639 = vmatpush2.msra.mxu0 0.0
    %4640 = vmatprep.subr.mxu0 0.0
    %4641 = vmatpush2.msra.mxu0 0.0
    %4642 = vmatprep.subr.mxu0 0.0
    %4643 = vmatpush2.msra.mxu0 0.0
    %4644 = vmatprep.subr.mxu0 0.0
    %4645 = vmatpush2.msra.mxu0 0.0
    %4646 = vmatprep.subr.mxu0 0.0
    %4647 = vmatpush2.msra.mxu0 0.0
    %4648 = vmatprep.mubr.f32.mxu0 0.0
    %v4649 = vand.u32 %v3482, 4294901760
    %v4650 = vsub.f32 %v3482, %v4649
    %v4651 = vand.u32 %v4650, 4294901760
    %v4652 = vsub.f32 %v4650, %v4651
    %v4653 = vand.u32 %v4652, 4294901760
    %4654 = vmatmul.mubr.f32.gmra.mxu0 %v4653
    %v4655 = vpop.f32.mrf.mxu0
    %v4656 = vadd.f32 %v4544, %v4655
    %v4657 = vpop.f32.mrf.mxu0
    %4658 = vmatprep.mubr.f32.mxu0 0.0
    %v4659 = vand.u32 %v3483, 4294901760
    %v4660 = vsub.f32 %v3483, %v4659
    %v4661 = vand.u32 %v4660, 4294901760
    %v4662 = vsub.f32 %v4660, %v4661
    %v4663 = vand.u32 %v4662, 4294901760
    %4664 = vmatmul.mubr.f32.gmra.mxu0 %v4663
    %v4665 = vpop.f32.mrf.mxu0
    %v4666 = vadd.f32 %v4551, %v4665
    %v4667 = vpop.f32.mrf.mxu0
    %4668 = vmatprep.mubr.f32.mxu0 0.0
    %v4669 = vand.u32 %v3484, 4294901760
    %v4670 = vsub.f32 %v3484, %v4669
    %v4671 = vand.u32 %v4670, 4294901760
    %v4672 = vsub.f32 %v4670, %v4671
    %v4673 = vand.u32 %v4672, 4294901760
    %4674 = vmatmul.mubr.f32.gmra.mxu0 %v4673
    %v4675 = vpop.f32.mrf.mxu0
    %v4676 = vadd.f32 %v4558, %v4675
    %v4677 = vpop.f32.mrf.mxu0
    %4678 = vmatprep.mubr.f32.mxu0 0.0
    %v4679 = vand.u32 %v3485, 4294901760
    %v4680 = vsub.f32 %v3485, %v4679
    %v4681 = vand.u32 %v4680, 4294901760
    %v4682 = vsub.f32 %v4680, %v4681
    %v4683 = vand.u32 %v4682, 4294901760
    %4684 = vmatmul.mubr.f32.gmra.mxu0 %v4683
    %v4685 = vpop.f32.mrf.mxu0
    %v4686 = vadd.f32 %v4565, %v4685
    %v4687 = vpop.f32.mrf.mxu0
    %4688 = vdwg.mxu0
    %4689 = vmatprep.subr.mxu0 0.0
    %v4690 = vand.u32 %v3533, 4294901760
    %v4691 = vsub.f32 %v3533, %v4690
    %v4692 = vand.u32 %v4691, 4294901760
    %v4693 = vsub.f32 %v4691, %v4692
    %v4694 = vand.u32 %v4693, 4294901760
    %4695 = vmatpush1.msra.mxu0 %v4694
    %4696 = vmatprep.subr.mxu0 0.0
    %v4697 = vand.u32 %v3532, 4294901760
    %v4698 = vsub.f32 %v3532, %v4697
    %v4699 = vand.u32 %v4698, 4294901760
    %v4700 = vsub.f32 %v4698, %v4699
    %v4701 = vand.u32 %v4700, 4294901760
    %4702 = vmatpush1.msra.mxu0 %v4701
    %4703 = vmatprep.subr.mxu0 0.0
    %v4704 = vand.u32 %v3531, 4294901760
    %v4705 = vsub.f32 %v3531, %v4704
    %v4706 = vand.u32 %v4705, 4294901760
    %v4707 = vsub.f32 %v4705, %v4706
    %v4708 = vand.u32 %v4707, 4294901760
    %4709 = vmatpush1.msra.mxu0 %v4708
    %4710 = vmatprep.subr.mxu0 0.0
    %v4711 = vand.u32 %v3530, 4294901760
    %v4712 = vsub.f32 %v3530, %v4711
    %v4713 = vand.u32 %v4712, 4294901760
    %v4714 = vsub.f32 %v4712, %v4713
    %v4715 = vand.u32 %v4714, 4294901760
    %4716 = vmatpush1.msra.mxu0 %v4715
    %4717 = vmatprep.subr.mxu0 0.0
    %v4718 = vand.u32 %v3529, 4294901760
    %v4719 = vsub.f32 %v3529, %v4718
    %v4720 = vand.u32 %v4719, 4294901760
    %v4721 = vsub.f32 %v4719, %v4720
    %v4722 = vand.u32 %v4721, 4294901760
    %4723 = vmatpush1.msra.mxu0 %v4722
    %4724 = vmatprep.subr.mxu0 0.0
    %v4725 = vand.u32 %v3528, 4294901760
    %v4726 = vsub.f32 %v3528, %v4725
    %v4727 = vand.u32 %v4726, 4294901760
    %v4728 = vsub.f32 %v4726, %v4727
    %v4729 = vand.u32 %v4728, 4294901760
    %4730 = vmatpush1.msra.mxu0 %v4729
    %4731 = vmatprep.subr.mxu0 0.0
    %v4732 = vand.u32 %v3527, 4294901760
    %v4733 = vsub.f32 %v3527, %v4732
    %v4734 = vand.u32 %v4733, 4294901760
    %v4735 = vsub.f32 %v4733, %v4734
    %v4736 = vand.u32 %v4735, 4294901760
    %4737 = vmatpush1.msra.mxu0 %v4736
    %4738 = vmatprep.subr.mxu0 0.0
    %v4739 = vand.u32 %v3526, 4294901760
    %v4740 = vsub.f32 %v3526, %v4739
    %v4741 = vand.u32 %v4740, 4294901760
    %v4742 = vsub.f32 %v4740, %v4741
    %v4743 = vand.u32 %v4742, 4294901760
    %4744 = vmatpush1.msra.mxu0 %v4743
    %4745 = vmatprep.subr.mxu0 0.0
    %v4746 = vand.u32 %v3525, 4294901760
    %v4747 = vsub.f32 %v3525, %v4746
    %v4748 = vand.u32 %v4747, 4294901760
    %v4749 = vsub.f32 %v4747, %v4748
    %v4750 = vand.u32 %v4749, 4294901760
    %4751 = vmatpush1.msra.mxu0 %v4750
    %4752 = vmatprep.subr.mxu0 0.0
    %v4753 = vand.u32 %v3524, 4294901760
    %v4754 = vsub.f32 %v3524, %v4753
    %v4755 = vand.u32 %v4754, 4294901760
    %v4756 = vsub.f32 %v4754, %v4755
    %v4757 = vand.u32 %v4756, 4294901760
    %4758 = vmatpush1.msra.mxu0 %v4757
    %4759 = vmatprep.subr.mxu0 0.0
    %v4760 = vand.u32 %v3523, 4294901760
    %v4761 = vsub.f32 %v3523, %v4760
    %v4762 = vand.u32 %v4761, 4294901760
    %v4763 = vsub.f32 %v4761, %v4762
    %v4764 = vand.u32 %v4763, 4294901760
    %4765 = vmatpush1.msra.mxu0 %v4764
    %4766 = vmatprep.subr.mxu0 0.0
    %v4767 = vand.u32 %v3522, 4294901760
    %v4768 = vsub.f32 %v3522, %v4767
    %v4769 = vand.u32 %v4768, 4294901760
    %v4770 = vsub.f32 %v4768, %v4769
    %v4771 = vand.u32 %v4770, 4294901760
    %4772 = vmatpush1.msra.mxu0 %v4771
    %4773 = vmatprep.subr.mxu0 0.0
    %v4774 = vand.u32 %v3521, 4294901760
    %v4775 = vsub.f32 %v3521, %v4774
    %v4776 = vand.u32 %v4775, 4294901760
    %v4777 = vsub.f32 %v4775, %v4776
    %v4778 = vand.u32 %v4777, 4294901760
    %4779 = vmatpush1.msra.mxu0 %v4778
    %4780 = vmatprep.subr.mxu0 0.0
    %v4781 = vand.u32 %v3520, 4294901760
    %v4782 = vsub.f32 %v3520, %v4781
    %v4783 = vand.u32 %v4782, 4294901760
    %v4784 = vsub.f32 %v4782, %v4783
    %v4785 = vand.u32 %v4784, 4294901760
    %4786 = vmatpush1.msra.mxu0 %v4785
    %4787 = vmatprep.subr.mxu0 0.0
    %v4788 = vand.u32 %v3519, 4294901760
    %v4789 = vsub.f32 %v3519, %v4788
    %v4790 = vand.u32 %v4789, 4294901760
    %v4791 = vsub.f32 %v4789, %v4790
    %v4792 = vand.u32 %v4791, 4294901760
    %4793 = vmatpush1.msra.mxu0 %v4792
    %4794 = vmatprep.subr.mxu0 0.0
    %v4795 = vand.u32 %v3518, 4294901760
    %v4796 = vsub.f32 %v3518, %v4795
    %v4797 = vand.u32 %v4796, 4294901760
    %v4798 = vsub.f32 %v4796, %v4797
    %v4799 = vand.u32 %v4798, 4294901760
    %4800 = vmatpush1.msra.mxu0 %v4799
    %4801 = vmatprep.subr.mxu0 0.0
    %4802 = vmatpush2.msra.mxu0 0.0
    %4803 = vmatprep.subr.mxu0 0.0
    %4804 = vmatpush2.msra.mxu0 0.0
    %4805 = vmatprep.subr.mxu0 0.0
    %4806 = vmatpush2.msra.mxu0 0.0
    %4807 = vmatprep.subr.mxu0 0.0
    %4808 = vmatpush2.msra.mxu0 0.0
    %4809 = vmatprep.subr.mxu0 0.0
    %4810 = vmatpush2.msra.mxu0 0.0
    %4811 = vmatprep.subr.mxu0 0.0
    %4812 = vmatpush2.msra.mxu0 0.0
    %4813 = vmatprep.subr.mxu0 0.0
    %4814 = vmatpush2.msra.mxu0 0.0
    %4815 = vmatprep.subr.mxu0 0.0
    %4816 = vmatpush2.msra.mxu0 0.0
    %4817 = vmatprep.subr.mxu0 0.0
    %4818 = vmatpush2.msra.mxu0 0.0
    %4819 = vmatprep.subr.mxu0 0.0
    %4820 = vmatpush2.msra.mxu0 0.0
    %4821 = vmatprep.subr.mxu0 0.0
    %4822 = vmatpush2.msra.mxu0 0.0
    %4823 = vmatprep.subr.mxu0 0.0
    %4824 = vmatpush2.msra.mxu0 0.0
    %4825 = vmatprep.subr.mxu0 0.0
    %4826 = vmatpush2.msra.mxu0 0.0
    %4827 = vmatprep.subr.mxu0 0.0
    %4828 = vmatpush2.msra.mxu0 0.0
    %4829 = vmatprep.subr.mxu0 0.0
    %4830 = vmatpush2.msra.mxu0 0.0
    %4831 = vmatprep.subr.mxu0 0.0
    %4832 = vmatpush2.msra.mxu0 0.0
    %4833 = vmatprep.mubr.f32.mxu0 0.0
    %v4834 = vand.u32 %v3482, 4294901760
    %4835 = vmatmul.mubr.f32.gmra.mxu0 %v4834
    %v4836 = vpop.f32.mrf.mxu0
    %v4837 = vadd.f32 %v4656, %v4836
    %v4838 = vpop.f32.mrf.mxu0
    %4839 = vmatprep.mubr.f32.mxu0 0.0
    %v4840 = vand.u32 %v3483, 4294901760
    %4841 = vmatmul.mubr.f32.gmra.mxu0 %v4840
    %v4842 = vpop.f32.mrf.mxu0
    %v4843 = vadd.f32 %v4666, %v4842
    %v4844 = vpop.f32.mrf.mxu0
    %4845 = vmatprep.mubr.f32.mxu0 0.0
    %v4846 = vand.u32 %v3484, 4294901760
    %4847 = vmatmul.mubr.f32.gmra.mxu0 %v4846
    %v4848 = vpop.f32.mrf.mxu0
    %v4849 = vadd.f32 %v4676, %v4848
    %v4850 = vpop.f32.mrf.mxu0
    %4851 = vmatprep.mubr.f32.mxu0 0.0
    %v4852 = vand.u32 %v3485, 4294901760
    %4853 = vmatmul.mubr.f32.gmra.mxu0 %v4852
    %v4854 = vpop.f32.mrf.mxu0
    %v4855 = vadd.f32 %v4686, %v4854
    %v4856 = vpop.f32.mrf.mxu0
    %4857 = vdwg.mxu0
    %4858 = vmatprep.subr.mxu0 0.0
    %v4859 = vand.u32 %v3533, 4294901760
    %v4860 = vsub.f32 %v3533, %v4859
    %4861 = vmatpush1.msra.mxu0 %v4860
    %4862 = vmatprep.subr.mxu0 0.0
    %v4863 = vand.u32 %v3532, 4294901760
    %v4864 = vsub.f32 %v3532, %v4863
    %4865 = vmatpush1.msra.mxu0 %v4864
    %4866 = vmatprep.subr.mxu0 0.0
    %v4867 = vand.u32 %v3531, 4294901760
    %v4868 = vsub.f32 %v3531, %v4867
    %4869 = vmatpush1.msra.mxu0 %v4868
    %4870 = vmatprep.subr.mxu0 0.0
    %v4871 = vand.u32 %v3530, 4294901760
    %v4872 = vsub.f32 %v3530, %v4871
    %4873 = vmatpush1.msra.mxu0 %v4872
    %4874 = vmatprep.subr.mxu0 0.0
    %v4875 = vand.u32 %v3529, 4294901760
    %v4876 = vsub.f32 %v3529, %v4875
    %4877 = vmatpush1.msra.mxu0 %v4876
    %4878 = vmatprep.subr.mxu0 0.0
    %v4879 = vand.u32 %v3528, 4294901760
    %v4880 = vsub.f32 %v3528, %v4879
    %4881 = vmatpush1.msra.mxu0 %v4880
    %4882 = vmatprep.subr.mxu0 0.0
    %v4883 = vand.u32 %v3527, 4294901760
    %v4884 = vsub.f32 %v3527, %v4883
    %4885 = vmatpush1.msra.mxu0 %v4884
    %4886 = vmatprep.subr.mxu0 0.0
    %v4887 = vand.u32 %v3526, 4294901760
    %v4888 = vsub.f32 %v3526, %v4887
    %4889 = vmatpush1.msra.mxu0 %v4888
    %4890 = vmatprep.subr.mxu0 0.0
    %v4891 = vand.u32 %v3525, 4294901760
    %v4892 = vsub.f32 %v3525, %v4891
    %4893 = vmatpush1.msra.mxu0 %v4892
    %4894 = vmatprep.subr.mxu0 0.0
    %v4895 = vand.u32 %v3524, 4294901760
    %v4896 = vsub.f32 %v3524, %v4895
    %4897 = vmatpush1.msra.mxu0 %v4896
    %4898 = vmatprep.subr.mxu0 0.0
    %v4899 = vand.u32 %v3523, 4294901760
    %v4900 = vsub.f32 %v3523, %v4899
    %4901 = vmatpush1.msra.mxu0 %v4900
    %4902 = vmatprep.subr.mxu0 0.0
    %v4903 = vand.u32 %v3522, 4294901760
    %v4904 = vsub.f32 %v3522, %v4903
    %4905 = vmatpush1.msra.mxu0 %v4904
    %4906 = vmatprep.subr.mxu0 0.0
    %v4907 = vand.u32 %v3521, 4294901760
    %v4908 = vsub.f32 %v3521, %v4907
    %4909 = vmatpush1.msra.mxu0 %v4908
    %4910 = vmatprep.subr.mxu0 0.0
    %v4911 = vand.u32 %v3520, 4294901760
    %v4912 = vsub.f32 %v3520, %v4911
    %4913 = vmatpush1.msra.mxu0 %v4912
    %4914 = vmatprep.subr.mxu0 0.0
    %v4915 = vand.u32 %v3519, 4294901760
    %v4916 = vsub.f32 %v3519, %v4915
    %4917 = vmatpush1.msra.mxu0 %v4916
    %4918 = vmatprep.subr.mxu0 0.0
    %v4919 = vand.u32 %v3518, 4294901760
    %v4920 = vsub.f32 %v3518, %v4919
    %4921 = vmatpush1.msra.mxu0 %v4920
    %4922 = vmatprep.subr.mxu0 0.0
    %4923 = vmatpush2.msra.mxu0 0.0
    %4924 = vmatprep.subr.mxu0 0.0
    %4925 = vmatpush2.msra.mxu0 0.0
    %4926 = vmatprep.subr.mxu0 0.0
    %4927 = vmatpush2.msra.mxu0 0.0
    %4928 = vmatprep.subr.mxu0 0.0
    %4929 = vmatpush2.msra.mxu0 0.0
    %4930 = vmatprep.subr.mxu0 0.0
    %4931 = vmatpush2.msra.mxu0 0.0
    %4932 = vmatprep.subr.mxu0 0.0
    %4933 = vmatpush2.msra.mxu0 0.0
    %4934 = vmatprep.subr.mxu0 0.0
    %4935 = vmatpush2.msra.mxu0 0.0
    %4936 = vmatprep.subr.mxu0 0.0
    %4937 = vmatpush2.msra.mxu0 0.0
    %4938 = vmatprep.subr.mxu0 0.0
    %4939 = vmatpush2.msra.mxu0 0.0
    %4940 = vmatprep.subr.mxu0 0.0
    %4941 = vmatpush2.msra.mxu0 0.0
    %4942 = vmatprep.subr.mxu0 0.0
    %4943 = vmatpush2.msra.mxu0 0.0
    %4944 = vmatprep.subr.mxu0 0.0
    %4945 = vmatpush2.msra.mxu0 0.0
    %4946 = vmatprep.subr.mxu0 0.0
    %4947 = vmatpush2.msra.mxu0 0.0
    %4948 = vmatprep.subr.mxu0 0.0
    %4949 = vmatpush2.msra.mxu0 0.0
    %4950 = vmatprep.subr.mxu0 0.0
    %4951 = vmatpush2.msra.mxu0 0.0
    %4952 = vmatprep.subr.mxu0 0.0
    %4953 = vmatpush2.msra.mxu0 0.0
    %4954 = vmatprep.mubr.f32.mxu0 0.0
    %v4955 = vand.u32 %v3482, 4294901760
    %v4956 = vsub.f32 %v3482, %v4955
    %4957 = vmatmul.mubr.f32.gmra.mxu0 %v4956
    %v4958 = vpop.f32.mrf.mxu0
    %v4959 = vadd.f32 %v4837, %v4958
    %v4960 = vpop.f32.mrf.mxu0
    %4961 = vmatprep.mubr.f32.mxu0 0.0
    %v4962 = vand.u32 %v3483, 4294901760
    %v4963 = vsub.f32 %v3483, %v4962
    %4964 = vmatmul.mubr.f32.gmra.mxu0 %v4963
    %v4965 = vpop.f32.mrf.mxu0
    %v4966 = vadd.f32 %v4843, %v4965
    %v4967 = vpop.f32.mrf.mxu0
    %4968 = vmatprep.mubr.f32.mxu0 0.0
    %v4969 = vand.u32 %v3484, 4294901760
    %v4970 = vsub.f32 %v3484, %v4969
    %4971 = vmatmul.mubr.f32.gmra.mxu0 %v4970
    %v4972 = vpop.f32.mrf.mxu0
    %v4973 = vadd.f32 %v4849, %v4972
    %v4974 = vpop.f32.mrf.mxu0
    %4975 = vmatprep.mubr.f32.mxu0 0.0
    %v4976 = vand.u32 %v3485, 4294901760
    %v4977 = vsub.f32 %v3485, %v4976
    %4978 = vmatmul.mubr.f32.gmra.mxu0 %v4977
    %v4979 = vpop.f32.mrf.mxu0
    %v4980 = vadd.f32 %v4855, %v4979
    %v4981 = vpop.f32.mrf.mxu0
    %4982 = vdwg.mxu0
    %4983 = vmatprep.subr.mxu0 0.0
    %v4984 = vand.u32 %v3533, 4294901760
    %4985 = vmatpush1.msra.mxu0 %v4984
    %4986 = vmatprep.subr.mxu0 0.0
    %v4987 = vand.u32 %v3532, 4294901760
    %4988 = vmatpush1.msra.mxu0 %v4987
    %4989 = vmatprep.subr.mxu0 0.0
    %v4990 = vand.u32 %v3531, 4294901760
    %4991 = vmatpush1.msra.mxu0 %v4990
    %4992 = vmatprep.subr.mxu0 0.0
    %v4993 = vand.u32 %v3530, 4294901760
    %4994 = vmatpush1.msra.mxu0 %v4993
    %4995 = vmatprep.subr.mxu0 0.0
    %v4996 = vand.u32 %v3529, 4294901760
    %4997 = vmatpush1.msra.mxu0 %v4996
    %4998 = vmatprep.subr.mxu0 0.0
    %v4999 = vand.u32 %v3528, 4294901760
    %5000 = vmatpush1.msra.mxu0 %v4999
    %5001 = vmatprep.subr.mxu0 0.0
    %v5002 = vand.u32 %v3527, 4294901760
    %5003 = vmatpush1.msra.mxu0 %v5002
    %5004 = vmatprep.subr.mxu0 0.0
    %v5005 = vand.u32 %v3526, 4294901760
    %5006 = vmatpush1.msra.mxu0 %v5005
    %5007 = vmatprep.subr.mxu0 0.0
    %v5008 = vand.u32 %v3525, 4294901760
    %5009 = vmatpush1.msra.mxu0 %v5008
    %5010 = vmatprep.subr.mxu0 0.0
    %v5011 = vand.u32 %v3524, 4294901760
    %5012 = vmatpush1.msra.mxu0 %v5011
    %5013 = vmatprep.subr.mxu0 0.0
    %v5014 = vand.u32 %v3523, 4294901760
    %5015 = vmatpush1.msra.mxu0 %v5014
    %5016 = vmatprep.subr.mxu0 0.0
    %v5017 = vand.u32 %v3522, 4294901760
    %5018 = vmatpush1.msra.mxu0 %v5017
    %5019 = vmatprep.subr.mxu0 0.0
    %v5020 = vand.u32 %v3521, 4294901760
    %5021 = vmatpush1.msra.mxu0 %v5020
    %5022 = vmatprep.subr.mxu0 0.0
    %v5023 = vand.u32 %v3520, 4294901760
    %5024 = vmatpush1.msra.mxu0 %v5023
    %5025 = vmatprep.subr.mxu0 0.0
    %v5026 = vand.u32 %v3519, 4294901760
    %5027 = vmatpush1.msra.mxu0 %v5026
    %5028 = vmatprep.subr.mxu0 0.0
    %v5029 = vand.u32 %v3518, 4294901760
    %5030 = vmatpush1.msra.mxu0 %v5029
    %5031 = vmatprep.subr.mxu0 0.0
    %5032 = vmatpush2.msra.mxu0 0.0
    %5033 = vmatprep.subr.mxu0 0.0
    %5034 = vmatpush2.msra.mxu0 0.0
    %5035 = vmatprep.subr.mxu0 0.0
    %5036 = vmatpush2.msra.mxu0 0.0
    %5037 = vmatprep.subr.mxu0 0.0
    %5038 = vmatpush2.msra.mxu0 0.0
    %5039 = vmatprep.subr.mxu0 0.0
    %5040 = vmatpush2.msra.mxu0 0.0
    %5041 = vmatprep.subr.mxu0 0.0
    %5042 = vmatpush2.msra.mxu0 0.0
    %5043 = vmatprep.subr.mxu0 0.0
    %5044 = vmatpush2.msra.mxu0 0.0
    %5045 = vmatprep.subr.mxu0 0.0
    %5046 = vmatpush2.msra.mxu0 0.0
    %5047 = vmatprep.subr.mxu0 0.0
    %5048 = vmatpush2.msra.mxu0 0.0
    %5049 = vmatprep.subr.mxu0 0.0
    %5050 = vmatpush2.msra.mxu0 0.0
    %5051 = vmatprep.subr.mxu0 0.0
    %5052 = vmatpush2.msra.mxu0 0.0
    %5053 = vmatprep.subr.mxu0 0.0
    %5054 = vmatpush2.msra.mxu0 0.0
    %5055 = vmatprep.subr.mxu0 0.0
    %5056 = vmatpush2.msra.mxu0 0.0
    %5057 = vmatprep.subr.mxu0 0.0
    %5058 = vmatpush2.msra.mxu0 0.0
    %5059 = vmatprep.subr.mxu0 0.0
    %5060 = vmatpush2.msra.mxu0 0.0
    %5061 = vmatprep.subr.mxu0 0.0
    %5062 = vmatpush2.msra.mxu0 0.0
    %5063 = vmatprep.mubr.f32.mxu0 0.0
    %v5064 = vand.u32 %v3482, 4294901760
    %v5065 = vsub.f32 %v3482, %v5064
    %v5066 = vand.u32 %v5065, 4294901760
    %5067 = vmatmul.mubr.f32.gmra.mxu0 %v5066
    %v5068 = vpop.f32.mrf.mxu0
    %v5069 = vadd.f32 %v4959, %v5068
    %v5070 = vpop.f32.mrf.mxu0
    %5071 = vmatprep.mubr.f32.mxu0 0.0
    %v5072 = vand.u32 %v3483, 4294901760
    %v5073 = vsub.f32 %v3483, %v5072
    %v5074 = vand.u32 %v5073, 4294901760
    %5075 = vmatmul.mubr.f32.gmra.mxu0 %v5074
    %v5076 = vpop.f32.mrf.mxu0
    %v5077 = vadd.f32 %v4966, %v5076
    %v5078 = vpop.f32.mrf.mxu0
    %5079 = vmatprep.mubr.f32.mxu0 0.0
    %v5080 = vand.u32 %v3484, 4294901760
    %v5081 = vsub.f32 %v3484, %v5080
    %v5082 = vand.u32 %v5081, 4294901760
    %5083 = vmatmul.mubr.f32.gmra.mxu0 %v5082
    %v5084 = vpop.f32.mrf.mxu0
    %v5085 = vadd.f32 %v4973, %v5084
    %v5086 = vpop.f32.mrf.mxu0
    %5087 = vmatprep.mubr.f32.mxu0 0.0
    %v5088 = vand.u32 %v3485, 4294901760
    %v5089 = vsub.f32 %v3485, %v5088
    %v5090 = vand.u32 %v5089, 4294901760
    %5091 = vmatmul.mubr.f32.gmra.mxu0 %v5090
    %v5092 = vpop.f32.mrf.mxu0
    %v5093 = vadd.f32 %v4980, %v5092
    %v5094 = vpop.f32.mrf.mxu0
    %5095 = vdwg.mxu0
    %5096 = vmatprep.subr.mxu0 0.0
    %v5097 = vand.u32 %v3533, 4294901760
    %v5098 = vsub.f32 %v3533, %v5097
    %v5099 = vand.u32 %v5098, 4294901760
    %5100 = vmatpush1.msra.mxu0 %v5099
    %5101 = vmatprep.subr.mxu0 0.0
    %v5102 = vand.u32 %v3532, 4294901760
    %v5103 = vsub.f32 %v3532, %v5102
    %v5104 = vand.u32 %v5103, 4294901760
    %5105 = vmatpush1.msra.mxu0 %v5104
    %5106 = vmatprep.subr.mxu0 0.0
    %v5107 = vand.u32 %v3531, 4294901760
    %v5108 = vsub.f32 %v3531, %v5107
    %v5109 = vand.u32 %v5108, 4294901760
    %5110 = vmatpush1.msra.mxu0 %v5109
    %5111 = vmatprep.subr.mxu0 0.0
    %v5112 = vand.u32 %v3530, 4294901760
    %v5113 = vsub.f32 %v3530, %v5112
    %v5114 = vand.u32 %v5113, 4294901760
    %5115 = vmatpush1.msra.mxu0 %v5114
    %5116 = vmatprep.subr.mxu0 0.0
    %v5117 = vand.u32 %v3529, 4294901760
    %v5118 = vsub.f32 %v3529, %v5117
    %v5119 = vand.u32 %v5118, 4294901760
    %5120 = vmatpush1.msra.mxu0 %v5119
    %5121 = vmatprep.subr.mxu0 0.0
    %v5122 = vand.u32 %v3528, 4294901760
    %v5123 = vsub.f32 %v3528, %v5122
    %v5124 = vand.u32 %v5123, 4294901760
    %5125 = vmatpush1.msra.mxu0 %v5124
    %5126 = vmatprep.subr.mxu0 0.0
    %v5127 = vand.u32 %v3527, 4294901760
    %v5128 = vsub.f32 %v3527, %v5127
    %v5129 = vand.u32 %v5128, 4294901760
    %5130 = vmatpush1.msra.mxu0 %v5129
    %5131 = vmatprep.subr.mxu0 0.0
    %v5132 = vand.u32 %v3526, 4294901760
    %v5133 = vsub.f32 %v3526, %v5132
    %v5134 = vand.u32 %v5133, 4294901760
    %5135 = vmatpush1.msra.mxu0 %v5134
    %5136 = vmatprep.subr.mxu0 0.0
    %v5137 = vand.u32 %v3525, 4294901760
    %v5138 = vsub.f32 %v3525, %v5137
    %v5139 = vand.u32 %v5138, 4294901760
    %5140 = vmatpush1.msra.mxu0 %v5139
    %5141 = vmatprep.subr.mxu0 0.0
    %v5142 = vand.u32 %v3524, 4294901760
    %v5143 = vsub.f32 %v3524, %v5142
    %v5144 = vand.u32 %v5143, 4294901760
    %5145 = vmatpush1.msra.mxu0 %v5144
    %5146 = vmatprep.subr.mxu0 0.0
    %v5147 = vand.u32 %v3523, 4294901760
    %v5148 = vsub.f32 %v3523, %v5147
    %v5149 = vand.u32 %v5148, 4294901760
    %5150 = vmatpush1.msra.mxu0 %v5149
    %5151 = vmatprep.subr.mxu0 0.0
    %v5152 = vand.u32 %v3522, 4294901760
    %v5153 = vsub.f32 %v3522, %v5152
    %v5154 = vand.u32 %v5153, 4294901760
    %5155 = vmatpush1.msra.mxu0 %v5154
    %5156 = vmatprep.subr.mxu0 0.0
    %v5157 = vand.u32 %v3521, 4294901760
    %v5158 = vsub.f32 %v3521, %v5157
    %v5159 = vand.u32 %v5158, 4294901760
    %5160 = vmatpush1.msra.mxu0 %v5159
    %5161 = vmatprep.subr.mxu0 0.0
    %v5162 = vand.u32 %v3520, 4294901760
    %v5163 = vsub.f32 %v3520, %v5162
    %v5164 = vand.u32 %v5163, 4294901760
    %5165 = vmatpush1.msra.mxu0 %v5164
    %5166 = vmatprep.subr.mxu0 0.0
    %v5167 = vand.u32 %v3519, 4294901760
    %v5168 = vsub.f32 %v3519, %v5167
    %v5169 = vand.u32 %v5168, 4294901760
    %5170 = vmatpush1.msra.mxu0 %v5169
    %5171 = vmatprep.subr.mxu0 0.0
    %v5172 = vand.u32 %v3518, 4294901760
    %v5173 = vsub.f32 %v3518, %v5172
    %v5174 = vand.u32 %v5173, 4294901760
    %5175 = vmatpush1.msra.mxu0 %v5174
    %5176 = vmatprep.subr.mxu0 0.0
    %5177 = vmatpush2.msra.mxu0 0.0
    %5178 = vmatprep.subr.mxu0 0.0
    %5179 = vmatpush2.msra.mxu0 0.0
    %5180 = vmatprep.subr.mxu0 0.0
    %5181 = vmatpush2.msra.mxu0 0.0
    %5182 = vmatprep.subr.mxu0 0.0
    %5183 = vmatpush2.msra.mxu0 0.0
    %5184 = vmatprep.subr.mxu0 0.0
    %5185 = vmatpush2.msra.mxu0 0.0
    %5186 = vmatprep.subr.mxu0 0.0
    %5187 = vmatpush2.msra.mxu0 0.0
    %5188 = vmatprep.subr.mxu0 0.0
    %5189 = vmatpush2.msra.mxu0 0.0
    %5190 = vmatprep.subr.mxu0 0.0
    %5191 = vmatpush2.msra.mxu0 0.0
    %5192 = vmatprep.subr.mxu0 0.0
    %5193 = vmatpush2.msra.mxu0 0.0
    %5194 = vmatprep.subr.mxu0 0.0
    %5195 = vmatpush2.msra.mxu0 0.0
    %5196 = vmatprep.subr.mxu0 0.0
    %5197 = vmatpush2.msra.mxu0 0.0
    %5198 = vmatprep.subr.mxu0 0.0
    %5199 = vmatpush2.msra.mxu0 0.0
    %5200 = vmatprep.subr.mxu0 0.0
    %5201 = vmatpush2.msra.mxu0 0.0
    %5202 = vmatprep.subr.mxu0 0.0
    %5203 = vmatpush2.msra.mxu0 0.0
    %5204 = vmatprep.subr.mxu0 0.0
    %5205 = vmatpush2.msra.mxu0 0.0
    %5206 = vmatprep.subr.mxu0 0.0
    %5207 = vmatpush2.msra.mxu0 0.0
    %5208 = vmatprep.mubr.f32.mxu0 0.0
    %v5209 = vand.u32 %v3482, 4294901760
    %5210 = vmatmul.mubr.f32.gmra.mxu0 %v5209
    %v5211 = vpop.f32.mrf.mxu0
    %v5212 = vadd.f32 %v5069, %v5211
    %v5213 = vpop.f32.mrf.mxu0
    %5214 = vmatprep.mubr.f32.mxu0 0.0
    %v5215 = vand.u32 %v3483, 4294901760
    %5216 = vmatmul.mubr.f32.gmra.mxu0 %v5215
    %v5217 = vpop.f32.mrf.mxu0
    %v5218 = vadd.f32 %v5077, %v5217
    %v5219 = vpop.f32.mrf.mxu0
    %5220 = vmatprep.mubr.f32.mxu0 0.0
    %v5221 = vand.u32 %v3484, 4294901760
    %5222 = vmatmul.mubr.f32.gmra.mxu0 %v5221
    %v5223 = vpop.f32.mrf.mxu0
    %v5224 = vadd.f32 %v5085, %v5223
    %v5225 = vpop.f32.mrf.mxu0
    %5226 = vmatprep.mubr.f32.mxu0 0.0
    %v5227 = vand.u32 %v3485, 4294901760
    %5228 = vmatmul.mubr.f32.gmra.mxu0 %v5227
    %v5229 = vpop.f32.mrf.mxu0
    %v5230 = vadd.f32 %v5093, %v5229
    %v5231 = vpop.f32.mrf.mxu0
    %5232 = vdwg.mxu0
    %5233 = vmatprep.subr.mxu0 0.0
    %v5234 = vand.u32 %v3533, 4294901760
    %5235 = vmatpush1.msra.mxu0 %v5234
    %5236 = vmatprep.subr.mxu0 0.0
    %v5237 = vand.u32 %v3532, 4294901760
    %5238 = vmatpush1.msra.mxu0 %v5237
    %5239 = vmatprep.subr.mxu0 0.0
    %v5240 = vand.u32 %v3531, 4294901760
    %5241 = vmatpush1.msra.mxu0 %v5240
    %5242 = vmatprep.subr.mxu0 0.0
    %v5243 = vand.u32 %v3530, 4294901760
    %5244 = vmatpush1.msra.mxu0 %v5243
    %5245 = vmatprep.subr.mxu0 0.0
    %v5246 = vand.u32 %v3529, 4294901760
    %5247 = vmatpush1.msra.mxu0 %v5246
    %5248 = vmatprep.subr.mxu0 0.0
    %v5249 = vand.u32 %v3528, 4294901760
    %5250 = vmatpush1.msra.mxu0 %v5249
    %5251 = vmatprep.subr.mxu0 0.0
    %v5252 = vand.u32 %v3527, 4294901760
    %5253 = vmatpush1.msra.mxu0 %v5252
    %5254 = vmatprep.subr.mxu0 0.0
    %v5255 = vand.u32 %v3526, 4294901760
    %5256 = vmatpush1.msra.mxu0 %v5255
    %5257 = vmatprep.subr.mxu0 0.0
    %v5258 = vand.u32 %v3525, 4294901760
    %5259 = vmatpush1.msra.mxu0 %v5258
    %5260 = vmatprep.subr.mxu0 0.0
    %v5261 = vand.u32 %v3524, 4294901760
    %5262 = vmatpush1.msra.mxu0 %v5261
    %5263 = vmatprep.subr.mxu0 0.0
    %v5264 = vand.u32 %v3523, 4294901760
    %5265 = vmatpush1.msra.mxu0 %v5264
    %5266 = vmatprep.subr.mxu0 0.0
    %v5267 = vand.u32 %v3522, 4294901760
    %5268 = vmatpush1.msra.mxu0 %v5267
    %5269 = vmatprep.subr.mxu0 0.0
    %v5270 = vand.u32 %v3521, 4294901760
    %5271 = vmatpush1.msra.mxu0 %v5270
    %5272 = vmatprep.subr.mxu0 0.0
    %v5273 = vand.u32 %v3520, 4294901760
    %5274 = vmatpush1.msra.mxu0 %v5273
    %5275 = vmatprep.subr.mxu0 0.0
    %v5276 = vand.u32 %v3519, 4294901760
    %5277 = vmatpush1.msra.mxu0 %v5276
    %5278 = vmatprep.subr.mxu0 0.0
    %v5279 = vand.u32 %v3518, 4294901760
    %5280 = vmatpush1.msra.mxu0 %v5279
    %5281 = vmatprep.subr.mxu0 0.0
    %5282 = vmatpush2.msra.mxu0 0.0
    %5283 = vmatprep.subr.mxu0 0.0
    %5284 = vmatpush2.msra.mxu0 0.0
    %5285 = vmatprep.subr.mxu0 0.0
    %5286 = vmatpush2.msra.mxu0 0.0
    %5287 = vmatprep.subr.mxu0 0.0
    %5288 = vmatpush2.msra.mxu0 0.0
    %5289 = vmatprep.subr.mxu0 0.0
    %5290 = vmatpush2.msra.mxu0 0.0
    %5291 = vmatprep.subr.mxu0 0.0
    %5292 = vmatpush2.msra.mxu0 0.0
    %5293 = vmatprep.subr.mxu0 0.0
    %5294 = vmatpush2.msra.mxu0 0.0
    %5295 = vmatprep.subr.mxu0 0.0
    %5296 = vmatpush2.msra.mxu0 0.0
    %5297 = vmatprep.subr.mxu0 0.0
    %5298 = vmatpush2.msra.mxu0 0.0
    %5299 = vmatprep.subr.mxu0 0.0
    %5300 = vmatpush2.msra.mxu0 0.0
    %5301 = vmatprep.subr.mxu0 0.0
    %5302 = vmatpush2.msra.mxu0 0.0
    %5303 = vmatprep.subr.mxu0 0.0
    %5304 = vmatpush2.msra.mxu0 0.0
    %5305 = vmatprep.subr.mxu0 0.0
    %5306 = vmatpush2.msra.mxu0 0.0
    %5307 = vmatprep.subr.mxu0 0.0
    %5308 = vmatpush2.msra.mxu0 0.0
    %5309 = vmatprep.subr.mxu0 0.0
    %5310 = vmatpush2.msra.mxu0 0.0
    %5311 = vmatprep.subr.mxu0 0.0
    %5312 = vmatpush2.msra.mxu0 0.0
    %5313 = vmatprep.mubr.f32.mxu0 0.0
    %v5314 = vand.u32 %v3482, 4294901760
    %5315 = vmatmul.mubr.f32.gmra.mxu0 %v5314
    %v5316 = vpop.f32.mrf.mxu0
    %v5317 = vadd.f32 %v5212, %v5316
    %v5318 = vpop.f32.mrf.mxu0
    %5319 = vmatprep.mubr.f32.mxu0 0.0
    %v5320 = vand.u32 %v3483, 4294901760
    %5321 = vmatmul.mubr.f32.gmra.mxu0 %v5320
    %v5322 = vpop.f32.mrf.mxu0
    %v5323 = vadd.f32 %v5218, %v5322
    %v5324 = vpop.f32.mrf.mxu0
    %5325 = vmatprep.mubr.f32.mxu0 0.0
    %v5326 = vand.u32 %v3484, 4294901760
    %5327 = vmatmul.mubr.f32.gmra.mxu0 %v5326
    %v5328 = vpop.f32.mrf.mxu0
    %v5329 = vadd.f32 %v5224, %v5328
    %v5330 = vpop.f32.mrf.mxu0
    %5331 = vmatprep.mubr.f32.mxu0 0.0
    %v5332 = vand.u32 %v3485, 4294901760
    %5333 = vmatmul.mubr.f32.gmra.mxu0 %v5332
    %v5334 = vpop.f32.mrf.mxu0
    %v5335 = vadd.f32 %v5230, %v5334
    %v5336 = vpop.f32.mrf.mxu0
    %5337 = vdwg.mxu0
    %v5338 = vadd.f32 %v5317, %v5323
    %v5339 = vadd.f32 %v5338, %v5329
    %v5340 = vadd.f32 %v5339, %v5335
    %v5341 = vrot.slane %v5340, 4
    %v5342 = vadd.f32 %v5340, %v5341
    %v5343 = vrot.slane %v5342, 2
    %v5344 = vadd.f32 %v5342, %v5343
    %v5345 = vrot.slane %v5344, 1
    %v5346 = vadd.f32 %v5344, %v5345
    %v5347 = vmul.f32 %v5317, %v5317
    %v5348 = vmul.f32 %v5323, %v5323
    %v5349 = vmul.f32 %v5329, %v5329
    %v5350 = vmul.f32 %v5335, %v5335
    %v5351 = vadd.f32 %v5347, %v5348
    %v5352 = vadd.f32 %v5351, %v5349
    %v5353 = vadd.f32 %v5352, %v5350
    %v5354 = vrot.slane %v5353, 4
    %v5355 = vadd.f32 %v5353, %v5354
    %v5356 = vrot.slane %v5355, 2
    %v5357 = vadd.f32 %v5355, %v5356
    %v5358 = vrot.slane %v5357, 1
    %v5359 = vadd.f32 %v5357, %v5358
    %v5360 = vsel %vm128, %v5346, %v5359
    %5361 = vmatprep.subr.mxu0 0.0
    %v5362 = vand.u32 %v53, 4294901760
    %5363 = vmatpush1.msra.mxu0 %v5362
    %5364 = vmatprep.subr.mxu0 0.0
    %v5365 = vand.u32 %v52, 4294901760
    %5366 = vmatpush1.msra.mxu0 %v5365
    %5367 = vmatprep.subr.mxu0 0.0
    %v5368 = vand.u32 %v51, 4294901760
    %5369 = vmatpush1.msra.mxu0 %v5368
    %5370 = vmatprep.subr.mxu0 0.0
    %v5371 = vand.u32 %v50, 4294901760
    %5372 = vmatpush1.msra.mxu0 %v5371
    %5373 = vmatprep.subr.mxu0 0.0
    %v5374 = vand.u32 %v49, 4294901760
    %5375 = vmatpush1.msra.mxu0 %v5374
    %5376 = vmatprep.subr.mxu0 0.0
    %v5377 = vand.u32 %v48, 4294901760
    %5378 = vmatpush1.msra.mxu0 %v5377
    %5379 = vmatprep.subr.mxu0 0.0
    %v5380 = vand.u32 %v47, 4294901760
    %5381 = vmatpush1.msra.mxu0 %v5380
    %5382 = vmatprep.subr.mxu0 0.0
    %v5383 = vand.u32 %v46, 4294901760
    %5384 = vmatpush1.msra.mxu0 %v5383
    %5385 = vmatprep.subr.mxu0 0.0
    %v5386 = vand.u32 %v45, 4294901760
    %5387 = vmatpush1.msra.mxu0 %v5386
    %5388 = vmatprep.subr.mxu0 0.0
    %v5389 = vand.u32 %v44, 4294901760
    %5390 = vmatpush1.msra.mxu0 %v5389
    %5391 = vmatprep.subr.mxu0 0.0
    %v5392 = vand.u32 %v43, 4294901760
    %5393 = vmatpush1.msra.mxu0 %v5392
    %5394 = vmatprep.subr.mxu0 0.0
    %v5395 = vand.u32 %v42, 4294901760
    %5396 = vmatpush1.msra.mxu0 %v5395
    %5397 = vmatprep.subr.mxu0 0.0
    %v5398 = vand.u32 %v41, 4294901760
    %5399 = vmatpush1.msra.mxu0 %v5398
    %5400 = vmatprep.subr.mxu0 0.0
    %v5401 = vand.u32 %v40, 4294901760
    %5402 = vmatpush1.msra.mxu0 %v5401
    %5403 = vmatprep.subr.mxu0 0.0
    %v5404 = vand.u32 %v39, 4294901760
    %5405 = vmatpush1.msra.mxu0 %v5404
    %5406 = vmatprep.subr.mxu0 0.0
    %v5407 = vand.u32 %v38, 4294901760
    %5408 = vmatpush1.msra.mxu0 %v5407
    %5409 = vmatprep.subr.mxu0 0.0
    %5410 = vmatpush2.msra.mxu0 0.0
    %5411 = vmatprep.subr.mxu0 0.0
    %5412 = vmatpush2.msra.mxu0 0.0
    %5413 = vmatprep.subr.mxu0 0.0
    %5414 = vmatpush2.msra.mxu0 0.0
    %5415 = vmatprep.subr.mxu0 0.0
    %5416 = vmatpush2.msra.mxu0 0.0
    %5417 = vmatprep.subr.mxu0 0.0
    %5418 = vmatpush2.msra.mxu0 0.0
    %5419 = vmatprep.subr.mxu0 0.0
    %5420 = vmatpush2.msra.mxu0 0.0
    %5421 = vmatprep.subr.mxu0 0.0
    %5422 = vmatpush2.msra.mxu0 0.0
    %5423 = vmatprep.subr.mxu0 0.0
    %5424 = vmatpush2.msra.mxu0 0.0
    %5425 = vmatprep.subr.mxu0 0.0
    %5426 = vmatpush2.msra.mxu0 0.0
    %5427 = vmatprep.subr.mxu0 0.0
    %5428 = vmatpush2.msra.mxu0 0.0
    %5429 = vmatprep.subr.mxu0 0.0
    %5430 = vmatpush2.msra.mxu0 0.0
    %5431 = vmatprep.subr.mxu0 0.0
    %5432 = vmatpush2.msra.mxu0 0.0
    %5433 = vmatprep.subr.mxu0 0.0
    %5434 = vmatpush2.msra.mxu0 0.0
    %5435 = vmatprep.subr.mxu0 0.0
    %5436 = vmatpush2.msra.mxu0 0.0
    %5437 = vmatprep.subr.mxu0 0.0
    %5438 = vmatpush2.msra.mxu0 0.0
    %5439 = vmatprep.subr.mxu0 0.0
    %5440 = vmatpush2.msra.mxu0 0.0
    %5441 = vmatprep.mubr.f32.mxu0 0.0
    %v5442 = vand.u32 %v5360, 4294901760
    %v5443 = vsub.f32 %v5360, %v5442
    %v5444 = vand.u32 %v5443, 4294901760
    %v5445 = vsub.f32 %v5443, %v5444
    %v5446 = vand.u32 %v5445, 4294901760
    %5447 = vmatmul.mubr.f32.gmra.mxu0 %v5446
    %v5448 = vpop.f32.mrf.mxu0
    %v5449 = vadd.f32 0.0, %v5448
    %v5450 = vpop.f32.mrf.mxu0
    %5451 = vdwg.mxu0
    %5452 = vmatprep.subr.mxu0 0.0
    %v5453 = vand.u32 %v53, 4294901760
    %v5454 = vsub.f32 %v53, %v5453
    %v5455 = vand.u32 %v5454, 4294901760
    %v5456 = vsub.f32 %v5454, %v5455
    %v5457 = vand.u32 %v5456, 4294901760
    %5458 = vmatpush1.msra.mxu0 %v5457
    %5459 = vmatprep.subr.mxu0 0.0
    %v5460 = vand.u32 %v52, 4294901760
    %v5461 = vsub.f32 %v52, %v5460
    %v5462 = vand.u32 %v5461, 4294901760
    %v5463 = vsub.f32 %v5461, %v5462
    %v5464 = vand.u32 %v5463, 4294901760
    %5465 = vmatpush1.msra.mxu0 %v5464
    %5466 = vmatprep.subr.mxu0 0.0
    %v5467 = vand.u32 %v51, 4294901760
    %v5468 = vsub.f32 %v51, %v5467
    %v5469 = vand.u32 %v5468, 4294901760
    %v5470 = vsub.f32 %v5468, %v5469
    %v5471 = vand.u32 %v5470, 4294901760
    %5472 = vmatpush1.msra.mxu0 %v5471
    %5473 = vmatprep.subr.mxu0 0.0
    %v5474 = vand.u32 %v50, 4294901760
    %v5475 = vsub.f32 %v50, %v5474
    %v5476 = vand.u32 %v5475, 4294901760
    %v5477 = vsub.f32 %v5475, %v5476
    %v5478 = vand.u32 %v5477, 4294901760
    %5479 = vmatpush1.msra.mxu0 %v5478
    %5480 = vmatprep.subr.mxu0 0.0
    %v5481 = vand.u32 %v49, 4294901760
    %v5482 = vsub.f32 %v49, %v5481
    %v5483 = vand.u32 %v5482, 4294901760
    %v5484 = vsub.f32 %v5482, %v5483
    %v5485 = vand.u32 %v5484, 4294901760
    %5486 = vmatpush1.msra.mxu0 %v5485
    %5487 = vmatprep.subr.mxu0 0.0
    %v5488 = vand.u32 %v48, 4294901760
    %v5489 = vsub.f32 %v48, %v5488
    %v5490 = vand.u32 %v5489, 4294901760
    %v5491 = vsub.f32 %v5489, %v5490
    %v5492 = vand.u32 %v5491, 4294901760
    %5493 = vmatpush1.msra.mxu0 %v5492
    %5494 = vmatprep.subr.mxu0 0.0
    %v5495 = vand.u32 %v47, 4294901760
    %v5496 = vsub.f32 %v47, %v5495
    %v5497 = vand.u32 %v5496, 4294901760
    %v5498 = vsub.f32 %v5496, %v5497
    %v5499 = vand.u32 %v5498, 4294901760
    %5500 = vmatpush1.msra.mxu0 %v5499
    %5501 = vmatprep.subr.mxu0 0.0
    %v5502 = vand.u32 %v46, 4294901760
    %v5503 = vsub.f32 %v46, %v5502
    %v5504 = vand.u32 %v5503, 4294901760
    %v5505 = vsub.f32 %v5503, %v5504
    %v5506 = vand.u32 %v5505, 4294901760
    %5507 = vmatpush1.msra.mxu0 %v5506
    %5508 = vmatprep.subr.mxu0 0.0
    %v5509 = vand.u32 %v45, 4294901760
    %v5510 = vsub.f32 %v45, %v5509
    %v5511 = vand.u32 %v5510, 4294901760
    %v5512 = vsub.f32 %v5510, %v5511
    %v5513 = vand.u32 %v5512, 4294901760
    %5514 = vmatpush1.msra.mxu0 %v5513
    %5515 = vmatprep.subr.mxu0 0.0
    %v5516 = vand.u32 %v44, 4294901760
    %v5517 = vsub.f32 %v44, %v5516
    %v5518 = vand.u32 %v5517, 4294901760
    %v5519 = vsub.f32 %v5517, %v5518
    %v5520 = vand.u32 %v5519, 4294901760
    %5521 = vmatpush1.msra.mxu0 %v5520
    %5522 = vmatprep.subr.mxu0 0.0
    %v5523 = vand.u32 %v43, 4294901760
    %v5524 = vsub.f32 %v43, %v5523
    %v5525 = vand.u32 %v5524, 4294901760
    %v5526 = vsub.f32 %v5524, %v5525
    %v5527 = vand.u32 %v5526, 4294901760
    %5528 = vmatpush1.msra.mxu0 %v5527
    %5529 = vmatprep.subr.mxu0 0.0
    %v5530 = vand.u32 %v42, 4294901760
    %v5531 = vsub.f32 %v42, %v5530
    %v5532 = vand.u32 %v5531, 4294901760
    %v5533 = vsub.f32 %v5531, %v5532
    %v5534 = vand.u32 %v5533, 4294901760
    %5535 = vmatpush1.msra.mxu0 %v5534
    %5536 = vmatprep.subr.mxu0 0.0
    %v5537 = vand.u32 %v41, 4294901760
    %v5538 = vsub.f32 %v41, %v5537
    %v5539 = vand.u32 %v5538, 4294901760
    %v5540 = vsub.f32 %v5538, %v5539
    %v5541 = vand.u32 %v5540, 4294901760
    %5542 = vmatpush1.msra.mxu0 %v5541
    %5543 = vmatprep.subr.mxu0 0.0
    %v5544 = vand.u32 %v40, 4294901760
    %v5545 = vsub.f32 %v40, %v5544
    %v5546 = vand.u32 %v5545, 4294901760
    %v5547 = vsub.f32 %v5545, %v5546
    %v5548 = vand.u32 %v5547, 4294901760
    %5549 = vmatpush1.msra.mxu0 %v5548
    %5550 = vmatprep.subr.mxu0 0.0
    %v5551 = vand.u32 %v39, 4294901760
    %v5552 = vsub.f32 %v39, %v5551
    %v5553 = vand.u32 %v5552, 4294901760
    %v5554 = vsub.f32 %v5552, %v5553
    %v5555 = vand.u32 %v5554, 4294901760
    %5556 = vmatpush1.msra.mxu0 %v5555
    %5557 = vmatprep.subr.mxu0 0.0
    %v5558 = vand.u32 %v38, 4294901760
    %v5559 = vsub.f32 %v38, %v5558
    %v5560 = vand.u32 %v5559, 4294901760
    %v5561 = vsub.f32 %v5559, %v5560
    %v5562 = vand.u32 %v5561, 4294901760
    %5563 = vmatpush1.msra.mxu0 %v5562
    %5564 = vmatprep.subr.mxu0 0.0
    %5565 = vmatpush2.msra.mxu0 0.0
    %5566 = vmatprep.subr.mxu0 0.0
    %5567 = vmatpush2.msra.mxu0 0.0
    %5568 = vmatprep.subr.mxu0 0.0
    %5569 = vmatpush2.msra.mxu0 0.0
    %5570 = vmatprep.subr.mxu0 0.0
    %5571 = vmatpush2.msra.mxu0 0.0
    %5572 = vmatprep.subr.mxu0 0.0
    %5573 = vmatpush2.msra.mxu0 0.0
    %5574 = vmatprep.subr.mxu0 0.0
    %5575 = vmatpush2.msra.mxu0 0.0
    %5576 = vmatprep.subr.mxu0 0.0
    %5577 = vmatpush2.msra.mxu0 0.0
    %5578 = vmatprep.subr.mxu0 0.0
    %5579 = vmatpush2.msra.mxu0 0.0
    %5580 = vmatprep.subr.mxu0 0.0
    %5581 = vmatpush2.msra.mxu0 0.0
    %5582 = vmatprep.subr.mxu0 0.0
    %5583 = vmatpush2.msra.mxu0 0.0
    %5584 = vmatprep.subr.mxu0 0.0
    %5585 = vmatpush2.msra.mxu0 0.0
    %5586 = vmatprep.subr.mxu0 0.0
    %5587 = vmatpush2.msra.mxu0 0.0
    %5588 = vmatprep.subr.mxu0 0.0
    %5589 = vmatpush2.msra.mxu0 0.0
    %5590 = vmatprep.subr.mxu0 0.0
    %5591 = vmatpush2.msra.mxu0 0.0
    %5592 = vmatprep.subr.mxu0 0.0
    %5593 = vmatpush2.msra.mxu0 0.0
    %5594 = vmatprep.subr.mxu0 0.0
    %5595 = vmatpush2.msra.mxu0 0.0
    %5596 = vmatprep.mubr.f32.mxu0 0.0
    %v5597 = vand.u32 %v5360, 4294901760
    %5598 = vmatmul.mubr.f32.gmra.mxu0 %v5597
    %v5599 = vpop.f32.mrf.mxu0
    %v5600 = vadd.f32 %v5449, %v5599
    %v5601 = vpop.f32.mrf.mxu0
    %5602 = vdwg.mxu0
    %5603 = vmatprep.subr.mxu0 0.0
    %v5604 = vand.u32 %v53, 4294901760
    %v5605 = vsub.f32 %v53, %v5604
    %5606 = vmatpush1.msra.mxu0 %v5605
    %5607 = vmatprep.subr.mxu0 0.0
    %v5608 = vand.u32 %v52, 4294901760
    %v5609 = vsub.f32 %v52, %v5608
    %5610 = vmatpush1.msra.mxu0 %v5609
    %5611 = vmatprep.subr.mxu0 0.0
    %v5612 = vand.u32 %v51, 4294901760
    %v5613 = vsub.f32 %v51, %v5612
    %5614 = vmatpush1.msra.mxu0 %v5613
    %5615 = vmatprep.subr.mxu0 0.0
    %v5616 = vand.u32 %v50, 4294901760
    %v5617 = vsub.f32 %v50, %v5616
    %5618 = vmatpush1.msra.mxu0 %v5617
    %5619 = vmatprep.subr.mxu0 0.0
    %v5620 = vand.u32 %v49, 4294901760
    %v5621 = vsub.f32 %v49, %v5620
    %5622 = vmatpush1.msra.mxu0 %v5621
    %5623 = vmatprep.subr.mxu0 0.0
    %v5624 = vand.u32 %v48, 4294901760
    %v5625 = vsub.f32 %v48, %v5624
    %5626 = vmatpush1.msra.mxu0 %v5625
    %5627 = vmatprep.subr.mxu0 0.0
    %v5628 = vand.u32 %v47, 4294901760
    %v5629 = vsub.f32 %v47, %v5628
    %5630 = vmatpush1.msra.mxu0 %v5629
    %5631 = vmatprep.subr.mxu0 0.0
    %v5632 = vand.u32 %v46, 4294901760
    %v5633 = vsub.f32 %v46, %v5632
    %5634 = vmatpush1.msra.mxu0 %v5633
    %5635 = vmatprep.subr.mxu0 0.0
    %v5636 = vand.u32 %v45, 4294901760
    %v5637 = vsub.f32 %v45, %v5636
    %5638 = vmatpush1.msra.mxu0 %v5637
    %5639 = vmatprep.subr.mxu0 0.0
    %v5640 = vand.u32 %v44, 4294901760
    %v5641 = vsub.f32 %v44, %v5640
    %5642 = vmatpush1.msra.mxu0 %v5641
    %5643 = vmatprep.subr.mxu0 0.0
    %v5644 = vand.u32 %v43, 4294901760
    %v5645 = vsub.f32 %v43, %v5644
    %5646 = vmatpush1.msra.mxu0 %v5645
    %5647 = vmatprep.subr.mxu0 0.0
    %v5648 = vand.u32 %v42, 4294901760
    %v5649 = vsub.f32 %v42, %v5648
    %5650 = vmatpush1.msra.mxu0 %v5649
    %5651 = vmatprep.subr.mxu0 0.0
    %v5652 = vand.u32 %v41, 4294901760
    %v5653 = vsub.f32 %v41, %v5652
    %5654 = vmatpush1.msra.mxu0 %v5653
    %5655 = vmatprep.subr.mxu0 0.0
    %v5656 = vand.u32 %v40, 4294901760
    %v5657 = vsub.f32 %v40, %v5656
    %5658 = vmatpush1.msra.mxu0 %v5657
    %5659 = vmatprep.subr.mxu0 0.0
    %v5660 = vand.u32 %v39, 4294901760
    %v5661 = vsub.f32 %v39, %v5660
    %5662 = vmatpush1.msra.mxu0 %v5661
    %5663 = vmatprep.subr.mxu0 0.0
    %v5664 = vand.u32 %v38, 4294901760
    %v5665 = vsub.f32 %v38, %v5664
    %5666 = vmatpush1.msra.mxu0 %v5665
    %5667 = vmatprep.subr.mxu0 0.0
    %5668 = vmatpush2.msra.mxu0 0.0
    %5669 = vmatprep.subr.mxu0 0.0
    %5670 = vmatpush2.msra.mxu0 0.0
    %5671 = vmatprep.subr.mxu0 0.0
    %5672 = vmatpush2.msra.mxu0 0.0
    %5673 = vmatprep.subr.mxu0 0.0
    %5674 = vmatpush2.msra.mxu0 0.0
    %5675 = vmatprep.subr.mxu0 0.0
    %5676 = vmatpush2.msra.mxu0 0.0
    %5677 = vmatprep.subr.mxu0 0.0
    %5678 = vmatpush2.msra.mxu0 0.0
    %5679 = vmatprep.subr.mxu0 0.0
    %5680 = vmatpush2.msra.mxu0 0.0
    %5681 = vmatprep.subr.mxu0 0.0
    %5682 = vmatpush2.msra.mxu0 0.0
    %5683 = vmatprep.subr.mxu0 0.0
    %5684 = vmatpush2.msra.mxu0 0.0
    %5685 = vmatprep.subr.mxu0 0.0
    %5686 = vmatpush2.msra.mxu0 0.0
    %5687 = vmatprep.subr.mxu0 0.0
    %5688 = vmatpush2.msra.mxu0 0.0
    %5689 = vmatprep.subr.mxu0 0.0
    %5690 = vmatpush2.msra.mxu0 0.0
    %5691 = vmatprep.subr.mxu0 0.0
    %5692 = vmatpush2.msra.mxu0 0.0
    %5693 = vmatprep.subr.mxu0 0.0
    %5694 = vmatpush2.msra.mxu0 0.0
    %5695 = vmatprep.subr.mxu0 0.0
    %5696 = vmatpush2.msra.mxu0 0.0
    %5697 = vmatprep.subr.mxu0 0.0
    %5698 = vmatpush2.msra.mxu0 0.0
    %5699 = vmatprep.mubr.f32.mxu0 0.0
    %v5700 = vand.u32 %v5360, 4294901760
    %v5701 = vsub.f32 %v5360, %v5700
    %5702 = vmatmul.mubr.f32.gmra.mxu0 %v5701
    %v5703 = vpop.f32.mrf.mxu0
    %v5704 = vadd.f32 %v5600, %v5703
    %v5705 = vpop.f32.mrf.mxu0
    %5706 = vdwg.mxu0
    %5707 = vmatprep.subr.mxu0 0.0
    %v5708 = vand.u32 %v53, 4294901760
    %5709 = vmatpush1.msra.mxu0 %v5708
    %5710 = vmatprep.subr.mxu0 0.0
    %v5711 = vand.u32 %v52, 4294901760
    %5712 = vmatpush1.msra.mxu0 %v5711
    %5713 = vmatprep.subr.mxu0 0.0
    %v5714 = vand.u32 %v51, 4294901760
    %5715 = vmatpush1.msra.mxu0 %v5714
    %5716 = vmatprep.subr.mxu0 0.0
    %v5717 = vand.u32 %v50, 4294901760
    %5718 = vmatpush1.msra.mxu0 %v5717
    %5719 = vmatprep.subr.mxu0 0.0
    %v5720 = vand.u32 %v49, 4294901760
    %5721 = vmatpush1.msra.mxu0 %v5720
    %5722 = vmatprep.subr.mxu0 0.0
    %v5723 = vand.u32 %v48, 4294901760
    %5724 = vmatpush1.msra.mxu0 %v5723
    %5725 = vmatprep.subr.mxu0 0.0
    %v5726 = vand.u32 %v47, 4294901760
    %5727 = vmatpush1.msra.mxu0 %v5726
    %5728 = vmatprep.subr.mxu0 0.0
    %v5729 = vand.u32 %v46, 4294901760
    %5730 = vmatpush1.msra.mxu0 %v5729
    %5731 = vmatprep.subr.mxu0 0.0
    %v5732 = vand.u32 %v45, 4294901760
    %5733 = vmatpush1.msra.mxu0 %v5732
    %5734 = vmatprep.subr.mxu0 0.0
    %v5735 = vand.u32 %v44, 4294901760
    %5736 = vmatpush1.msra.mxu0 %v5735
    %5737 = vmatprep.subr.mxu0 0.0
    %v5738 = vand.u32 %v43, 4294901760
    %5739 = vmatpush1.msra.mxu0 %v5738
    %5740 = vmatprep.subr.mxu0 0.0
    %v5741 = vand.u32 %v42, 4294901760
    %5742 = vmatpush1.msra.mxu0 %v5741
    %5743 = vmatprep.subr.mxu0 0.0
    %v5744 = vand.u32 %v41, 4294901760
    %5745 = vmatpush1.msra.mxu0 %v5744
    %5746 = vmatprep.subr.mxu0 0.0
    %v5747 = vand.u32 %v40, 4294901760
    %5748 = vmatpush1.msra.mxu0 %v5747
    %5749 = vmatprep.subr.mxu0 0.0
    %v5750 = vand.u32 %v39, 4294901760
    %5751 = vmatpush1.msra.mxu0 %v5750
    %5752 = vmatprep.subr.mxu0 0.0
    %v5753 = vand.u32 %v38, 4294901760
    %5754 = vmatpush1.msra.mxu0 %v5753
    %5755 = vmatprep.subr.mxu0 0.0
    %5756 = vmatpush2.msra.mxu0 0.0
    %5757 = vmatprep.subr.mxu0 0.0
    %5758 = vmatpush2.msra.mxu0 0.0
    %5759 = vmatprep.subr.mxu0 0.0
    %5760 = vmatpush2.msra.mxu0 0.0
    %5761 = vmatprep.subr.mxu0 0.0
    %5762 = vmatpush2.msra.mxu0 0.0
    %5763 = vmatprep.subr.mxu0 0.0
    %5764 = vmatpush2.msra.mxu0 0.0
    %5765 = vmatprep.subr.mxu0 0.0
    %5766 = vmatpush2.msra.mxu0 0.0
    %5767 = vmatprep.subr.mxu0 0.0
    %5768 = vmatpush2.msra.mxu0 0.0
    %5769 = vmatprep.subr.mxu0 0.0
    %5770 = vmatpush2.msra.mxu0 0.0
    %5771 = vmatprep.subr.mxu0 0.0
    %5772 = vmatpush2.msra.mxu0 0.0
    %5773 = vmatprep.subr.mxu0 0.0
    %5774 = vmatpush2.msra.mxu0 0.0
    %5775 = vmatprep.subr.mxu0 0.0
    %5776 = vmatpush2.msra.mxu0 0.0
    %5777 = vmatprep.subr.mxu0 0.0
    %5778 = vmatpush2.msra.mxu0 0.0
    %5779 = vmatprep.subr.mxu0 0.0
    %5780 = vmatpush2.msra.mxu0 0.0
    %5781 = vmatprep.subr.mxu0 0.0
    %5782 = vmatpush2.msra.mxu0 0.0
    %5783 = vmatprep.subr.mxu0 0.0
    %5784 = vmatpush2.msra.mxu0 0.0
    %5785 = vmatprep.subr.mxu0 0.0
    %5786 = vmatpush2.msra.mxu0 0.0
    %5787 = vmatprep.mubr.f32.mxu0 0.0
    %v5788 = vand.u32 %v5360, 4294901760
    %v5789 = vsub.f32 %v5360, %v5788
    %v5790 = vand.u32 %v5789, 4294901760
    %5791 = vmatmul.mubr.f32.gmra.mxu0 %v5790
    %v5792 = vpop.f32.mrf.mxu0
    %v5793 = vadd.f32 %v5704, %v5792
    %v5794 = vpop.f32.mrf.mxu0
    %5795 = vdwg.mxu0
    %5796 = vmatprep.subr.mxu0 0.0
    %v5797 = vand.u32 %v53, 4294901760
    %v5798 = vsub.f32 %v53, %v5797
    %v5799 = vand.u32 %v5798, 4294901760
    %5800 = vmatpush1.msra.mxu0 %v5799
    %5801 = vmatprep.subr.mxu0 0.0
    %v5802 = vand.u32 %v52, 4294901760
    %v5803 = vsub.f32 %v52, %v5802
    %v5804 = vand.u32 %v5803, 4294901760
    %5805 = vmatpush1.msra.mxu0 %v5804
    %5806 = vmatprep.subr.mxu0 0.0
    %v5807 = vand.u32 %v51, 4294901760
    %v5808 = vsub.f32 %v51, %v5807
    %v5809 = vand.u32 %v5808, 4294901760
    %5810 = vmatpush1.msra.mxu0 %v5809
    %5811 = vmatprep.subr.mxu0 0.0
    %v5812 = vand.u32 %v50, 4294901760
    %v5813 = vsub.f32 %v50, %v5812
    %v5814 = vand.u32 %v5813, 4294901760
    %5815 = vmatpush1.msra.mxu0 %v5814
    %5816 = vmatprep.subr.mxu0 0.0
    %v5817 = vand.u32 %v49, 4294901760
    %v5818 = vsub.f32 %v49, %v5817
    %v5819 = vand.u32 %v5818, 4294901760
    %5820 = vmatpush1.msra.mxu0 %v5819
    %5821 = vmatprep.subr.mxu0 0.0
    %v5822 = vand.u32 %v48, 4294901760
    %v5823 = vsub.f32 %v48, %v5822
    %v5824 = vand.u32 %v5823, 4294901760
    %5825 = vmatpush1.msra.mxu0 %v5824
    %5826 = vmatprep.subr.mxu0 0.0
    %v5827 = vand.u32 %v47, 4294901760
    %v5828 = vsub.f32 %v47, %v5827
    %v5829 = vand.u32 %v5828, 4294901760
    %5830 = vmatpush1.msra.mxu0 %v5829
    %5831 = vmatprep.subr.mxu0 0.0
    %v5832 = vand.u32 %v46, 4294901760
    %v5833 = vsub.f32 %v46, %v5832
    %v5834 = vand.u32 %v5833, 4294901760
    %5835 = vmatpush1.msra.mxu0 %v5834
    %5836 = vmatprep.subr.mxu0 0.0
    %v5837 = vand.u32 %v45, 4294901760
    %v5838 = vsub.f32 %v45, %v5837
    %v5839 = vand.u32 %v5838, 4294901760
    %5840 = vmatpush1.msra.mxu0 %v5839
    %5841 = vmatprep.subr.mxu0 0.0
    %v5842 = vand.u32 %v44, 4294901760
    %v5843 = vsub.f32 %v44, %v5842
    %v5844 = vand.u32 %v5843, 4294901760
    %5845 = vmatpush1.msra.mxu0 %v5844
    %5846 = vmatprep.subr.mxu0 0.0
    %v5847 = vand.u32 %v43, 4294901760
    %v5848 = vsub.f32 %v43, %v5847
    %v5849 = vand.u32 %v5848, 4294901760
    %5850 = vmatpush1.msra.mxu0 %v5849
    %5851 = vmatprep.subr.mxu0 0.0
    %v5852 = vand.u32 %v42, 4294901760
    %v5853 = vsub.f32 %v42, %v5852
    %v5854 = vand.u32 %v5853, 4294901760
    %5855 = vmatpush1.msra.mxu0 %v5854
    %5856 = vmatprep.subr.mxu0 0.0
    %v5857 = vand.u32 %v41, 4294901760
    %v5858 = vsub.f32 %v41, %v5857
    %v5859 = vand.u32 %v5858, 4294901760
    %5860 = vmatpush1.msra.mxu0 %v5859
    %5861 = vmatprep.subr.mxu0 0.0
    %v5862 = vand.u32 %v40, 4294901760
    %v5863 = vsub.f32 %v40, %v5862
    %v5864 = vand.u32 %v5863, 4294901760
    %5865 = vmatpush1.msra.mxu0 %v5864
    %5866 = vmatprep.subr.mxu0 0.0
    %v5867 = vand.u32 %v39, 4294901760
    %v5868 = vsub.f32 %v39, %v5867
    %v5869 = vand.u32 %v5868, 4294901760
    %5870 = vmatpush1.msra.mxu0 %v5869
    %5871 = vmatprep.subr.mxu0 0.0
    %v5872 = vand.u32 %v38, 4294901760
    %v5873 = vsub.f32 %v38, %v5872
    %v5874 = vand.u32 %v5873, 4294901760
    %5875 = vmatpush1.msra.mxu0 %v5874
    %5876 = vmatprep.subr.mxu0 0.0
    %5877 = vmatpush2.msra.mxu0 0.0
    %5878 = vmatprep.subr.mxu0 0.0
    %5879 = vmatpush2.msra.mxu0 0.0
    %5880 = vmatprep.subr.mxu0 0.0
    %5881 = vmatpush2.msra.mxu0 0.0
    %5882 = vmatprep.subr.mxu0 0.0
    %5883 = vmatpush2.msra.mxu0 0.0
    %5884 = vmatprep.subr.mxu0 0.0
    %5885 = vmatpush2.msra.mxu0 0.0
    %5886 = vmatprep.subr.mxu0 0.0
    %5887 = vmatpush2.msra.mxu0 0.0
    %5888 = vmatprep.subr.mxu0 0.0
    %5889 = vmatpush2.msra.mxu0 0.0
    %5890 = vmatprep.subr.mxu0 0.0
    %5891 = vmatpush2.msra.mxu0 0.0
    %5892 = vmatprep.subr.mxu0 0.0
    %5893 = vmatpush2.msra.mxu0 0.0
    %5894 = vmatprep.subr.mxu0 0.0
    %5895 = vmatpush2.msra.mxu0 0.0
    %5896 = vmatprep.subr.mxu0 0.0
    %5897 = vmatpush2.msra.mxu0 0.0
    %5898 = vmatprep.subr.mxu0 0.0
    %5899 = vmatpush2.msra.mxu0 0.0
    %5900 = vmatprep.subr.mxu0 0.0
    %5901 = vmatpush2.msra.mxu0 0.0
    %5902 = vmatprep.subr.mxu0 0.0
    %5903 = vmatpush2.msra.mxu0 0.0
    %5904 = vmatprep.subr.mxu0 0.0
    %5905 = vmatpush2.msra.mxu0 0.0
    %5906 = vmatprep.subr.mxu0 0.0
    %5907 = vmatpush2.msra.mxu0 0.0
    %5908 = vmatprep.mubr.f32.mxu0 0.0
    %v5909 = vand.u32 %v5360, 4294901760
    %5910 = vmatmul.mubr.f32.gmra.mxu0 %v5909
    %v5911 = vpop.f32.mrf.mxu0
    %v5912 = vadd.f32 %v5793, %v5911
    %v5913 = vpop.f32.mrf.mxu0
    %5914 = vdwg.mxu0
    %5915 = vmatprep.subr.mxu0 0.0
    %v5916 = vand.u32 %v53, 4294901760
    %5917 = vmatpush1.msra.mxu0 %v5916
    %5918 = vmatprep.subr.mxu0 0.0
    %v5919 = vand.u32 %v52, 4294901760
    %5920 = vmatpush1.msra.mxu0 %v5919
    %5921 = vmatprep.subr.mxu0 0.0
    %v5922 = vand.u32 %v51, 4294901760
    %5923 = vmatpush1.msra.mxu0 %v5922
    %5924 = vmatprep.subr.mxu0 0.0
    %v5925 = vand.u32 %v50, 4294901760
    %5926 = vmatpush1.msra.mxu0 %v5925
    %5927 = vmatprep.subr.mxu0 0.0
    %v5928 = vand.u32 %v49, 4294901760
    %5929 = vmatpush1.msra.mxu0 %v5928
    %5930 = vmatprep.subr.mxu0 0.0
    %v5931 = vand.u32 %v48, 4294901760
    %5932 = vmatpush1.msra.mxu0 %v5931
    %5933 = vmatprep.subr.mxu0 0.0
    %v5934 = vand.u32 %v47, 4294901760
    %5935 = vmatpush1.msra.mxu0 %v5934
    %5936 = vmatprep.subr.mxu0 0.0
    %v5937 = vand.u32 %v46, 4294901760
    %5938 = vmatpush1.msra.mxu0 %v5937
    %5939 = vmatprep.subr.mxu0 0.0
    %v5940 = vand.u32 %v45, 4294901760
    %5941 = vmatpush1.msra.mxu0 %v5940
    %5942 = vmatprep.subr.mxu0 0.0
    %v5943 = vand.u32 %v44, 4294901760
    %5944 = vmatpush1.msra.mxu0 %v5943
    %5945 = vmatprep.subr.mxu0 0.0
    %v5946 = vand.u32 %v43, 4294901760
    %5947 = vmatpush1.msra.mxu0 %v5946
    %5948 = vmatprep.subr.mxu0 0.0
    %v5949 = vand.u32 %v42, 4294901760
    %5950 = vmatpush1.msra.mxu0 %v5949
    %5951 = vmatprep.subr.mxu0 0.0
    %v5952 = vand.u32 %v41, 4294901760
    %5953 = vmatpush1.msra.mxu0 %v5952
    %5954 = vmatprep.subr.mxu0 0.0
    %v5955 = vand.u32 %v40, 4294901760
    %5956 = vmatpush1.msra.mxu0 %v5955
    %5957 = vmatprep.subr.mxu0 0.0
    %v5958 = vand.u32 %v39, 4294901760
    %5959 = vmatpush1.msra.mxu0 %v5958
    %5960 = vmatprep.subr.mxu0 0.0
    %v5961 = vand.u32 %v38, 4294901760
    %5962 = vmatpush1.msra.mxu0 %v5961
    %5963 = vmatprep.subr.mxu0 0.0
    %5964 = vmatpush2.msra.mxu0 0.0
    %5965 = vmatprep.subr.mxu0 0.0
    %5966 = vmatpush2.msra.mxu0 0.0
    %5967 = vmatprep.subr.mxu0 0.0
    %5968 = vmatpush2.msra.mxu0 0.0
    %5969 = vmatprep.subr.mxu0 0.0
    %5970 = vmatpush2.msra.mxu0 0.0
    %5971 = vmatprep.subr.mxu0 0.0
    %5972 = vmatpush2.msra.mxu0 0.0
    %5973 = vmatprep.subr.mxu0 0.0
    %5974 = vmatpush2.msra.mxu0 0.0
    %5975 = vmatprep.subr.mxu0 0.0
    %5976 = vmatpush2.msra.mxu0 0.0
    %5977 = vmatprep.subr.mxu0 0.0
    %5978 = vmatpush2.msra.mxu0 0.0
    %5979 = vmatprep.subr.mxu0 0.0
    %5980 = vmatpush2.msra.mxu0 0.0
    %5981 = vmatprep.subr.mxu0 0.0
    %5982 = vmatpush2.msra.mxu0 0.0
    %5983 = vmatprep.subr.mxu0 0.0
    %5984 = vmatpush2.msra.mxu0 0.0
    %5985 = vmatprep.subr.mxu0 0.0
    %5986 = vmatpush2.msra.mxu0 0.0
    %5987 = vmatprep.subr.mxu0 0.0
    %5988 = vmatpush2.msra.mxu0 0.0
    %5989 = vmatprep.subr.mxu0 0.0
    %5990 = vmatpush2.msra.mxu0 0.0
    %5991 = vmatprep.subr.mxu0 0.0
    %5992 = vmatpush2.msra.mxu0 0.0
    %5993 = vmatprep.subr.mxu0 0.0
    %5994 = vmatpush2.msra.mxu0 0.0
    %5995 = vmatprep.mubr.f32.mxu0 0.0
    %v5996 = vand.u32 %v5360, 4294901760
    %5997 = vmatmul.mubr.f32.gmra.mxu0 %v5996
    %v5998 = vpop.f32.mrf.mxu0
    %v5999 = vadd.f32 %v5912, %v5998
    %v6000 = vpop.f32.mrf.mxu0
    %6001 = vdwg.mxu0
    %v6002 = vmul.f32 %v5999, 0.001953125
    %v6003 = vmul.f32 %v6002, %v6002
    %v6005 = vrot.slane %v6003, 7
    %v6007 = vsub.f32 %v6002, %v6005
    %v6008 = vadd.f32 %v6007, 1e-05
    %v6009 = vrsqrt.pop %v6008
    %v6011 = vrot.slane %v6009, 4
    %v6013 = vmul.f32 %v54, %v6011
    %v6014 = vlaneseq
    %v6015 = vshrl.u32 %v6014, 7
    %v6016 = vsub.s32 5, %v6015
    %v6017 = vrot.slane %v6013, %v6016
    %v6018 = vmul.f32 %v5317, %v6017
    %v6019 = vmul.f32 %v5323, %v6017
    %v6020 = vmul.f32 %v5329, %v6017
    %v6021 = vmul.f32 %v5335, %v6017
    %v6023 = vrot.slane %v6013, 5
    %v6025 = vmul.f32 %v6002, %v6023
    %v6027 = vrot.slane %v6025, 2
    %v6029 = vsub.f32 %v54, %v6027
    %v6030 = vlaneseq
    %v6031 = vshrl.u32 %v6030, 7
    %v6032 = vsub.s32 6, %v6031
    %v6033 = vrot.slane %v6029, %v6032
    %v6034 = vadd.f32 %v6018, %v6033
    %v6035 = vadd.f32 %v6019, %v6033
    %v6036 = vadd.f32 %v6020, %v6033
    %v6037 = vadd.f32 %v6021, %v6033
    %v6038 = vadd.f32 %v6034, %v2742
    %v6039 = vadd.f32 %v6035, %v2743
    %v6040 = vadd.f32 %v6036, %v2744
    %v6041 = vadd.f32 %v6037, %v2745
    %v6042 = vmax.f32 %v6038, 0.0
    %v6043 = vmax.f32 %v6039, 0.0
    %v6044 = vmax.f32 %v6040, 0.0
    %v6045 = vmax.f32 %v6041, 0.0
    %6046 = vst [vmem:[%s5] sm:$0xff] %v6042
    %6047 = vst [vmem:[%s5 + $0x8] sm:$0xff] %v6043
    %6048 = vst [vmem:[%s5 + $0x10] sm:$0xff] %v6044
    %6049 = vst [vmem:[%s5 + $0x18] sm:$0xff] %v6045
    // Predicated region
    $region26: #{residual_forward.1} parent=1 // pred_check
      _
    $region27: #{residual_forward.1} parent=1 // pred_check_branch
      %6051 = sbr.rel (0) target = $region29
    $region28: #{residual_forward.1} parent=1 // pred_region
      _
    $region29: #{residual_forward.1} parent=1 // pred_fallthru
      _
    // Predicated region
    $region30: #{residual_forward.1} parent=1 // pred_check
      _
    $region31: #{residual_forward.1} parent=1 // pred_check_branch
      %6053 = sbr.rel (0) target = $region33
    $region32: #{residual_forward.1} parent=1 // pred_region
      _
    $region33: #{residual_forward.1} parent=1 // pred_fallthru
      _
    %6054 = vsyncpa [#allocation3], 1

</llo_original>
